<compile_context>
chip_gen: v7x
topology: tpu7x:2x2x1
jax: 0.10.0
libtpu: 0.0.40
codegen_flags: <defaults>
</compile_context>

<pallas_src>
import jax
import jax.numpy as jnp
import numpy as np
from jax.experimental import pallas as pl
from jax.experimental.pallas import tpu as pltpu

H = W = 8            # spatial size of features[3] (kept small for the demo)
CF = 1024            # backbone feature channels (conv: 1024 -> 1024, fc in = 1024)
NUM_CLASSES = 29
TCO = 128            # Cout tile (8 grid steps; 2.25 MiB contiguous weight DMA/step)
FC_NPAD = 128        # fc output padded to a full lane width (unmasked stores)
K9 = 9 * CF          # folded tap x Cin contraction axis (9216)


# ----------------------------------------------------------------------------
# Fused kernel: per Cout tile j,
#   pooled[:, j*TCO:(j+1)*TCO] = window_means @ W_tile_j + b_conv_tile_j
# and (constant-operand, recomputed per step so every output block is written
# exactly once -> safe under "parallel") the fc logits.
# ----------------------------------------------------------------------------
def head_kernel(s_ref, w_ref, bconv_ref, xfc_ref, wfc_ref, bfc_ref,
                pool_ref, fc_ref):
    # s_ref:     [BP, 9*Cin]   bf16  window means of the zero-padded input
    # w_ref:     [9*Cin, TCO]  bf16  conv weight tile j (contiguous in HBM)
    # bconv_ref: [1, TCO]      f32
    # xfc_ref:   [BP, Cin]     bf16  out_avg_pool (backbone pooled features)
    # wfc_ref:   [Cin, 128]    bf16  fc weight, output padded to 128 lanes
    # bfc_ref:   [1, 128]      f32
    # pool_ref:  [BP, TCO]     f32   pooled (conv + bias) output, tile j
    # fc_ref:    [BP, 128]     f32   fc logits (block j; block 0 is consumed)
    pool_ref[...] = (
        jnp.dot(s_ref[...], w_ref[...], preferred_element_type=jnp.float32)
        + bconv_ref[...])
    fc_ref[...] = (
        jnp.dot(xfc_ref[...], wfc_ref[...], preferred_element_type=jnp.float32)
        + bfc_ref[...])


def mamba_head(s_pad, xfc_pad, params):
    """s_pad: [BP, 9*CF] bf16, xfc_pad: [BP, CF] bf16 (BP = sublane-padded batch)."""
    bp = s_pad.shape[0]
    n_tiles = CF // TCO
    pooled, fc_all = pl.pallas_call(
        head_kernel,
        out_shape=(
            jax.ShapeDtypeStruct((bp, CF), jnp.float32),
            jax.ShapeDtypeStruct((n_tiles, bp, FC_NPAD), jnp.float32),
        ),
        grid_spec=pltpu.PrefetchScalarGridSpec(
            num_scalar_prefetch=0,
            grid=(n_tiles,),
            in_specs=[
                # window means: constant block index -> resident for all steps
                pl.BlockSpec((bp, K9), lambda j: (0, 0)),
                # conv weights: one contiguous tile per step, fetched once each
                pl.BlockSpec((None, K9, TCO), lambda j: (j, 0, 0)),
                pl.BlockSpec((1, TCO), lambda j: (0, j)),
                # fc operands: constant block index (DMA'd once, stay resident)
                pl.BlockSpec((bp, CF), lambda j: (0, 0)),
                pl.BlockSpec((CF, FC_NPAD), lambda j: (0, 0)),
                pl.BlockSpec((1, FC_NPAD), lambda j: (0, 0)),
            ],
            out_specs=[
                pl.BlockSpec((bp, TCO), lambda j: (0, j)),
                pl.BlockSpec((None, bp, FC_NPAD), lambda j: (j, 0, 0)),
            ],
        ),
        # TODO(synk): on v7x use CORE_PARALLEL (or pl.core_map) so the Cout
        # axis is guaranteed 2-way TensorCore split; "parallel" is the portable
        # choice used here.
        compiler_params=pltpu.CompilerParams(
            dimension_semantics=("parallel",)),
    )(s_pad, params["w_conv_tiled"], params["b_conv"],
      xfc_pad, params["w_fc_pad"], params["b_fc_pad"])
    logits = fc_all[0, :, :NUM_CLASSES]
    return logits, pooled


# ----------------------------------------------------------------------------
# GAP∘conv commutation (exact because padding is zero):
#   mean_hw(conv3x3(x))[b, co]
#     = sum_{dy,dx,ci} mean_hw(xpad[b, h+dy, w+dx, ci]) * W[dy,dx,ci,co]
# so we only need the 9 window-means [B, 9*Cin] — built once per forward.
# TODO(synk): at production spatial sizes this stays tiny (it is a reduction),
# but the reduction itself could be moved in-kernel with a spatial grid axis.
# ----------------------------------------------------------------------------
def window_means(feat_nhwc):
    b, h, w, c = feat_nhwc.shape
    xq = feat_nhwc.astype(jnp.bfloat16)          # same quantization as a bf16 conv
    xpad = jnp.pad(xq, ((0, 0), (1, 1), (1, 1), (0, 0)))
    taps = [jnp.sum(xpad[:, dy:dy + h, dx:dx + w, :], axis=(1, 2),
                    dtype=jnp.float32)
            for dy in range(3) for dx in range(3)]       # tap index = dy*3 + dx
    s = jnp.stack(taps, axis=1) * (1.0 / (h * w))        # [B, 9, C]
    return s.reshape(b, 9 * c).astype(jnp.bfloat16)


def mamba_forward(out_avg_pool, feat3_nhwc, params):
    b = feat3_nhwc.shape[0]
    bp = max(8, ((b + 7) // 8) * 8)              # pad batch to a full sublane tile
    s = window_means(feat3_nhwc)                                     # [B, 9*CF]
    s_pad = jnp.zeros((bp, K9), jnp.bfloat16).at[:b].set(s)
    xfc_pad = jnp.zeros((bp, CF), jnp.bfloat16).at[:b].set(
        out_avg_pool.astype(jnp.bfloat16))
    logits_p, pooled_p = mamba_head(s_pad, xfc_pad, params)
    return logits_p[:b], pooled_p[:b]


def init_params(key):
    k1, k2, k3, k4 = jax.random.split(key, 4)
    kc = 1.0 / np.sqrt(CF * 9)
    w_conv = jax.random.uniform(k1, (3, 3, CF, CF), jnp.float32, -kc, kc)
    b_conv = jax.random.uniform(k2, (1, CF), jnp.float32, -kc, kc)
    kf = 1.0 / np.sqrt(CF)
    w_fc = jax.random.uniform(k3, (CF, NUM_CLASSES), jnp.float32, -kf, kf)
    b_fc = jax.random.uniform(k4, (1, NUM_CLASSES), jnp.float32, -kf, kf)

    assert CF % TCO == 0
    n_tiles = CF // TCO
    # Conv weights: pre-cast to bf16 and pre-tile ONCE at init to
    # [Cout/TCO, 9*Cin, TCO] (tap-major K axis matching window_means();
    # each Cout tile is contiguous in HBM -> one big DMA per grid step).
    # TODO(synk): on v7x an fp8(e4m3)+per-channel-scale weight stream would
    # halve this further; on v5e/v6e the analogous lever is int8.
    w_conv_tiled = jnp.transpose(
        w_conv.reshape(9 * CF, n_tiles, TCO), (1, 0, 2)).astype(jnp.bfloat16)
    # fc: [Cin, 29] padded to 128 lane-dense output columns, bf16 weights.
    w_fc_pad = (jnp.zeros((CF, FC_NPAD), jnp.float32)
                .at[:, :NUM_CLASSES].set(w_fc).astype(jnp.bfloat16))
    b_fc_pad = jnp.zeros((1, FC_NPAD), jnp.float32).at[:, :NUM_CLASSES].set(b_fc)
    return dict(w_conv=w_conv, b_conv=b_conv, w_fc=w_fc, b_fc=b_fc,
                w_conv_tiled=w_conv_tiled, w_fc_pad=w_fc_pad, b_fc_pad=b_fc_pad)


if __name__ == "__main__":
    key = jax.random.PRNGKey(0)
    kp, ka, kf3 = jax.random.split(key, 3)

    params = init_params(kp)

    B = 2
    # Synthetic backbone outputs (see TODO(synk) at the top).
    out_avg_pool = jax.random.normal(ka, (B, CF), jnp.float32)        # [B, 1024]
    feat3_nchw = jax.random.normal(kf3, (B, CF, H, W), jnp.float32)   # PyTorch NCHW
    feat3_nhwc = jnp.transpose(feat3_nchw, (0, 2, 3, 1))              # kernel layout

    fwd = jax.jit(mamba_forward)
    logits, pooled = fwd(out_avg_pool, feat3_nhwc, params)
    jax.block_until_ready((logits, pooled))

    # --- reference checks ----------------------------------------------------
    # Conv+GAP reference in plain JAX using the SAME bf16-rounded conv operands
    # the kernel consumes (f32 accumulation on both sides).  This checks the
    # GAP-commutation reformulation AND the [Cout/TCO, 9*Cin, TCO] weight
    # re-layout against an independent conv implementation.
    feat_bf16 = feat3_nhwc.astype(jnp.bfloat16)
    wconv_bf16 = params["w_conv"].astype(jnp.bfloat16)
    conv_ref = jax.lax.conv_general_dilated(
        feat_bf16, wconv_bf16, window_strides=(1, 1), padding="SAME",
        dimension_numbers=("NHWC", "HWIO", "NHWC"),
        preferred_element_type=jnp.float32,
        precision=jax.lax.Precision.HIGHEST)
    pooled_ref = jnp.mean(conv_ref, axis=(1, 2)) + params["b_conv"]   # [B, CF]

    # fc reference with the same bf16-rounded operands (bias added in f32).
    xfc_q = out_avg_pool.astype(jnp.bfloat16).astype(jnp.float32)
    wfc_q = params["w_fc"].astype(jnp.bfloat16).astype(jnp.float32)
    logits_ref = xfc_q @ wfc_q + params["b_fc"]                       # [B, 29]

    np.testing.assert_allclose(np.asarray(pooled), np.asarray(pooled_ref),
                               rtol=2e-3, atol=2e-3)
    np.testing.assert_allclose(np.asarray(logits), np.asarray(logits_ref),
                               rtol=2e-3, atol=2e-3)

    print("KERNEL_OK")
</pallas_src>

<mosaic_0001>
module attributes {stable_mosaic.version = 11 : i64} {
  func.func @head_kernel(%arg0: i32, %arg1: memref<8x9216xbf16, #tpu.memory_space<vmem>>, %arg2: memref<1x9216x128xbf16, #tpu.memory_space<vmem>>, %arg3: memref<1x128xf32, #tpu.memory_space<vmem>>, %arg4: memref<8x1024xbf16, #tpu.memory_space<vmem>>, %arg5: memref<1024x128xbf16, #tpu.memory_space<vmem>>, %arg6: memref<1x128xf32, #tpu.memory_space<vmem>>, %arg7: memref<8x128xf32, #tpu.memory_space<vmem>>, %arg8: memref<1x8x128xf32, #tpu.memory_space<vmem>>) attributes {dimension_semantics = [#tpu.dimension_semantics<parallel>], iteration_bounds = array<i64: 8>, scalar_prefetch = 0 : i64, scratch_operands = 0 : i64, tpu.core_type = #tpu.core_type<tc>, window_params = [{pipeline_mode = #tpu.pipeline_mode<synchronous>, transform_indices = @transform_0, window_bounds = array<i64: 8, 9216>}, {transform_indices = @transform_1, window_bounds = array<i64: 1, 9216, 128>}, {transform_indices = @transform_2, window_bounds = array<i64: 1, 128>}, {pipeline_mode = #tpu.pipeline_mode<synchronous>, transform_indices = @transform_3, window_bounds = array<i64: 8, 1024>}, {pipeline_mode = #tpu.pipeline_mode<synchronous>, transform_indices = @transform_4, window_bounds = array<i64: 1024, 128>}, {pipeline_mode = #tpu.pipeline_mode<synchronous>, transform_indices = @transform_5, window_bounds = array<i64: 1, 128>}, {transform_indices = @transform_6, window_bounds = array<i64: 8, 128>}, {transform_indices = @transform_7, window_bounds = array<i64: 1, 8, 128>}]} {
    %c0 = arith.constant 0 : index
    %c0_0 = arith.constant 0 : index
    %0 = vector.load %arg1[%c0, %c0_0] : memref<8x9216xbf16, #tpu.memory_space<vmem>>, vector<8x9216xbf16>
    %c0_1 = arith.constant 0 : index
    %c0_2 = arith.constant 0 : index
    %c0_3 = arith.constant 0 : index
    %1 = vector.load %arg2[%c0_1, %c0_2, %c0_3] : memref<1x9216x128xbf16, #tpu.memory_space<vmem>>, vector<1x9216x128xbf16>
    %2 = vector.shape_cast %1 : vector<1x9216x128xbf16> to vector<9216x128xbf16>
    %cst = arith.constant dense<0.000000e+00> : vector<8x128xf32>
    %3 = tpu.matmul %0, %2, %cst {dimension_numbers = #tpu.dot_dimension_numbers<[1], [0], [0], [1], [0, 0, 1, 1], [], []>} : vector<8x9216xbf16>, vector<9216x128xbf16>, vector<8x128xf32> -> vector<8x128xf32>
    %c0_4 = arith.constant 0 : index
    %c0_5 = arith.constant 0 : index
    %4 = vector.load %arg3[%c0_4, %c0_5] : memref<1x128xf32, #tpu.memory_space<vmem>>, vector<1x128xf32>
    %5 = vector.broadcast %4 : vector<1x128xf32> to vector<8x128xf32>
    %6 = arith.addf %3, %5 : vector<8x128xf32>
    %c0_6 = arith.constant 0 : index
    %c0_7 = arith.constant 0 : index
    %7 = vector.load %arg7[%c0_6, %c0_7] : memref<8x128xf32, #tpu.memory_space<vmem>>, vector<8x128xf32>
    tpu.vector_store %arg7[%c0_6, %c0_7], %6 {strides = array<i32>} : memref<8x128xf32, #tpu.memory_space<vmem>>, vector<8x128xf32>,
    %c0_8 = arith.constant 0 : index
    %c0_9 = arith.constant 0 : index
    %8 = vector.load %arg4[%c0_8, %c0_9] : memref<8x1024xbf16, #tpu.memory_space<vmem>>, vector<8x1024xbf16>
    %c0_10 = arith.constant 0 : index
    %c0_11 = arith.constant 0 : index
    %9 = vector.load %arg5[%c0_10, %c0_11] : memref<1024x128xbf16, #tpu.memory_space<vmem>>, vector<1024x128xbf16>
    %cst_12 = arith.constant dense<0.000000e+00> : vector<8x128xf32>
    %10 = tpu.matmul %8, %9, %cst_12 {dimension_numbers = #tpu.dot_dimension_numbers<[1], [0], [0], [1], [0, 0, 1, 1], [], []>} : vector<8x1024xbf16>, vector<1024x128xbf16>, vector<8x128xf32> -> vector<8x128xf32>
    %c0_13 = arith.constant 0 : index
    %c0_14 = arith.constant 0 : index
    %11 = vector.load %arg6[%c0_13, %c0_14] : memref<1x128xf32, #tpu.memory_space<vmem>>, vector<1x128xf32>
    %12 = vector.broadcast %11 : vector<1x128xf32> to vector<8x128xf32>
    %13 = arith.addf %10, %12 : vector<8x128xf32>
    %c0_15 = arith.constant 0 : index
    %c0_16 = arith.constant 0 : index
    %c0_17 = arith.constant 0 : index
    %14 = vector.load %arg8[%c0_15, %c0_16, %c0_17] : memref<1x8x128xf32, #tpu.memory_space<vmem>>, vector<1x8x128xf32>
    %15 = vector.shape_cast %14 : vector<1x8x128xf32> to vector<8x128xf32>
    %16 = vector.shape_cast %13 : vector<8x128xf32> to vector<1x8x128xf32>
    tpu.vector_store %arg8[%c0_15, %c0_16, %c0_17], %16 {strides = array<i32>} : memref<1x8x128xf32, #tpu.memory_space<vmem>>, vector<1x8x128xf32>,
    return
  }
  func.func @transform_0(%arg0: i32) -> (i32, i32) {
    %c0_i32 = arith.constant 0 : i32
    %c0_i32_0 = arith.constant 0 : i32
    %c0_i32_1 = arith.constant 0 : i32
    return %c0_i32, %c0_i32_0 : i32, i32
  }
  func.func @transform_1(%arg0: i32) -> (i32, i32, i32) {
    %c0_i32 = arith.constant 0 : i32
    %c0_i32_0 = arith.constant 0 : i32
    %c0_i32_1 = arith.constant 0 : i32
    return %arg0, %c0_i32, %c0_i32_0 : i32, i32, i32
  }
  func.func @transform_2(%arg0: i32) -> (i32, i32) {
    %c0_i32 = arith.constant 0 : i32
    %c0_i32_0 = arith.constant 0 : i32
    return %c0_i32, %arg0 : i32, i32
  }
  func.func @transform_3(%arg0: i32) -> (i32, i32) {
    %c0_i32 = arith.constant 0 : i32
    %c0_i32_0 = arith.constant 0 : i32
    %c0_i32_1 = arith.constant 0 : i32
    return %c0_i32, %c0_i32_0 : i32, i32
  }
  func.func @transform_4(%arg0: i32) -> (i32, i32) {
    %c0_i32 = arith.constant 0 : i32
    %c0_i32_0 = arith.constant 0 : i32
    %c0_i32_1 = arith.constant 0 : i32
    return %c0_i32, %c0_i32_0 : i32, i32
  }
  func.func @transform_5(%arg0: i32) -> (i32, i32) {
    %c0_i32 = arith.constant 0 : i32
    %c0_i32_0 = arith.constant 0 : i32
    %c0_i32_1 = arith.constant 0 : i32
    return %c0_i32, %c0_i32_0 : i32, i32
  }
  func.func @transform_6(%arg0: i32) -> (i32, i32) {
    %c0_i32 = arith.constant 0 : i32
    %c0_i32_0 = arith.constant 0 : i32
    return %c0_i32, %arg0 : i32, i32
  }
  func.func @transform_7(%arg0: i32) -> (i32, i32, i32) {
    %c0_i32 = arith.constant 0 : i32
    %c0_i32_0 = arith.constant 0 : i32
    %c0_i32_1 = arith.constant 0 : i32
    return %arg0, %c0_i32, %c0_i32_0 : i32, i32, i32
  }
}

</mosaic_0001>

<llo_original>
// kernel: mamba_forward.1
$region0: #{mamba_forward.1}
  #allocation0 [shape = 'u32[]', space=smem, size = 0x4, offset = 0x4, fixed_abs, tag = 'smem constant byte address 0x4 - core index']
  #allocation1 [shape = 'u32[144,128]{1,0:T(1,128)}', space=vmem, size = 0x12000, scoped, tag = 'internal scratch']
  %s0 = inlined_call_operand.vmem [shape: bf16[8,9216], index: 0, kind: input, shape index: {}]
  %s1 = inlined_call_operand.hbm [shape: bf16[8,9216,128], index: 1, kind: input, shape index: {}]
  %s2 = inlined_call_operand.hbm [shape: f32[1,1024], index: 2, kind: input, shape index: {}]
  %s3 = inlined_call_operand.vmem [shape: bf16[8,1024], index: 3, kind: input, shape index: {}]
  %s4 = inlined_call_operand.hbm [shape: bf16[1024,128], index: 4, kind: input, shape index: {}]
  %s5 = inlined_call_operand.hbm [shape: f32[1,128], index: 5, kind: input, shape index: {}]
  %s6 = inlined_call_operand.vmem [shape: f32[8,1024], index: 6, kind: output, shape index: {0}]
  %s7 = inlined_call_operand.vmem [shape: f32[8,8,128], index: 7, kind: output, shape index: {1}]
  %8 = xla_tuple %s6, %s7
  %s9 = sld [smem:[#allocation0]]
  $region81: #{mamba_forward.1} parent=0
    _
  %s11 = ssub.s32 1, %s9
  %s12 = scalar_select 0, %s11, %s9
  $region1: #{mamba_forward.1} parent=0
    #allocation2 [shape = 'u8[4718592]{0}', space=vmem, size = 0x480000, scoped, tag = 'input window, operand 1']
    #allocation3 [shape = 's32[2]{0}', space=sflag, size = 0x8, scoped, tag = 'scoped memory for mamba_forward.1']
    #allocation4 [shape = 'u8[1024]{0}', space=vmem, size = 0x400, scoped, tag = 'input window, operand 2']
    #allocation5 [shape = 's32[2]{0}', space=sflag, size = 0x8, scoped, tag = 'scoped memory for mamba_forward.1']
    #allocation6 [shape = 'u8[262144]{0}', space=vmem, size = 0x40000, scoped, tag = 'input window, operand 4, single buffered']
    #allocation7 [shape = 'u8[512]{0}', space=vmem, size = 0x400, scoped, tag = 'input window, operand 5, single buffered']
    #allocation8 [shape = 's32[1]{0}', space=sflag, size = 0x4, scoped, tag = 'scoped memory for mamba_forward.1']
    %13 = vsyncpa [#allocation3], 0
    %s14 = scalar_lea.sflag [#allocation3], 1
    %15 = vsyncpa %s14, 0
    %16 = vsyncpa [#allocation5], 0
    %s17 = scalar_lea.sflag [#allocation5], 1
    %18 = vsyncpa %s17, 0
    %19 = vsyncpa [#allocation8], 0
    loop: start=0, step=1, limit=10
    $region2: #{mamba_forward.1} parent=1 // loop_pre_header
      _
    $region3: #{mamba_forward.1} parent=1 // loop_header
      %s21 = sphi 0, %s25
      %p22 = scmp.ge.s32.totalorder %s21, 10
      %s29 = sphi 0, %s29
      %s31 = sphi 0, %s29
      %s32 = sphi 0, %s31
      %s46 = sphi 0, %s32
      %s52 = sphi 0, %s54
      %s55 = sphi 0, %s52
      %s56 = sphi 0, %s55
      %s72 = sphi 0, %s56
      %s78 = sphi 0, %s80
      %s81 = sphi 0, %s78
      %s82 = sphi 0, %s81
      %s98 = sphi 0, %s82
      %s102 = sphi 0, %s102
      %s104 = sphi 0, %s102
      %s105 = sphi 0, %s104
      %s119 = sphi 0, %s105
      %s123 = sphi 0, %s123
      %s125 = sphi 0, %s123
      %s126 = sphi 0, %s125
      %s140 = sphi 0, %s126
      %s144 = sphi 0, %s144
      %s146 = sphi 0, %s144
      %s147 = sphi 0, %s146
      %s161 = sphi 0, %s147
      %s167 = sphi 0, %s169
      %s170 = sphi 0, %s167
      %s171 = sphi 0, %s170
      %s187 = sphi 0, %s171
      %s193 = sphi 0, %s195
      %s196 = sphi 0, %s193
      %s197 = sphi 0, %s196
      %s213 = sphi 0, %s197
    $region4: #{mamba_forward.1} parent=1 // loop_header_branch
      %24 = sbr.rel (%p22) target = $region8
    $region5: #{mamba_forward.1} parent=1 // loop_body
      %s26 = ssub.s32 %s21, 1
      %s27 = ssub.s32 %s21, 2
      %s28 = sadd.s32 %s21, 1
      %s30 = sadd.s32 %s29, 1
      %p33 = scmp.eq.s32.totalorder %s21, 7
      %p34 = scmp.ne.s32.totalorder %s29, %s31
      %p35 = scmp.eq.s32.totalorder %s21, 0
      %p36 = por %p34, %p35
      %p37 = scmp.ne.s32.totalorder %s29, %s31
      %p38 = scmp.eq.s32.totalorder %s26, 7
      %p39 = por %p37, %p38
      %p40 = scmp.ne.s32.totalorder %s31, %s32
      %p41 = scmp.eq.s32.totalorder %s26, 0
      %p42 = por %p40, %p41
      %p43 = scmp.ne.s32.totalorder %s31, %s32
      %p44 = scmp.eq.s32.totalorder %s27, 7
      %p45 = por %p43, %p44
      %p47 = scmp.ne.s32.totalorder %s32, %s46
      %p48 = scmp.eq.s32.totalorder %s27, 0
      %p49 = por %p47, %p48
      %s50 = ssub.s32 %s21, %s28
      %p51 = scmp.eq.s32.totalorder %s50, 0
      %s53 = sadd.s32 %s52, 1
      %s54 = scalar_select %p51, %s52, %s53
      %p57 = pneg %p51
      %p58 = scmp.eq.s32.totalorder %s21, 7
      %p59 = por %p57, %p58
      %p60 = scmp.ne.s32.totalorder %s52, %s55
      %p61 = scmp.eq.s32.totalorder %s21, 0
      %p62 = por %p60, %p61
      %p63 = scmp.ne.s32.totalorder %s52, %s55
      %p64 = scmp.eq.s32.totalorder %s26, 7
      %p65 = por %p63, %p64
      %p66 = scmp.ne.s32.totalorder %s55, %s56
      %p67 = scmp.eq.s32.totalorder %s26, 0
      %p68 = por %p66, %p67
      %p69 = scmp.ne.s32.totalorder %s55, %s56
      %p70 = scmp.eq.s32.totalorder %s27, 7
      %p71 = por %p69, %p70
      %p73 = scmp.ne.s32.totalorder %s56, %s72
      %p74 = scmp.eq.s32.totalorder %s27, 0
      %p75 = por %p73, %p74
      %s76 = ssub.s32 %s21, %s28
      %p77 = scmp.eq.s32.totalorder %s76, 0
      %s79 = sadd.s32 %s78, 1
      %s80 = scalar_select %p77, %s78, %s79
      %p83 = pneg %p77
      %p84 = scmp.eq.s32.totalorder %s21, 7
      %p85 = por %p83, %p84
      %p86 = scmp.ne.s32.totalorder %s78, %s81
      %p87 = scmp.eq.s32.totalorder %s21, 0
      %p88 = por %p86, %p87
      %p89 = scmp.ne.s32.totalorder %s78, %s81
      %p90 = scmp.eq.s32.totalorder %s26, 7
      %p91 = por %p89, %p90
      %p92 = scmp.ne.s32.totalorder %s81, %s82
      %p93 = scmp.eq.s32.totalorder %s26, 0
      %p94 = por %p92, %p93
      %p95 = scmp.ne.s32.totalorder %s81, %s82
      %p96 = scmp.eq.s32.totalorder %s27, 7
      %p97 = por %p95, %p96
      %p99 = scmp.ne.s32.totalorder %s82, %s98
      %p100 = scmp.eq.s32.totalorder %s27, 0
      %p101 = por %p99, %p100
      %s103 = sadd.s32 %s102, 1
      %p106 = scmp.eq.s32.totalorder %s21, 7
      %p107 = scmp.ne.s32.totalorder %s102, %s104
      %p108 = scmp.eq.s32.totalorder %s21, 0
      %p109 = por %p107, %p108
      %p110 = scmp.ne.s32.totalorder %s102, %s104
      %p111 = scmp.eq.s32.totalorder %s26, 7
      %p112 = por %p110, %p111
      %p113 = scmp.ne.s32.totalorder %s104, %s105
      %p114 = scmp.eq.s32.totalorder %s26, 0
      %p115 = por %p113, %p114
      %p116 = scmp.ne.s32.totalorder %s104, %s105
      %p117 = scmp.eq.s32.totalorder %s27, 7
      %p118 = por %p116, %p117
      %p120 = scmp.ne.s32.totalorder %s105, %s119
      %p121 = scmp.eq.s32.totalorder %s27, 0
      %p122 = por %p120, %p121
      %s124 = sadd.s32 %s123, 1
      %p127 = scmp.eq.s32.totalorder %s21, 7
      %p128 = scmp.ne.s32.totalorder %s123, %s125
      %p129 = scmp.eq.s32.totalorder %s21, 0
      %p130 = por %p128, %p129
      %p131 = scmp.ne.s32.totalorder %s123, %s125
      %p132 = scmp.eq.s32.totalorder %s26, 7
      %p133 = por %p131, %p132
      %p134 = scmp.ne.s32.totalorder %s125, %s126
      %p135 = scmp.eq.s32.totalorder %s26, 0
      %p136 = por %p134, %p135
      %p137 = scmp.ne.s32.totalorder %s125, %s126
      %p138 = scmp.eq.s32.totalorder %s27, 7
      %p139 = por %p137, %p138
      %p141 = scmp.ne.s32.totalorder %s126, %s140
      %p142 = scmp.eq.s32.totalorder %s27, 0
      %p143 = por %p141, %p142
      %s145 = sadd.s32 %s144, 1
      %p148 = scmp.eq.s32.totalorder %s21, 7
      %p149 = scmp.ne.s32.totalorder %s144, %s146
      %p150 = scmp.eq.s32.totalorder %s21, 0
      %p151 = por %p149, %p150
      %p152 = scmp.ne.s32.totalorder %s144, %s146
      %p153 = scmp.eq.s32.totalorder %s26, 7
      %p154 = por %p152, %p153
      %p155 = scmp.ne.s32.totalorder %s146, %s147
      %p156 = scmp.eq.s32.totalorder %s26, 0
      %p157 = por %p155, %p156
      %p158 = scmp.ne.s32.totalorder %s146, %s147
      %p159 = scmp.eq.s32.totalorder %s27, 7
      %p160 = por %p158, %p159
      %p162 = scmp.ne.s32.totalorder %s147, %s161
      %p163 = scmp.eq.s32.totalorder %s27, 0
      %p164 = por %p162, %p163
      %s165 = ssub.s32 %s21, %s28
      %p166 = scmp.eq.s32.totalorder %s165, 0
      %s168 = sadd.s32 %s167, 1
      %s169 = scalar_select %p166, %s167, %s168
      %p172 = pneg %p166
      %p173 = scmp.eq.s32.totalorder %s21, 7
      %p174 = por %p172, %p173
      %p175 = scmp.ne.s32.totalorder %s167, %s170
      %p176 = scmp.eq.s32.totalorder %s21, 0
      %p177 = por %p175, %p176
      %p178 = scmp.ne.s32.totalorder %s167, %s170
      %p179 = scmp.eq.s32.totalorder %s26, 7
      %p180 = por %p178, %p179
      %p181 = scmp.ne.s32.totalorder %s170, %s171
      %p182 = scmp.eq.s32.totalorder %s26, 0
      %p183 = por %p181, %p182
      %p184 = scmp.ne.s32.totalorder %s170, %s171
      %p185 = scmp.eq.s32.totalorder %s27, 7
      %p186 = por %p184, %p185
      %p188 = scmp.ne.s32.totalorder %s171, %s187
      %p189 = scmp.eq.s32.totalorder %s27, 0
      %p190 = por %p188, %p189
      %s191 = ssub.s32 %s21, %s28
      %p192 = scmp.eq.s32.totalorder %s191, 0
      %s194 = sadd.s32 %s193, 1
      %s195 = scalar_select %p192, %s193, %s194
      %p198 = pneg %p192
      %p199 = scmp.eq.s32.totalorder %s21, 7
      %p200 = por %p198, %p199
      %p201 = scmp.ne.s32.totalorder %s193, %s196
      %p202 = scmp.eq.s32.totalorder %s21, 0
      %p203 = por %p201, %p202
      %p204 = scmp.ne.s32.totalorder %s193, %s196
      %p205 = scmp.eq.s32.totalorder %s26, 7
      %p206 = por %p204, %p205
      %p207 = scmp.ne.s32.totalorder %s196, %s197
      %p208 = scmp.eq.s32.totalorder %s26, 0
      %p209 = por %p207, %p208
      %p210 = scmp.ne.s32.totalorder %s196, %s197
      %p211 = scmp.eq.s32.totalorder %s27, 7
      %p212 = por %p210, %p211
      %p214 = scmp.ne.s32.totalorder %s197, %s213
      %p215 = scmp.eq.s32.totalorder %s27, 0
      %p216 = por %p214, %p215
      %p217 = scmp.le.s32.totalorder 1, %s21
      %p218 = scmp.lt.s32.totalorder %s21, 9
      %p219 = pnand %p217, %p218
      %p220 = pneg %p219
      // Predicated region
      $region9: #{mamba_forward.1} parent=5 // pred_check
        _
      $region10: #{mamba_forward.1} parent=5 // pred_check_branch
        %222 = sbr.rel (%p219) target = $region12
      $region11: #{mamba_forward.1} parent=5 // pred_region
        %s223 = ssub.s32 %s21, 1
        // Predicated region
        $region13: #{mamba_forward.1} parent=11 // pred_check
          %p224 = pneg %p42
        $region14: #{mamba_forward.1} parent=11 // pred_check_branch
          %226 = sbr.rel (%p224) target = $region16
        $region15: #{mamba_forward.1} parent=11 // pred_region
          _
        $region16: #{mamba_forward.1} parent=11 // pred_fallthru
          _
        // Predicated region
        $region17: #{mamba_forward.1} parent=11 // pred_check
          %p227 = pneg %p115
        $region18: #{mamba_forward.1} parent=11 // pred_check_branch
          %229 = sbr.rel (%p227) target = $region20
        $region19: #{mamba_forward.1} parent=11 // pred_region
          _
        $region20: #{mamba_forward.1} parent=11 // pred_fallthru
          _
        // Predicated region
        $region21: #{mamba_forward.1} parent=11 // pred_check
          %p230 = pneg %p136
        $region22: #{mamba_forward.1} parent=11 // pred_check_branch
          %232 = sbr.rel (%p230) target = $region24
        $region23: #{mamba_forward.1} parent=11 // pred_region
          %s234 = ssub.s32 8192, 8192
          %235 = vsyncadd [#allocation5], %s234
          %s236 = sshll.u32 [#allocation6], 4
          %s237 = int_to_ptr.vmem [resolvable:$true] %s236
          %242 = dma.hbm_to_vmem [thread:$0]  %s4, 8192, %s237, [#allocation5], 64, 64, 4
        $region24: #{mamba_forward.1} parent=11 // pred_fallthru
          _
        // Predicated region
        $region25: #{mamba_forward.1} parent=11 // pred_check
          %p243 = pneg %p157
        $region26: #{mamba_forward.1} parent=11 // pred_check_branch
          %245 = sbr.rel (%p243) target = $region28
        $region27: #{mamba_forward.1} parent=11 // pred_region
          %s247 = ssub.s32 16, 16
          %248 = vsyncadd [#allocation8], %s247
          %s250 = sshll.u32 [#allocation7], 4
          %s251 = int_to_ptr.vmem [resolvable:$true] %s250
          %253 = dma.hbm_to_vmem [thread:$0]  %s5, 16, %s251, [#allocation8]
        $region28: #{mamba_forward.1} parent=11 // pred_fallthru
          _
      $region12: #{mamba_forward.1} parent=5 // pred_fallthru
        _
      %p254 = scmp.lt.s32.totalorder %s21, 8
      // Predicated region
      $region29: #{mamba_forward.1} parent=5 // pred_check
        %p255 = pneg %p254
      $region30: #{mamba_forward.1} parent=5 // pred_check_branch
        %257 = sbr.rel (%p255) target = $region32
      $region31: #{mamba_forward.1} parent=5 // pred_region
        // Predicated region
        $region33: #{mamba_forward.1} parent=31 // pred_check
          %p258 = pneg %p62
        $region34: #{mamba_forward.1} parent=31 // pred_check_branch
          %260 = sbr.rel (%p258) target = $region36
        $region35: #{mamba_forward.1} parent=31 // pred_region
          %s261 = sand.u32 %s52, 1
          %s262 = scalar_lea.sflag [#allocation3], %s261
          %s263 = sand.u32 %s52, 1
          %s264 = smul.addr %s263, 4608
          %s265 = scalar_lea.vmem [#allocation2], %s264
          %s267 = ssub.s32 73728, 73728
          %268 = vsyncadd %s262, %s267
          %s269 = smul.addr %s21, 1152
          %s270 = smul.addr %s269, 64
          %s271 = scalar_lea.hbm %s1, %s270
          %s272 = sshll.u32 %s265, 4
          %s273 = int_to_ptr.vmem [resolvable:$true] %s272
          %278 = dma.hbm_to_vmem [thread:$0]  %s271, 73728, %s273, %s262, 64, 64, 4
        $region36: #{mamba_forward.1} parent=31 // pred_fallthru
          _
        // Predicated region
        $region37: #{mamba_forward.1} parent=31 // pred_check
          %p279 = pneg %p88
        $region38: #{mamba_forward.1} parent=31 // pred_check_branch
          %281 = sbr.rel (%p279) target = $region40
        $region39: #{mamba_forward.1} parent=31 // pred_region
          %s282 = sand.u32 %s21, 1
          %s283 = scalar_lea.sflag [#allocation5], %s282
          %s284 = sand.u32 %s78, 1
          %s285 = scalar_lea.vmem [#allocation4], %s284
          %s287 = ssub.s32 16, 16
          %288 = vsyncadd %s283, %s287
          %s289 = smul.addr %s21, 16
          %s290 = scalar_lea.hbm %s2, %s289
          %s292 = sshll.u32 %s285, 4
          %s293 = int_to_ptr.vmem [resolvable:$true] %s292
          %295 = dma.hbm_to_vmem [thread:$0]  %s290, 16, %s293, %s283
        $region40: #{mamba_forward.1} parent=31 // pred_fallthru
          _
      $region32: #{mamba_forward.1} parent=5 // pred_fallthru
        _
      %p296 = scmp.le.s32.totalorder 1, %s21
      %p297 = scmp.lt.s32.totalorder %s21, 9
      %p298 = pnand %p296, %p297
      %p299 = pneg %p298
      // Predicated region
      $region41: #{mamba_forward.1} parent=5 // pred_check
        _
      $region42: #{mamba_forward.1} parent=5 // pred_check_branch
        %301 = sbr.rel (%p298) target = $region44
      $region43: #{mamba_forward.1} parent=5 // pred_region
        %s302 = ssub.s32 %s21, 1
        %s303 = sand.u32 %s55, 1
        %s304 = scalar_lea.sflag [#allocation3], %s303
        %s305 = sand.u32 %s55, 1
        %s306 = smul.addr %s305, 4608
        %s307 = scalar_lea.vmem [#allocation2], %s306
        // Predicated region
        $region45: #{mamba_forward.1} parent=43 // pred_check
          %p308 = pneg %p68
        $region46: #{mamba_forward.1} parent=43 // pred_check_branch
          %310 = sbr.rel (%p308) target = $region48
        $region47: #{mamba_forward.1} parent=43 // pred_region
          %311 = dma.done %s304, 73728
        $region48: #{mamba_forward.1} parent=43 // pred_fallthru
          _
        %s312 = sand.u32 %s26, 1
        %s313 = scalar_lea.sflag [#allocation5], %s312
        %s314 = sand.u32 %s81, 1
        %s315 = scalar_lea.vmem [#allocation4], %s314
        // Predicated region
        $region49: #{mamba_forward.1} parent=43 // pred_check
          %p316 = pneg %p94
        $region50: #{mamba_forward.1} parent=43 // pred_check_branch
          %318 = sbr.rel (%p316) target = $region52
        $region51: #{mamba_forward.1} parent=43 // pred_region
          %319 = dma.done %s313, 16
        $region52: #{mamba_forward.1} parent=43 // pred_fallthru
          _
        // Predicated region
        $region53: #{mamba_forward.1} parent=43 // pred_check
          %p320 = pneg %p136
        $region54: #{mamba_forward.1} parent=43 // pred_check_branch
          %322 = sbr.rel (%p320) target = $region56
        $region55: #{mamba_forward.1} parent=43 // pred_region
          %323 = dma.done [#allocation5], 8192
        $region56: #{mamba_forward.1} parent=43 // pred_fallthru
          _
        // Predicated region
        $region57: #{mamba_forward.1} parent=43 // pred_check
          %p324 = pneg %p157
        $region58: #{mamba_forward.1} parent=43 // pred_check_branch
          %326 = sbr.rel (%p324) target = $region60
        $region59: #{mamba_forward.1} parent=43 // pred_region
          %327 = dma.done [#allocation8], 16
        $region60: #{mamba_forward.1} parent=43 // pred_fallthru
          _
        %p328 = pneg %p42
        %p329 = pneg %p39
        %s330 = sand.u32 %s55, 1
        %s331 = scalar_lea.sflag [#allocation3], %s330
        %s332 = sand.u32 %s55, 1
        %s333 = smul.addr %s332, 4608
        %s334 = scalar_lea.vmem [#allocation2], %s333
        %p335 = pneg %p68
        %p336 = pneg %p65
        %s337 = sand.u32 %s26, 1
        %s338 = scalar_lea.sflag [#allocation5], %s337
        %s339 = sand.u32 %s81, 1
        %s340 = scalar_lea.vmem [#allocation4], %s339
        %p341 = pneg %p94
        %p342 = pneg %p91
        %p343 = pneg %p115
        %p344 = pneg %p112
        %p345 = pneg %p136
        %p346 = pneg %p133
        %p347 = pneg %p157
        %p348 = pneg %p154
        %p349 = pneg %p183
        %p350 = pneg %p180
        %p351 = scmp.lt.s32.totalorder %s26, 7
        %s352 = scalar_select %p351, %s26, 7
        %s353 = smul.addr %s352, 8
        %s354 = scalar_lea.vmem %s6, %s353
        %p355 = pneg %p209
        %p356 = pneg %p206
        %p357 = scmp.lt.s32.totalorder %s26, 7
        %s358 = scalar_select %p357, %s26, 7
        %s359 = smul.addr %s358, 8
        %s360 = scalar_lea.vmem %s7, %s359
        %p361 = scmp.lt.s32.totalorder %s26, 7
        %s362 = scalar_select %p361, %s26, 7
        %s363 = smul.addr %s362, 8
        %s364 = scalar_lea.vmem %s6, %s363
        %p365 = scmp.lt.s32.totalorder %s26, 7
        %s366 = scalar_select %p365, %s26, 7
        %s367 = smul.addr %s366, 8
        %s368 = scalar_lea.vmem %s7, %s367
        %v370 = vld [vmem:[%s0] sm:$0xff]
        %v371 = vld [vmem:[%s0 + $0x8] sm:$0xff]
        %v372 = vld [vmem:[%s0 + $0x10] sm:$0xff]
        %v373 = vld [vmem:[%s0 + $0x18] sm:$0xff]
        %v374 = vld [vmem:[%s0 + $0x20] sm:$0xff]
        %v375 = vld [vmem:[%s0 + $0x28] sm:$0xff]
        %v376 = vld [vmem:[%s0 + $0x30] sm:$0xff]
        %v377 = vld [vmem:[%s0 + $0x38] sm:$0xff]
        %v378 = vld [vmem:[%s0 + $0x40] sm:$0xff]
        %v379 = vld [vmem:[%s0 + $0x48] sm:$0xff]
        %v380 = vld [vmem:[%s0 + $0x50] sm:$0xff]
        %v381 = vld [vmem:[%s0 + $0x58] sm:$0xff]
        %v382 = vld [vmem:[%s0 + $0x60] sm:$0xff]
        %v383 = vld [vmem:[%s0 + $0x68] sm:$0xff]
        %v384 = vld [vmem:[%s0 + $0x70] sm:$0xff]
        %v385 = vld [vmem:[%s0 + $0x78] sm:$0xff]
        %v386 = vld [vmem:[%s0 + $0x80] sm:$0xff]
        %v387 = vld [vmem:[%s0 + $0x88] sm:$0xff]
        %v388 = vld [vmem:[%s0 + $0x90] sm:$0xff]
        %v389 = vld [vmem:[%s0 + $0x98] sm:$0xff]
        %v390 = vld [vmem:[%s0 + $0xa0] sm:$0xff]
        %v391 = vld [vmem:[%s0 + $0xa8] sm:$0xff]
        %v392 = vld [vmem:[%s0 + $0xb0] sm:$0xff]
        %v393 = vld [vmem:[%s0 + $0xb8] sm:$0xff]
        %v394 = vld [vmem:[%s0 + $0xc0] sm:$0xff]
        %v395 = vld [vmem:[%s0 + $0xc8] sm:$0xff]
        %v396 = vld [vmem:[%s0 + $0xd0] sm:$0xff]
        %v397 = vld [vmem:[%s0 + $0xd8] sm:$0xff]
        %v398 = vld [vmem:[%s0 + $0xe0] sm:$0xff]
        %v399 = vld [vmem:[%s0 + $0xe8] sm:$0xff]
        %v400 = vld [vmem:[%s0 + $0xf0] sm:$0xff]
        %v401 = vld [vmem:[%s0 + $0xf8] sm:$0xff]
        %v402 = vld [vmem:[%s0 + $0x100] sm:$0xff]
        %v403 = vld [vmem:[%s0 + $0x108] sm:$0xff]
        %v404 = vld [vmem:[%s0 + $0x110] sm:$0xff]
        %v405 = vld [vmem:[%s0 + $0x118] sm:$0xff]
        %v406 = vld [vmem:[%s307] sm:$0xf]
        %v407 = vld [vmem:[%s307 + $0x4] sm:$0xf]
        %v408 = vld [vmem:[%s307 + $0x8] sm:$0xf]
        %v409 = vld [vmem:[%s307 + $0xc] sm:$0xf]
        %v410 = vld [vmem:[%s307 + $0x10] sm:$0xf]
        %v411 = vld [vmem:[%s307 + $0x14] sm:$0xf]
        %v412 = vld [vmem:[%s307 + $0x18] sm:$0xf]
        %v413 = vld [vmem:[%s307 + $0x1c] sm:$0xf]
        %v414 = vld [vmem:[%s307 + $0x20] sm:$0xf]
        %v415 = vld [vmem:[%s307 + $0x24] sm:$0xf]
        %v416 = vld [vmem:[%s307 + $0x28] sm:$0xf]
        %v417 = vld [vmem:[%s307 + $0x2c] sm:$0xf]
        %v418 = vld [vmem:[%s307 + $0x30] sm:$0xf]
        %v419 = vld [vmem:[%s307 + $0x34] sm:$0xf]
        %v420 = vld [vmem:[%s307 + $0x38] sm:$0xf]
        %v421 = vld [vmem:[%s307 + $0x3c] sm:$0xf]
        %v422 = vld [vmem:[%s307 + $0x40] sm:$0xf]
        %v423 = vld [vmem:[%s307 + $0x44] sm:$0xf]
        %v424 = vld [vmem:[%s307 + $0x48] sm:$0xf]
        %v425 = vld [vmem:[%s307 + $0x4c] sm:$0xf]
        %v426 = vld [vmem:[%s307 + $0x50] sm:$0xf]
        %v427 = vld [vmem:[%s307 + $0x54] sm:$0xf]
        %v428 = vld [vmem:[%s307 + $0x58] sm:$0xf]
        %v429 = vld [vmem:[%s307 + $0x5c] sm:$0xf]
        %v430 = vld [vmem:[%s307 + $0x60] sm:$0xf]
        %v431 = vld [vmem:[%s307 + $0x64] sm:$0xf]
        %v432 = vld [vmem:[%s307 + $0x68] sm:$0xf]
        %v433 = vld [vmem:[%s307 + $0x6c] sm:$0xf]
        %v434 = vld [vmem:[%s307 + $0x70] sm:$0xf]
        %v435 = vld [vmem:[%s307 + $0x74] sm:$0xf]
        %v436 = vld [vmem:[%s307 + $0x78] sm:$0xf]
        %v437 = vld [vmem:[%s307 + $0x7c] sm:$0xf]
        %v438 = vld [vmem:[%s307 + $0x80] sm:$0xf]
        %v439 = vld [vmem:[%s307 + $0x84] sm:$0xf]
        %v440 = vld [vmem:[%s307 + $0x88] sm:$0xf]
        %v441 = vld [vmem:[%s307 + $0x8c] sm:$0xf]
        %v442 = vld [vmem:[%s307 + $0x90] sm:$0xf]
        %v443 = vld [vmem:[%s307 + $0x94] sm:$0xf]
        %v444 = vld [vmem:[%s307 + $0x98] sm:$0xf]
        %v445 = vld [vmem:[%s307 + $0x9c] sm:$0xf]
        %v446 = vld [vmem:[%s307 + $0xa0] sm:$0xf]
        %v447 = vld [vmem:[%s307 + $0xa4] sm:$0xf]
        %v448 = vld [vmem:[%s307 + $0xa8] sm:$0xf]
        %v449 = vld [vmem:[%s307 + $0xac] sm:$0xf]
        %v450 = vld [vmem:[%s307 + $0xb0] sm:$0xf]
        %v451 = vld [vmem:[%s307 + $0xb4] sm:$0xf]
        %v452 = vld [vmem:[%s307 + $0xb8] sm:$0xf]
        %v453 = vld [vmem:[%s307 + $0xbc] sm:$0xf]
        %v454 = vld [vmem:[%s307 + $0xc0] sm:$0xf]
        %v455 = vld [vmem:[%s307 + $0xc4] sm:$0xf]
        %v456 = vld [vmem:[%s307 + $0xc8] sm:$0xf]
        %v457 = vld [vmem:[%s307 + $0xcc] sm:$0xf]
        %v458 = vld [vmem:[%s307 + $0xd0] sm:$0xf]
        %v459 = vld [vmem:[%s307 + $0xd4] sm:$0xf]
        %v460 = vld [vmem:[%s307 + $0xd8] sm:$0xf]
        %v461 = vld [vmem:[%s307 + $0xdc] sm:$0xf]
        %v462 = vld [vmem:[%s307 + $0xe0] sm:$0xf]
        %v463 = vld [vmem:[%s307 + $0xe4] sm:$0xf]
        %v464 = vld [vmem:[%s307 + $0xe8] sm:$0xf]
        %v465 = vld [vmem:[%s307 + $0xec] sm:$0xf]
        %v466 = vld [vmem:[%s307 + $0xf0] sm:$0xf]
        %v467 = vld [vmem:[%s307 + $0xf4] sm:$0xf]
        %v468 = vld [vmem:[%s307 + $0xf8] sm:$0xf]
        %v469 = vld [vmem:[%s307 + $0xfc] sm:$0xf]
        %v470 = vld [vmem:[%s307 + $0x100] sm:$0xf]
        %v471 = vld [vmem:[%s307 + $0x104] sm:$0xf]
        %v472 = vld [vmem:[%s307 + $0x108] sm:$0xf]
        %v473 = vld [vmem:[%s307 + $0x10c] sm:$0xf]
        %v474 = vld [vmem:[%s307 + $0x110] sm:$0xf]
        %v475 = vld [vmem:[%s307 + $0x114] sm:$0xf]
        %v476 = vld [vmem:[%s307 + $0x118] sm:$0xf]
        %v477 = vld [vmem:[%s307 + $0x11c] sm:$0xf]
        %v478 = vld [vmem:[%s307 + $0x120] sm:$0xf]
        %v479 = vld [vmem:[%s307 + $0x124] sm:$0xf]
        %v480 = vld [vmem:[%s307 + $0x128] sm:$0xf]
        %v481 = vld [vmem:[%s307 + $0x12c] sm:$0xf]
        %v482 = vld [vmem:[%s307 + $0x130] sm:$0xf]
        %v483 = vld [vmem:[%s307 + $0x134] sm:$0xf]
        %v484 = vld [vmem:[%s307 + $0x138] sm:$0xf]
        %v485 = vld [vmem:[%s307 + $0x13c] sm:$0xf]
        %v486 = vld [vmem:[%s307 + $0x140] sm:$0xf]
        %v487 = vld [vmem:[%s307 + $0x144] sm:$0xf]
        %v488 = vld [vmem:[%s307 + $0x148] sm:$0xf]
        %v489 = vld [vmem:[%s307 + $0x14c] sm:$0xf]
        %v490 = vld [vmem:[%s307 + $0x150] sm:$0xf]
        %v491 = vld [vmem:[%s307 + $0x154] sm:$0xf]
        %v492 = vld [vmem:[%s307 + $0x158] sm:$0xf]
        %v493 = vld [vmem:[%s307 + $0x15c] sm:$0xf]
        %v494 = vld [vmem:[%s307 + $0x160] sm:$0xf]
        %v495 = vld [vmem:[%s307 + $0x164] sm:$0xf]
        %v496 = vld [vmem:[%s307 + $0x168] sm:$0xf]
        %v497 = vld [vmem:[%s307 + $0x16c] sm:$0xf]
        %v498 = vld [vmem:[%s307 + $0x170] sm:$0xf]
        %v499 = vld [vmem:[%s307 + $0x174] sm:$0xf]
        %v500 = vld [vmem:[%s307 + $0x178] sm:$0xf]
        %v501 = vld [vmem:[%s307 + $0x17c] sm:$0xf]
        %v502 = vld [vmem:[%s307 + $0x180] sm:$0xf]
        %v503 = vld [vmem:[%s307 + $0x184] sm:$0xf]
        %v504 = vld [vmem:[%s307 + $0x188] sm:$0xf]
        %v505 = vld [vmem:[%s307 + $0x18c] sm:$0xf]
        %v506 = vld [vmem:[%s307 + $0x190] sm:$0xf]
        %v507 = vld [vmem:[%s307 + $0x194] sm:$0xf]
        %v508 = vld [vmem:[%s307 + $0x198] sm:$0xf]
        %v509 = vld [vmem:[%s307 + $0x19c] sm:$0xf]
        %v510 = vld [vmem:[%s307 + $0x1a0] sm:$0xf]
        %v511 = vld [vmem:[%s307 + $0x1a4] sm:$0xf]
        %v512 = vld [vmem:[%s307 + $0x1a8] sm:$0xf]
        %v513 = vld [vmem:[%s307 + $0x1ac] sm:$0xf]
        %v514 = vld [vmem:[%s307 + $0x1b0] sm:$0xf]
        %v515 = vld [vmem:[%s307 + $0x1b4] sm:$0xf]
        %v516 = vld [vmem:[%s307 + $0x1b8] sm:$0xf]
        %v517 = vld [vmem:[%s307 + $0x1bc] sm:$0xf]
        %v518 = vld [vmem:[%s307 + $0x1c0] sm:$0xf]
        %v519 = vld [vmem:[%s307 + $0x1c4] sm:$0xf]
        %v520 = vld [vmem:[%s307 + $0x1c8] sm:$0xf]
        %v521 = vld [vmem:[%s307 + $0x1cc] sm:$0xf]
        %v522 = vld [vmem:[%s307 + $0x1d0] sm:$0xf]
        %v523 = vld [vmem:[%s307 + $0x1d4] sm:$0xf]
        %v524 = vld [vmem:[%s307 + $0x1d8] sm:$0xf]
        %v525 = vld [vmem:[%s307 + $0x1dc] sm:$0xf]
        %v526 = vld [vmem:[%s307 + $0x1e0] sm:$0xf]
        %v527 = vld [vmem:[%s307 + $0x1e4] sm:$0xf]
        %v528 = vld [vmem:[%s307 + $0x1e8] sm:$0xf]
        %v529 = vld [vmem:[%s307 + $0x1ec] sm:$0xf]
        %v530 = vld [vmem:[%s307 + $0x1f0] sm:$0xf]
        %v531 = vld [vmem:[%s307 + $0x1f4] sm:$0xf]
        %v532 = vld [vmem:[%s307 + $0x1f8] sm:$0xf]
        %v533 = vld [vmem:[%s307 + $0x1fc] sm:$0xf]
        %v534 = vld [vmem:[%s307 + $0x200] sm:$0xf]
        %v535 = vld [vmem:[%s307 + $0x204] sm:$0xf]
        %v536 = vld [vmem:[%s307 + $0x208] sm:$0xf]
        %v537 = vld [vmem:[%s307 + $0x20c] sm:$0xf]
        %v538 = vld [vmem:[%s307 + $0x210] sm:$0xf]
        %v539 = vld [vmem:[%s307 + $0x214] sm:$0xf]
        %v540 = vld [vmem:[%s307 + $0x218] sm:$0xf]
        %v541 = vld [vmem:[%s307 + $0x21c] sm:$0xf]
        %v542 = vld [vmem:[%s307 + $0x220] sm:$0xf]
        %v543 = vld [vmem:[%s307 + $0x224] sm:$0xf]
        %v544 = vld [vmem:[%s307 + $0x228] sm:$0xf]
        %v545 = vld [vmem:[%s307 + $0x22c] sm:$0xf]
        %v546 = vld [vmem:[%s307 + $0x230] sm:$0xf]
        %v547 = vld [vmem:[%s307 + $0x234] sm:$0xf]
        %v548 = vld [vmem:[%s307 + $0x238] sm:$0xf]
        %v549 = vld [vmem:[%s307 + $0x23c] sm:$0xf]
        %v550 = vld [vmem:[%s307 + $0x240] sm:$0xf]
        %v551 = vld [vmem:[%s307 + $0x244] sm:$0xf]
        %v552 = vld [vmem:[%s307 + $0x248] sm:$0xf]
        %v553 = vld [vmem:[%s307 + $0x24c] sm:$0xf]
        %v554 = vld [vmem:[%s307 + $0x250] sm:$0xf]
        %v555 = vld [vmem:[%s307 + $0x254] sm:$0xf]
        %v556 = vld [vmem:[%s307 + $0x258] sm:$0xf]
        %v557 = vld [vmem:[%s307 + $0x25c] sm:$0xf]
        %v558 = vld [vmem:[%s307 + $0x260] sm:$0xf]
        %v559 = vld [vmem:[%s307 + $0x264] sm:$0xf]
        %v560 = vld [vmem:[%s307 + $0x268] sm:$0xf]
        %v561 = vld [vmem:[%s307 + $0x26c] sm:$0xf]
        %v562 = vld [vmem:[%s307 + $0x270] sm:$0xf]
        %v563 = vld [vmem:[%s307 + $0x274] sm:$0xf]
        %v564 = vld [vmem:[%s307 + $0x278] sm:$0xf]
        %v565 = vld [vmem:[%s307 + $0x27c] sm:$0xf]
        %v566 = vld [vmem:[%s307 + $0x280] sm:$0xf]
        %v567 = vld [vmem:[%s307 + $0x284] sm:$0xf]
        %v568 = vld [vmem:[%s307 + $0x288] sm:$0xf]
        %v569 = vld [vmem:[%s307 + $0x28c] sm:$0xf]
        %v570 = vld [vmem:[%s307 + $0x290] sm:$0xf]
        %v571 = vld [vmem:[%s307 + $0x294] sm:$0xf]
        %v572 = vld [vmem:[%s307 + $0x298] sm:$0xf]
        %v573 = vld [vmem:[%s307 + $0x29c] sm:$0xf]
        %v574 = vld [vmem:[%s307 + $0x2a0] sm:$0xf]
        %v575 = vld [vmem:[%s307 + $0x2a4] sm:$0xf]
        %v576 = vld [vmem:[%s307 + $0x2a8] sm:$0xf]
        %v577 = vld [vmem:[%s307 + $0x2ac] sm:$0xf]
        %v578 = vld [vmem:[%s307 + $0x2b0] sm:$0xf]
        %v579 = vld [vmem:[%s307 + $0x2b4] sm:$0xf]
        %v580 = vld [vmem:[%s307 + $0x2b8] sm:$0xf]
        %v581 = vld [vmem:[%s307 + $0x2bc] sm:$0xf]
        %v582 = vld [vmem:[%s307 + $0x2c0] sm:$0xf]
        %v583 = vld [vmem:[%s307 + $0x2c4] sm:$0xf]
        %v584 = vld [vmem:[%s307 + $0x2c8] sm:$0xf]
        %v585 = vld [vmem:[%s307 + $0x2cc] sm:$0xf]
        %v586 = vld [vmem:[%s307 + $0x2d0] sm:$0xf]
        %v587 = vld [vmem:[%s307 + $0x2d4] sm:$0xf]
        %v588 = vld [vmem:[%s307 + $0x2d8] sm:$0xf]
        %v589 = vld [vmem:[%s307 + $0x2dc] sm:$0xf]
        %v590 = vld [vmem:[%s307 + $0x2e0] sm:$0xf]
        %v591 = vld [vmem:[%s307 + $0x2e4] sm:$0xf]
        %v592 = vld [vmem:[%s307 + $0x2e8] sm:$0xf]
        %v593 = vld [vmem:[%s307 + $0x2ec] sm:$0xf]
        %v594 = vld [vmem:[%s307 + $0x2f0] sm:$0xf]
        %v595 = vld [vmem:[%s307 + $0x2f4] sm:$0xf]
        %v596 = vld [vmem:[%s307 + $0x2f8] sm:$0xf]
        %v597 = vld [vmem:[%s307 + $0x2fc] sm:$0xf]
        %v598 = vld [vmem:[%s307 + $0x300] sm:$0xf]
        %v599 = vld [vmem:[%s307 + $0x304] sm:$0xf]
        %v600 = vld [vmem:[%s307 + $0x308] sm:$0xf]
        %v601 = vld [vmem:[%s307 + $0x30c] sm:$0xf]
        %v602 = vld [vmem:[%s307 + $0x310] sm:$0xf]
        %v603 = vld [vmem:[%s307 + $0x314] sm:$0xf]
        %v604 = vld [vmem:[%s307 + $0x318] sm:$0xf]
        %v605 = vld [vmem:[%s307 + $0x31c] sm:$0xf]
        %v606 = vld [vmem:[%s307 + $0x320] sm:$0xf]
        %v607 = vld [vmem:[%s307 + $0x324] sm:$0xf]
        %v608 = vld [vmem:[%s307 + $0x328] sm:$0xf]
        %v609 = vld [vmem:[%s307 + $0x32c] sm:$0xf]
        %v610 = vld [vmem:[%s307 + $0x330] sm:$0xf]
        %v611 = vld [vmem:[%s307 + $0x334] sm:$0xf]
        %v612 = vld [vmem:[%s307 + $0x338] sm:$0xf]
        %v613 = vld [vmem:[%s307 + $0x33c] sm:$0xf]
        %v614 = vld [vmem:[%s307 + $0x340] sm:$0xf]
        %v615 = vld [vmem:[%s307 + $0x344] sm:$0xf]
        %v616 = vld [vmem:[%s307 + $0x348] sm:$0xf]
        %v617 = vld [vmem:[%s307 + $0x34c] sm:$0xf]
        %v618 = vld [vmem:[%s307 + $0x350] sm:$0xf]
        %v619 = vld [vmem:[%s307 + $0x354] sm:$0xf]
        %v620 = vld [vmem:[%s307 + $0x358] sm:$0xf]
        %v621 = vld [vmem:[%s307 + $0x35c] sm:$0xf]
        %v622 = vld [vmem:[%s307 + $0x360] sm:$0xf]
        %v623 = vld [vmem:[%s307 + $0x364] sm:$0xf]
        %v624 = vld [vmem:[%s307 + $0x368] sm:$0xf]
        %v625 = vld [vmem:[%s307 + $0x36c] sm:$0xf]
        %v626 = vld [vmem:[%s307 + $0x370] sm:$0xf]
        %v627 = vld [vmem:[%s307 + $0x374] sm:$0xf]
        %v628 = vld [vmem:[%s307 + $0x378] sm:$0xf]
        %v629 = vld [vmem:[%s307 + $0x37c] sm:$0xf]
        %v630 = vld [vmem:[%s307 + $0x380] sm:$0xf]
        %v631 = vld [vmem:[%s307 + $0x384] sm:$0xf]
        %v632 = vld [vmem:[%s307 + $0x388] sm:$0xf]
        %v633 = vld [vmem:[%s307 + $0x38c] sm:$0xf]
        %v634 = vld [vmem:[%s307 + $0x390] sm:$0xf]
        %v635 = vld [vmem:[%s307 + $0x394] sm:$0xf]
        %v636 = vld [vmem:[%s307 + $0x398] sm:$0xf]
        %v637 = vld [vmem:[%s307 + $0x39c] sm:$0xf]
        %v638 = vld [vmem:[%s307 + $0x3a0] sm:$0xf]
        %v639 = vld [vmem:[%s307 + $0x3a4] sm:$0xf]
        %v640 = vld [vmem:[%s307 + $0x3a8] sm:$0xf]
        %v641 = vld [vmem:[%s307 + $0x3ac] sm:$0xf]
        %v642 = vld [vmem:[%s307 + $0x3b0] sm:$0xf]
        %v643 = vld [vmem:[%s307 + $0x3b4] sm:$0xf]
        %v644 = vld [vmem:[%s307 + $0x3b8] sm:$0xf]
        %v645 = vld [vmem:[%s307 + $0x3bc] sm:$0xf]
        %v646 = vld [vmem:[%s307 + $0x3c0] sm:$0xf]
        %v647 = vld [vmem:[%s307 + $0x3c4] sm:$0xf]
        %v648 = vld [vmem:[%s307 + $0x3c8] sm:$0xf]
        %v649 = vld [vmem:[%s307 + $0x3cc] sm:$0xf]
        %v650 = vld [vmem:[%s307 + $0x3d0] sm:$0xf]
        %v651 = vld [vmem:[%s307 + $0x3d4] sm:$0xf]
        %v652 = vld [vmem:[%s307 + $0x3d8] sm:$0xf]
        %v653 = vld [vmem:[%s307 + $0x3dc] sm:$0xf]
        %v654 = vld [vmem:[%s307 + $0x3e0] sm:$0xf]
        %v655 = vld [vmem:[%s307 + $0x3e4] sm:$0xf]
        %v656 = vld [vmem:[%s307 + $0x3e8] sm:$0xf]
        %v657 = vld [vmem:[%s307 + $0x3ec] sm:$0xf]
        %v658 = vld [vmem:[%s307 + $0x3f0] sm:$0xf]
        %v659 = vld [vmem:[%s307 + $0x3f4] sm:$0xf]
        %v660 = vld [vmem:[%s307 + $0x3f8] sm:$0xf]
        %v661 = vld [vmem:[%s307 + $0x3fc] sm:$0xf]
        %v662 = vld [vmem:[%s307 + $0x400] sm:$0xf]
        %v663 = vld [vmem:[%s307 + $0x404] sm:$0xf]
        %v664 = vld [vmem:[%s307 + $0x408] sm:$0xf]
        %v665 = vld [vmem:[%s307 + $0x40c] sm:$0xf]
        %v666 = vld [vmem:[%s307 + $0x410] sm:$0xf]
        %v667 = vld [vmem:[%s307 + $0x414] sm:$0xf]
        %v668 = vld [vmem:[%s307 + $0x418] sm:$0xf]
        %v669 = vld [vmem:[%s307 + $0x41c] sm:$0xf]
        %v670 = vld [vmem:[%s307 + $0x420] sm:$0xf]
        %v671 = vld [vmem:[%s307 + $0x424] sm:$0xf]
        %v672 = vld [vmem:[%s307 + $0x428] sm:$0xf]
        %v673 = vld [vmem:[%s307 + $0x42c] sm:$0xf]
        %v674 = vld [vmem:[%s307 + $0x430] sm:$0xf]
        %v675 = vld [vmem:[%s307 + $0x434] sm:$0xf]
        %v676 = vld [vmem:[%s307 + $0x438] sm:$0xf]
        %v677 = vld [vmem:[%s307 + $0x43c] sm:$0xf]
        %v678 = vld [vmem:[%s307 + $0x440] sm:$0xf]
        %v679 = vld [vmem:[%s307 + $0x444] sm:$0xf]
        %v680 = vld [vmem:[%s307 + $0x448] sm:$0xf]
        %v681 = vld [vmem:[%s307 + $0x44c] sm:$0xf]
        %v682 = vld [vmem:[%s307 + $0x450] sm:$0xf]
        %v683 = vld [vmem:[%s307 + $0x454] sm:$0xf]
        %v684 = vld [vmem:[%s307 + $0x458] sm:$0xf]
        %v685 = vld [vmem:[%s307 + $0x45c] sm:$0xf]
        %v686 = vld [vmem:[%s307 + $0x460] sm:$0xf]
        %v687 = vld [vmem:[%s307 + $0x464] sm:$0xf]
        %v688 = vld [vmem:[%s307 + $0x468] sm:$0xf]
        %v689 = vld [vmem:[%s307 + $0x46c] sm:$0xf]
        %v690 = vld [vmem:[%s307 + $0x470] sm:$0xf]
        %v691 = vld [vmem:[%s307 + $0x474] sm:$0xf]
        %v692 = vld [vmem:[%s307 + $0x478] sm:$0xf]
        %v693 = vld [vmem:[%s307 + $0x47c] sm:$0xf]
        %v694 = vld [vmem:[%s307 + $0x480] sm:$0xf]
        %v695 = vld [vmem:[%s307 + $0x484] sm:$0xf]
        %v696 = vld [vmem:[%s307 + $0x488] sm:$0xf]
        %v697 = vld [vmem:[%s307 + $0x48c] sm:$0xf]
        %v698 = vld [vmem:[%s307 + $0x490] sm:$0xf]
        %v699 = vld [vmem:[%s307 + $0x494] sm:$0xf]
        %v700 = vld [vmem:[%s307 + $0x498] sm:$0xf]
        %v701 = vld [vmem:[%s307 + $0x49c] sm:$0xf]
        %v702 = vld [vmem:[%s307 + $0x4a0] sm:$0xf]
        %v703 = vld [vmem:[%s307 + $0x4a4] sm:$0xf]
        %v704 = vld [vmem:[%s307 + $0x4a8] sm:$0xf]
        %v705 = vld [vmem:[%s307 + $0x4ac] sm:$0xf]
        %v706 = vld [vmem:[%s307 + $0x4b0] sm:$0xf]
        %v707 = vld [vmem:[%s307 + $0x4b4] sm:$0xf]
        %v708 = vld [vmem:[%s307 + $0x4b8] sm:$0xf]
        %v709 = vld [vmem:[%s307 + $0x4bc] sm:$0xf]
        %v710 = vld [vmem:[%s307 + $0x4c0] sm:$0xf]
        %v711 = vld [vmem:[%s307 + $0x4c4] sm:$0xf]
        %v712 = vld [vmem:[%s307 + $0x4c8] sm:$0xf]
        %v713 = vld [vmem:[%s307 + $0x4cc] sm:$0xf]
        %v714 = vld [vmem:[%s307 + $0x4d0] sm:$0xf]
        %v715 = vld [vmem:[%s307 + $0x4d4] sm:$0xf]
        %v716 = vld [vmem:[%s307 + $0x4d8] sm:$0xf]
        %v717 = vld [vmem:[%s307 + $0x4dc] sm:$0xf]
        %v718 = vld [vmem:[%s307 + $0x4e0] sm:$0xf]
        %v719 = vld [vmem:[%s307 + $0x4e4] sm:$0xf]
        %v720 = vld [vmem:[%s307 + $0x4e8] sm:$0xf]
        %v721 = vld [vmem:[%s307 + $0x4ec] sm:$0xf]
        %v722 = vld [vmem:[%s307 + $0x4f0] sm:$0xf]
        %v723 = vld [vmem:[%s307 + $0x4f4] sm:$0xf]
        %v724 = vld [vmem:[%s307 + $0x4f8] sm:$0xf]
        %v725 = vld [vmem:[%s307 + $0x4fc] sm:$0xf]
        %v726 = vld [vmem:[%s307 + $0x500] sm:$0xf]
        %v727 = vld [vmem:[%s307 + $0x504] sm:$0xf]
        %v728 = vld [vmem:[%s307 + $0x508] sm:$0xf]
        %v729 = vld [vmem:[%s307 + $0x50c] sm:$0xf]
        %v730 = vld [vmem:[%s307 + $0x510] sm:$0xf]
        %v731 = vld [vmem:[%s307 + $0x514] sm:$0xf]
        %v732 = vld [vmem:[%s307 + $0x518] sm:$0xf]
        %v733 = vld [vmem:[%s307 + $0x51c] sm:$0xf]
        %v734 = vld [vmem:[%s307 + $0x520] sm:$0xf]
        %v735 = vld [vmem:[%s307 + $0x524] sm:$0xf]
        %v736 = vld [vmem:[%s307 + $0x528] sm:$0xf]
        %v737 = vld [vmem:[%s307 + $0x52c] sm:$0xf]
        %v738 = vld [vmem:[%s307 + $0x530] sm:$0xf]
        %v739 = vld [vmem:[%s307 + $0x534] sm:$0xf]
        %v740 = vld [vmem:[%s307 + $0x538] sm:$0xf]
        %v741 = vld [vmem:[%s307 + $0x53c] sm:$0xf]
        %v742 = vld [vmem:[%s307 + $0x540] sm:$0xf]
        %v743 = vld [vmem:[%s307 + $0x544] sm:$0xf]
        %v744 = vld [vmem:[%s307 + $0x548] sm:$0xf]
        %v745 = vld [vmem:[%s307 + $0x54c] sm:$0xf]
        %v746 = vld [vmem:[%s307 + $0x550] sm:$0xf]
        %v747 = vld [vmem:[%s307 + $0x554] sm:$0xf]
        %v748 = vld [vmem:[%s307 + $0x558] sm:$0xf]
        %v749 = vld [vmem:[%s307 + $0x55c] sm:$0xf]
        %v750 = vld [vmem:[%s307 + $0x560] sm:$0xf]
        %v751 = vld [vmem:[%s307 + $0x564] sm:$0xf]
        %v752 = vld [vmem:[%s307 + $0x568] sm:$0xf]
        %v753 = vld [vmem:[%s307 + $0x56c] sm:$0xf]
        %v754 = vld [vmem:[%s307 + $0x570] sm:$0xf]
        %v755 = vld [vmem:[%s307 + $0x574] sm:$0xf]
        %v756 = vld [vmem:[%s307 + $0x578] sm:$0xf]
        %v757 = vld [vmem:[%s307 + $0x57c] sm:$0xf]
        %v758 = vld [vmem:[%s307 + $0x580] sm:$0xf]
        %v759 = vld [vmem:[%s307 + $0x584] sm:$0xf]
        %v760 = vld [vmem:[%s307 + $0x588] sm:$0xf]
        %v761 = vld [vmem:[%s307 + $0x58c] sm:$0xf]
        %v762 = vld [vmem:[%s307 + $0x590] sm:$0xf]
        %v763 = vld [vmem:[%s307 + $0x594] sm:$0xf]
        %v764 = vld [vmem:[%s307 + $0x598] sm:$0xf]
        %v765 = vld [vmem:[%s307 + $0x59c] sm:$0xf]
        %v766 = vld [vmem:[%s307 + $0x5a0] sm:$0xf]
        %v767 = vld [vmem:[%s307 + $0x5a4] sm:$0xf]
        %v768 = vld [vmem:[%s307 + $0x5a8] sm:$0xf]
        %v769 = vld [vmem:[%s307 + $0x5ac] sm:$0xf]
        %v770 = vld [vmem:[%s307 + $0x5b0] sm:$0xf]
        %v771 = vld [vmem:[%s307 + $0x5b4] sm:$0xf]
        %v772 = vld [vmem:[%s307 + $0x5b8] sm:$0xf]
        %v773 = vld [vmem:[%s307 + $0x5bc] sm:$0xf]
        %v774 = vld [vmem:[%s307 + $0x5c0] sm:$0xf]
        %v775 = vld [vmem:[%s307 + $0x5c4] sm:$0xf]
        %v776 = vld [vmem:[%s307 + $0x5c8] sm:$0xf]
        %v777 = vld [vmem:[%s307 + $0x5cc] sm:$0xf]
        %v778 = vld [vmem:[%s307 + $0x5d0] sm:$0xf]
        %v779 = vld [vmem:[%s307 + $0x5d4] sm:$0xf]
        %v780 = vld [vmem:[%s307 + $0x5d8] sm:$0xf]
        %v781 = vld [vmem:[%s307 + $0x5dc] sm:$0xf]
        %v782 = vld [vmem:[%s307 + $0x5e0] sm:$0xf]
        %v783 = vld [vmem:[%s307 + $0x5e4] sm:$0xf]
        %v784 = vld [vmem:[%s307 + $0x5e8] sm:$0xf]
        %v785 = vld [vmem:[%s307 + $0x5ec] sm:$0xf]
        %v786 = vld [vmem:[%s307 + $0x5f0] sm:$0xf]
        %v787 = vld [vmem:[%s307 + $0x5f4] sm:$0xf]
        %v788 = vld [vmem:[%s307 + $0x5f8] sm:$0xf]
        %v789 = vld [vmem:[%s307 + $0x5fc] sm:$0xf]
        %v790 = vld [vmem:[%s307 + $0x600] sm:$0xf]
        %v791 = vld [vmem:[%s307 + $0x604] sm:$0xf]
        %v792 = vld [vmem:[%s307 + $0x608] sm:$0xf]
        %v793 = vld [vmem:[%s307 + $0x60c] sm:$0xf]
        %v794 = vld [vmem:[%s307 + $0x610] sm:$0xf]
        %v795 = vld [vmem:[%s307 + $0x614] sm:$0xf]
        %v796 = vld [vmem:[%s307 + $0x618] sm:$0xf]
        %v797 = vld [vmem:[%s307 + $0x61c] sm:$0xf]
        %v798 = vld [vmem:[%s307 + $0x620] sm:$0xf]
        %v799 = vld [vmem:[%s307 + $0x624] sm:$0xf]
        %v800 = vld [vmem:[%s307 + $0x628] sm:$0xf]
        %v801 = vld [vmem:[%s307 + $0x62c] sm:$0xf]
        %v802 = vld [vmem:[%s307 + $0x630] sm:$0xf]
        %v803 = vld [vmem:[%s307 + $0x634] sm:$0xf]
        %v804 = vld [vmem:[%s307 + $0x638] sm:$0xf]
        %v805 = vld [vmem:[%s307 + $0x63c] sm:$0xf]
        %v806 = vld [vmem:[%s307 + $0x640] sm:$0xf]
        %v807 = vld [vmem:[%s307 + $0x644] sm:$0xf]
        %v808 = vld [vmem:[%s307 + $0x648] sm:$0xf]
        %v809 = vld [vmem:[%s307 + $0x64c] sm:$0xf]
        %v810 = vld [vmem:[%s307 + $0x650] sm:$0xf]
        %v811 = vld [vmem:[%s307 + $0x654] sm:$0xf]
        %v812 = vld [vmem:[%s307 + $0x658] sm:$0xf]
        %v813 = vld [vmem:[%s307 + $0x65c] sm:$0xf]
        %v814 = vld [vmem:[%s307 + $0x660] sm:$0xf]
        %v815 = vld [vmem:[%s307 + $0x664] sm:$0xf]
        %v816 = vld [vmem:[%s307 + $0x668] sm:$0xf]
        %v817 = vld [vmem:[%s307 + $0x66c] sm:$0xf]
        %v818 = vld [vmem:[%s307 + $0x670] sm:$0xf]
        %v819 = vld [vmem:[%s307 + $0x674] sm:$0xf]
        %v820 = vld [vmem:[%s307 + $0x678] sm:$0xf]
        %v821 = vld [vmem:[%s307 + $0x67c] sm:$0xf]
        %v822 = vld [vmem:[%s307 + $0x680] sm:$0xf]
        %v823 = vld [vmem:[%s307 + $0x684] sm:$0xf]
        %v824 = vld [vmem:[%s307 + $0x688] sm:$0xf]
        %v825 = vld [vmem:[%s307 + $0x68c] sm:$0xf]
        %v826 = vld [vmem:[%s307 + $0x690] sm:$0xf]
        %v827 = vld [vmem:[%s307 + $0x694] sm:$0xf]
        %v828 = vld [vmem:[%s307 + $0x698] sm:$0xf]
        %v829 = vld [vmem:[%s307 + $0x69c] sm:$0xf]
        %v830 = vld [vmem:[%s307 + $0x6a0] sm:$0xf]
        %v831 = vld [vmem:[%s307 + $0x6a4] sm:$0xf]
        %v832 = vld [vmem:[%s307 + $0x6a8] sm:$0xf]
        %v833 = vld [vmem:[%s307 + $0x6ac] sm:$0xf]
        %v834 = vld [vmem:[%s307 + $0x6b0] sm:$0xf]
        %v835 = vld [vmem:[%s307 + $0x6b4] sm:$0xf]
        %v836 = vld [vmem:[%s307 + $0x6b8] sm:$0xf]
        %v837 = vld [vmem:[%s307 + $0x6bc] sm:$0xf]
        %v838 = vld [vmem:[%s307 + $0x6c0] sm:$0xf]
        %v839 = vld [vmem:[%s307 + $0x6c4] sm:$0xf]
        %v840 = vld [vmem:[%s307 + $0x6c8] sm:$0xf]
        %v841 = vld [vmem:[%s307 + $0x6cc] sm:$0xf]
        %v842 = vld [vmem:[%s307 + $0x6d0] sm:$0xf]
        %v843 = vld [vmem:[%s307 + $0x6d4] sm:$0xf]
        %v844 = vld [vmem:[%s307 + $0x6d8] sm:$0xf]
        %v845 = vld [vmem:[%s307 + $0x6dc] sm:$0xf]
        %v846 = vld [vmem:[%s307 + $0x6e0] sm:$0xf]
        %v847 = vld [vmem:[%s307 + $0x6e4] sm:$0xf]
        %v848 = vld [vmem:[%s307 + $0x6e8] sm:$0xf]
        %v849 = vld [vmem:[%s307 + $0x6ec] sm:$0xf]
        %v850 = vld [vmem:[%s307 + $0x6f0] sm:$0xf]
        %v851 = vld [vmem:[%s307 + $0x6f4] sm:$0xf]
        %v852 = vld [vmem:[%s307 + $0x6f8] sm:$0xf]
        %v853 = vld [vmem:[%s307 + $0x6fc] sm:$0xf]
        %v854 = vld [vmem:[%s307 + $0x700] sm:$0xf]
        %v855 = vld [vmem:[%s307 + $0x704] sm:$0xf]
        %v856 = vld [vmem:[%s307 + $0x708] sm:$0xf]
        %v857 = vld [vmem:[%s307 + $0x70c] sm:$0xf]
        %v858 = vld [vmem:[%s307 + $0x710] sm:$0xf]
        %v859 = vld [vmem:[%s307 + $0x714] sm:$0xf]
        %v860 = vld [vmem:[%s307 + $0x718] sm:$0xf]
        %v861 = vld [vmem:[%s307 + $0x71c] sm:$0xf]
        %v862 = vld [vmem:[%s307 + $0x720] sm:$0xf]
        %v863 = vld [vmem:[%s307 + $0x724] sm:$0xf]
        %v864 = vld [vmem:[%s307 + $0x728] sm:$0xf]
        %v865 = vld [vmem:[%s307 + $0x72c] sm:$0xf]
        %v866 = vld [vmem:[%s307 + $0x730] sm:$0xf]
        %v867 = vld [vmem:[%s307 + $0x734] sm:$0xf]
        %v868 = vld [vmem:[%s307 + $0x738] sm:$0xf]
        %v869 = vld [vmem:[%s307 + $0x73c] sm:$0xf]
        %v870 = vld [vmem:[%s307 + $0x740] sm:$0xf]
        %v871 = vld [vmem:[%s307 + $0x744] sm:$0xf]
        %v872 = vld [vmem:[%s307 + $0x748] sm:$0xf]
        %v873 = vld [vmem:[%s307 + $0x74c] sm:$0xf]
        %v874 = vld [vmem:[%s307 + $0x750] sm:$0xf]
        %v875 = vld [vmem:[%s307 + $0x754] sm:$0xf]
        %v876 = vld [vmem:[%s307 + $0x758] sm:$0xf]
        %v877 = vld [vmem:[%s307 + $0x75c] sm:$0xf]
        %v878 = vld [vmem:[%s307 + $0x760] sm:$0xf]
        %v879 = vld [vmem:[%s307 + $0x764] sm:$0xf]
        %v880 = vld [vmem:[%s307 + $0x768] sm:$0xf]
        %v881 = vld [vmem:[%s307 + $0x76c] sm:$0xf]
        %v882 = vld [vmem:[%s307 + $0x770] sm:$0xf]
        %v883 = vld [vmem:[%s307 + $0x774] sm:$0xf]
        %v884 = vld [vmem:[%s307 + $0x778] sm:$0xf]
        %v885 = vld [vmem:[%s307 + $0x77c] sm:$0xf]
        %v886 = vld [vmem:[%s307 + $0x780] sm:$0xf]
        %v887 = vld [vmem:[%s307 + $0x784] sm:$0xf]
        %v888 = vld [vmem:[%s307 + $0x788] sm:$0xf]
        %v889 = vld [vmem:[%s307 + $0x78c] sm:$0xf]
        %v890 = vld [vmem:[%s307 + $0x790] sm:$0xf]
        %v891 = vld [vmem:[%s307 + $0x794] sm:$0xf]
        %v892 = vld [vmem:[%s307 + $0x798] sm:$0xf]
        %v893 = vld [vmem:[%s307 + $0x79c] sm:$0xf]
        %v894 = vld [vmem:[%s307 + $0x7a0] sm:$0xf]
        %v895 = vld [vmem:[%s307 + $0x7a4] sm:$0xf]
        %v896 = vld [vmem:[%s307 + $0x7a8] sm:$0xf]
        %v897 = vld [vmem:[%s307 + $0x7ac] sm:$0xf]
        %v898 = vld [vmem:[%s307 + $0x7b0] sm:$0xf]
        %v899 = vld [vmem:[%s307 + $0x7b4] sm:$0xf]
        %v900 = vld [vmem:[%s307 + $0x7b8] sm:$0xf]
        %v901 = vld [vmem:[%s307 + $0x7bc] sm:$0xf]
        %v902 = vld [vmem:[%s307 + $0x7c0] sm:$0xf]
        %v903 = vld [vmem:[%s307 + $0x7c4] sm:$0xf]
        %v904 = vld [vmem:[%s307 + $0x7c8] sm:$0xf]
        %v905 = vld [vmem:[%s307 + $0x7cc] sm:$0xf]
        %v906 = vld [vmem:[%s307 + $0x7d0] sm:$0xf]
        %v907 = vld [vmem:[%s307 + $0x7d4] sm:$0xf]
        %v908 = vld [vmem:[%s307 + $0x7d8] sm:$0xf]
        %v909 = vld [vmem:[%s307 + $0x7dc] sm:$0xf]
        %v910 = vld [vmem:[%s307 + $0x7e0] sm:$0xf]
        %v911 = vld [vmem:[%s307 + $0x7e4] sm:$0xf]
        %v912 = vld [vmem:[%s307 + $0x7e8] sm:$0xf]
        %v913 = vld [vmem:[%s307 + $0x7ec] sm:$0xf]
        %v914 = vld [vmem:[%s307 + $0x7f0] sm:$0xf]
        %v915 = vld [vmem:[%s307 + $0x7f4] sm:$0xf]
        %v916 = vld [vmem:[%s307 + $0x7f8] sm:$0xf]
        %v917 = vld [vmem:[%s307 + $0x7fc] sm:$0xf]
        %v918 = vld [vmem:[%s307 + $0x800] sm:$0xf]
        %v919 = vld [vmem:[%s307 + $0x804] sm:$0xf]
        %v920 = vld [vmem:[%s307 + $0x808] sm:$0xf]
        %v921 = vld [vmem:[%s307 + $0x80c] sm:$0xf]
        %v922 = vld [vmem:[%s307 + $0x810] sm:$0xf]
        %v923 = vld [vmem:[%s307 + $0x814] sm:$0xf]
        %v924 = vld [vmem:[%s307 + $0x818] sm:$0xf]
        %v925 = vld [vmem:[%s307 + $0x81c] sm:$0xf]
        %v926 = vld [vmem:[%s307 + $0x820] sm:$0xf]
        %v927 = vld [vmem:[%s307 + $0x824] sm:$0xf]
        %v928 = vld [vmem:[%s307 + $0x828] sm:$0xf]
        %v929 = vld [vmem:[%s307 + $0x82c] sm:$0xf]
        %v930 = vld [vmem:[%s307 + $0x830] sm:$0xf]
        %v931 = vld [vmem:[%s307 + $0x834] sm:$0xf]
        %v932 = vld [vmem:[%s307 + $0x838] sm:$0xf]
        %v933 = vld [vmem:[%s307 + $0x83c] sm:$0xf]
        %v934 = vld [vmem:[%s307 + $0x840] sm:$0xf]
        %v935 = vld [vmem:[%s307 + $0x844] sm:$0xf]
        %v936 = vld [vmem:[%s307 + $0x848] sm:$0xf]
        %v937 = vld [vmem:[%s307 + $0x84c] sm:$0xf]
        %v938 = vld [vmem:[%s307 + $0x850] sm:$0xf]
        %v939 = vld [vmem:[%s307 + $0x854] sm:$0xf]
        %v940 = vld [vmem:[%s307 + $0x858] sm:$0xf]
        %v941 = vld [vmem:[%s307 + $0x85c] sm:$0xf]
        %v942 = vld [vmem:[%s307 + $0x860] sm:$0xf]
        %v943 = vld [vmem:[%s307 + $0x864] sm:$0xf]
        %v944 = vld [vmem:[%s307 + $0x868] sm:$0xf]
        %v945 = vld [vmem:[%s307 + $0x86c] sm:$0xf]
        %v946 = vld [vmem:[%s307 + $0x870] sm:$0xf]
        %v947 = vld [vmem:[%s307 + $0x874] sm:$0xf]
        %v948 = vld [vmem:[%s307 + $0x878] sm:$0xf]
        %v949 = vld [vmem:[%s307 + $0x87c] sm:$0xf]
        %v950 = vld [vmem:[%s307 + $0x880] sm:$0xf]
        %v951 = vld [vmem:[%s307 + $0x884] sm:$0xf]
        %v952 = vld [vmem:[%s307 + $0x888] sm:$0xf]
        %v953 = vld [vmem:[%s307 + $0x88c] sm:$0xf]
        %v954 = vld [vmem:[%s307 + $0x890] sm:$0xf]
        %v955 = vld [vmem:[%s307 + $0x894] sm:$0xf]
        %v956 = vld [vmem:[%s307 + $0x898] sm:$0xf]
        %v957 = vld [vmem:[%s307 + $0x89c] sm:$0xf]
        %v958 = vld [vmem:[%s307 + $0x8a0] sm:$0xf]
        %v959 = vld [vmem:[%s307 + $0x8a4] sm:$0xf]
        %v960 = vld [vmem:[%s307 + $0x8a8] sm:$0xf]
        %v961 = vld [vmem:[%s307 + $0x8ac] sm:$0xf]
        %v962 = vld [vmem:[%s307 + $0x8b0] sm:$0xf]
        %v963 = vld [vmem:[%s307 + $0x8b4] sm:$0xf]
        %v964 = vld [vmem:[%s307 + $0x8b8] sm:$0xf]
        %v965 = vld [vmem:[%s307 + $0x8bc] sm:$0xf]
        %v966 = vld [vmem:[%s307 + $0x8c0] sm:$0xf]
        %v967 = vld [vmem:[%s307 + $0x8c4] sm:$0xf]
        %v968 = vld [vmem:[%s307 + $0x8c8] sm:$0xf]
        %v969 = vld [vmem:[%s307 + $0x8cc] sm:$0xf]
        %v970 = vld [vmem:[%s307 + $0x8d0] sm:$0xf]
        %v971 = vld [vmem:[%s307 + $0x8d4] sm:$0xf]
        %v972 = vld [vmem:[%s307 + $0x8d8] sm:$0xf]
        %v973 = vld [vmem:[%s307 + $0x8dc] sm:$0xf]
        %v974 = vld [vmem:[%s307 + $0x8e0] sm:$0xf]
        %v975 = vld [vmem:[%s307 + $0x8e4] sm:$0xf]
        %v976 = vld [vmem:[%s307 + $0x8e8] sm:$0xf]
        %v977 = vld [vmem:[%s307 + $0x8ec] sm:$0xf]
        %v978 = vld [vmem:[%s307 + $0x8f0] sm:$0xf]
        %v979 = vld [vmem:[%s307 + $0x8f4] sm:$0xf]
        %v980 = vld [vmem:[%s307 + $0x8f8] sm:$0xf]
        %v981 = vld [vmem:[%s307 + $0x8fc] sm:$0xf]
        %v982 = vld [vmem:[%s307 + $0x900] sm:$0xf]
        %v983 = vld [vmem:[%s307 + $0x904] sm:$0xf]
        %v984 = vld [vmem:[%s307 + $0x908] sm:$0xf]
        %v985 = vld [vmem:[%s307 + $0x90c] sm:$0xf]
        %v986 = vld [vmem:[%s307 + $0x910] sm:$0xf]
        %v987 = vld [vmem:[%s307 + $0x914] sm:$0xf]
        %v988 = vld [vmem:[%s307 + $0x918] sm:$0xf]
        %v989 = vld [vmem:[%s307 + $0x91c] sm:$0xf]
        %v990 = vld [vmem:[%s307 + $0x920] sm:$0xf]
        %v991 = vld [vmem:[%s307 + $0x924] sm:$0xf]
        %v992 = vld [vmem:[%s307 + $0x928] sm:$0xf]
        %v993 = vld [vmem:[%s307 + $0x92c] sm:$0xf]
        %v994 = vld [vmem:[%s307 + $0x930] sm:$0xf]
        %v995 = vld [vmem:[%s307 + $0x934] sm:$0xf]
        %v996 = vld [vmem:[%s307 + $0x938] sm:$0xf]
        %v997 = vld [vmem:[%s307 + $0x93c] sm:$0xf]
        %v998 = vld [vmem:[%s307 + $0x940] sm:$0xf]
        %v999 = vld [vmem:[%s307 + $0x944] sm:$0xf]
        %v1000 = vld [vmem:[%s307 + $0x948] sm:$0xf]
        %v1001 = vld [vmem:[%s307 + $0x94c] sm:$0xf]
        %v1002 = vld [vmem:[%s307 + $0x950] sm:$0xf]
        %v1003 = vld [vmem:[%s307 + $0x954] sm:$0xf]
        %v1004 = vld [vmem:[%s307 + $0x958] sm:$0xf]
        %v1005 = vld [vmem:[%s307 + $0x95c] sm:$0xf]
        %v1006 = vld [vmem:[%s307 + $0x960] sm:$0xf]
        %v1007 = vld [vmem:[%s307 + $0x964] sm:$0xf]
        %v1008 = vld [vmem:[%s307 + $0x968] sm:$0xf]
        %v1009 = vld [vmem:[%s307 + $0x96c] sm:$0xf]
        %v1010 = vld [vmem:[%s307 + $0x970] sm:$0xf]
        %v1011 = vld [vmem:[%s307 + $0x974] sm:$0xf]
        %v1012 = vld [vmem:[%s307 + $0x978] sm:$0xf]
        %v1013 = vld [vmem:[%s307 + $0x97c] sm:$0xf]
        %v1014 = vld [vmem:[%s307 + $0x980] sm:$0xf]
        %v1015 = vld [vmem:[%s307 + $0x984] sm:$0xf]
        %v1016 = vld [vmem:[%s307 + $0x988] sm:$0xf]
        %v1017 = vld [vmem:[%s307 + $0x98c] sm:$0xf]
        %v1018 = vld [vmem:[%s307 + $0x990] sm:$0xf]
        %v1019 = vld [vmem:[%s307 + $0x994] sm:$0xf]
        %v1020 = vld [vmem:[%s307 + $0x998] sm:$0xf]
        %v1021 = vld [vmem:[%s307 + $0x99c] sm:$0xf]
        %v1022 = vld [vmem:[%s307 + $0x9a0] sm:$0xf]
        %v1023 = vld [vmem:[%s307 + $0x9a4] sm:$0xf]
        %v1024 = vld [vmem:[%s307 + $0x9a8] sm:$0xf]
        %v1025 = vld [vmem:[%s307 + $0x9ac] sm:$0xf]
        %v1026 = vld [vmem:[%s307 + $0x9b0] sm:$0xf]
        %v1027 = vld [vmem:[%s307 + $0x9b4] sm:$0xf]
        %v1028 = vld [vmem:[%s307 + $0x9b8] sm:$0xf]
        %v1029 = vld [vmem:[%s307 + $0x9bc] sm:$0xf]
        %v1030 = vld [vmem:[%s307 + $0x9c0] sm:$0xf]
        %v1031 = vld [vmem:[%s307 + $0x9c4] sm:$0xf]
        %v1032 = vld [vmem:[%s307 + $0x9c8] sm:$0xf]
        %v1033 = vld [vmem:[%s307 + $0x9cc] sm:$0xf]
        %v1034 = vld [vmem:[%s307 + $0x9d0] sm:$0xf]
        %v1035 = vld [vmem:[%s307 + $0x9d4] sm:$0xf]
        %v1036 = vld [vmem:[%s307 + $0x9d8] sm:$0xf]
        %v1037 = vld [vmem:[%s307 + $0x9dc] sm:$0xf]
        %v1038 = vld [vmem:[%s307 + $0x9e0] sm:$0xf]
        %v1039 = vld [vmem:[%s307 + $0x9e4] sm:$0xf]
        %v1040 = vld [vmem:[%s307 + $0x9e8] sm:$0xf]
        %v1041 = vld [vmem:[%s307 + $0x9ec] sm:$0xf]
        %v1042 = vld [vmem:[%s307 + $0x9f0] sm:$0xf]
        %v1043 = vld [vmem:[%s307 + $0x9f4] sm:$0xf]
        %v1044 = vld [vmem:[%s307 + $0x9f8] sm:$0xf]
        %v1045 = vld [vmem:[%s307 + $0x9fc] sm:$0xf]
        %v1046 = vld [vmem:[%s307 + $0xa00] sm:$0xf]
        %v1047 = vld [vmem:[%s307 + $0xa04] sm:$0xf]
        %v1048 = vld [vmem:[%s307 + $0xa08] sm:$0xf]
        %v1049 = vld [vmem:[%s307 + $0xa0c] sm:$0xf]
        %v1050 = vld [vmem:[%s307 + $0xa10] sm:$0xf]
        %v1051 = vld [vmem:[%s307 + $0xa14] sm:$0xf]
        %v1052 = vld [vmem:[%s307 + $0xa18] sm:$0xf]
        %v1053 = vld [vmem:[%s307 + $0xa1c] sm:$0xf]
        %v1054 = vld [vmem:[%s307 + $0xa20] sm:$0xf]
        %v1055 = vld [vmem:[%s307 + $0xa24] sm:$0xf]
        %v1056 = vld [vmem:[%s307 + $0xa28] sm:$0xf]
        %v1057 = vld [vmem:[%s307 + $0xa2c] sm:$0xf]
        %v1058 = vld [vmem:[%s307 + $0xa30] sm:$0xf]
        %v1059 = vld [vmem:[%s307 + $0xa34] sm:$0xf]
        %v1060 = vld [vmem:[%s307 + $0xa38] sm:$0xf]
        %v1061 = vld [vmem:[%s307 + $0xa3c] sm:$0xf]
        %v1062 = vld [vmem:[%s307 + $0xa40] sm:$0xf]
        %v1063 = vld [vmem:[%s307 + $0xa44] sm:$0xf]
        %v1064 = vld [vmem:[%s307 + $0xa48] sm:$0xf]
        %v1065 = vld [vmem:[%s307 + $0xa4c] sm:$0xf]
        %v1066 = vld [vmem:[%s307 + $0xa50] sm:$0xf]
        %v1067 = vld [vmem:[%s307 + $0xa54] sm:$0xf]
        %v1068 = vld [vmem:[%s307 + $0xa58] sm:$0xf]
        %v1069 = vld [vmem:[%s307 + $0xa5c] sm:$0xf]
        %v1070 = vld [vmem:[%s307 + $0xa60] sm:$0xf]
        %v1071 = vld [vmem:[%s307 + $0xa64] sm:$0xf]
        %v1072 = vld [vmem:[%s307 + $0xa68] sm:$0xf]
        %v1073 = vld [vmem:[%s307 + $0xa6c] sm:$0xf]
        %v1074 = vld [vmem:[%s307 + $0xa70] sm:$0xf]
        %v1075 = vld [vmem:[%s307 + $0xa74] sm:$0xf]
        %v1076 = vld [vmem:[%s307 + $0xa78] sm:$0xf]
        %v1077 = vld [vmem:[%s307 + $0xa7c] sm:$0xf]
        %v1078 = vld [vmem:[%s307 + $0xa80] sm:$0xf]
        %v1079 = vld [vmem:[%s307 + $0xa84] sm:$0xf]
        %v1080 = vld [vmem:[%s307 + $0xa88] sm:$0xf]
        %v1081 = vld [vmem:[%s307 + $0xa8c] sm:$0xf]
        %v1082 = vld [vmem:[%s307 + $0xa90] sm:$0xf]
        %v1083 = vld [vmem:[%s307 + $0xa94] sm:$0xf]
        %v1084 = vld [vmem:[%s307 + $0xa98] sm:$0xf]
        %v1085 = vld [vmem:[%s307 + $0xa9c] sm:$0xf]
        %v1086 = vld [vmem:[%s307 + $0xaa0] sm:$0xf]
        %v1087 = vld [vmem:[%s307 + $0xaa4] sm:$0xf]
        %v1088 = vld [vmem:[%s307 + $0xaa8] sm:$0xf]
        %v1089 = vld [vmem:[%s307 + $0xaac] sm:$0xf]
        %v1090 = vld [vmem:[%s307 + $0xab0] sm:$0xf]
        %v1091 = vld [vmem:[%s307 + $0xab4] sm:$0xf]
        %v1092 = vld [vmem:[%s307 + $0xab8] sm:$0xf]
        %v1093 = vld [vmem:[%s307 + $0xabc] sm:$0xf]
        %v1094 = vld [vmem:[%s307 + $0xac0] sm:$0xf]
        %v1095 = vld [vmem:[%s307 + $0xac4] sm:$0xf]
        %v1096 = vld [vmem:[%s307 + $0xac8] sm:$0xf]
        %v1097 = vld [vmem:[%s307 + $0xacc] sm:$0xf]
        %v1098 = vld [vmem:[%s307 + $0xad0] sm:$0xf]
        %v1099 = vld [vmem:[%s307 + $0xad4] sm:$0xf]
        %v1100 = vld [vmem:[%s307 + $0xad8] sm:$0xf]
        %v1101 = vld [vmem:[%s307 + $0xadc] sm:$0xf]
        %v1102 = vld [vmem:[%s307 + $0xae0] sm:$0xf]
        %v1103 = vld [vmem:[%s307 + $0xae4] sm:$0xf]
        %v1104 = vld [vmem:[%s307 + $0xae8] sm:$0xf]
        %v1105 = vld [vmem:[%s307 + $0xaec] sm:$0xf]
        %v1106 = vld [vmem:[%s307 + $0xaf0] sm:$0xf]
        %v1107 = vld [vmem:[%s307 + $0xaf4] sm:$0xf]
        %v1108 = vld [vmem:[%s307 + $0xaf8] sm:$0xf]
        %v1109 = vld [vmem:[%s307 + $0xafc] sm:$0xf]
        %v1110 = vld [vmem:[%s307 + $0xb00] sm:$0xf]
        %v1111 = vld [vmem:[%s307 + $0xb04] sm:$0xf]
        %v1112 = vld [vmem:[%s307 + $0xb08] sm:$0xf]
        %v1113 = vld [vmem:[%s307 + $0xb0c] sm:$0xf]
        %v1114 = vld [vmem:[%s307 + $0xb10] sm:$0xf]
        %v1115 = vld [vmem:[%s307 + $0xb14] sm:$0xf]
        %v1116 = vld [vmem:[%s307 + $0xb18] sm:$0xf]
        %v1117 = vld [vmem:[%s307 + $0xb1c] sm:$0xf]
        %v1118 = vld [vmem:[%s307 + $0xb20] sm:$0xf]
        %v1119 = vld [vmem:[%s307 + $0xb24] sm:$0xf]
        %v1120 = vld [vmem:[%s307 + $0xb28] sm:$0xf]
        %v1121 = vld [vmem:[%s307 + $0xb2c] sm:$0xf]
        %v1122 = vld [vmem:[%s307 + $0xb30] sm:$0xf]
        %v1123 = vld [vmem:[%s307 + $0xb34] sm:$0xf]
        %v1124 = vld [vmem:[%s307 + $0xb38] sm:$0xf]
        %v1125 = vld [vmem:[%s307 + $0xb3c] sm:$0xf]
        %v1126 = vld [vmem:[%s307 + $0xb40] sm:$0xf]
        %v1127 = vld [vmem:[%s307 + $0xb44] sm:$0xf]
        %v1128 = vld [vmem:[%s307 + $0xb48] sm:$0xf]
        %v1129 = vld [vmem:[%s307 + $0xb4c] sm:$0xf]
        %v1130 = vld [vmem:[%s307 + $0xb50] sm:$0xf]
        %v1131 = vld [vmem:[%s307 + $0xb54] sm:$0xf]
        %v1132 = vld [vmem:[%s307 + $0xb58] sm:$0xf]
        %v1133 = vld [vmem:[%s307 + $0xb5c] sm:$0xf]
        %v1134 = vld [vmem:[%s307 + $0xb60] sm:$0xf]
        %v1135 = vld [vmem:[%s307 + $0xb64] sm:$0xf]
        %v1136 = vld [vmem:[%s307 + $0xb68] sm:$0xf]
        %v1137 = vld [vmem:[%s307 + $0xb6c] sm:$0xf]
        %v1138 = vld [vmem:[%s307 + $0xb70] sm:$0xf]
        %v1139 = vld [vmem:[%s307 + $0xb74] sm:$0xf]
        %v1140 = vld [vmem:[%s307 + $0xb78] sm:$0xf]
        %v1141 = vld [vmem:[%s307 + $0xb7c] sm:$0xf]
        %v1142 = vld [vmem:[%s307 + $0xb80] sm:$0xf]
        %v1143 = vld [vmem:[%s307 + $0xb84] sm:$0xf]
        %v1144 = vld [vmem:[%s307 + $0xb88] sm:$0xf]
        %v1145 = vld [vmem:[%s307 + $0xb8c] sm:$0xf]
        %v1146 = vld [vmem:[%s307 + $0xb90] sm:$0xf]
        %v1147 = vld [vmem:[%s307 + $0xb94] sm:$0xf]
        %v1148 = vld [vmem:[%s307 + $0xb98] sm:$0xf]
        %v1149 = vld [vmem:[%s307 + $0xb9c] sm:$0xf]
        %v1150 = vld [vmem:[%s307 + $0xba0] sm:$0xf]
        %v1151 = vld [vmem:[%s307 + $0xba4] sm:$0xf]
        %v1152 = vld [vmem:[%s307 + $0xba8] sm:$0xf]
        %v1153 = vld [vmem:[%s307 + $0xbac] sm:$0xf]
        %v1154 = vld [vmem:[%s307 + $0xbb0] sm:$0xf]
        %v1155 = vld [vmem:[%s307 + $0xbb4] sm:$0xf]
        %v1156 = vld [vmem:[%s307 + $0xbb8] sm:$0xf]
        %v1157 = vld [vmem:[%s307 + $0xbbc] sm:$0xf]
        %v1158 = vld [vmem:[%s307 + $0xbc0] sm:$0xf]
        %v1159 = vld [vmem:[%s307 + $0xbc4] sm:$0xf]
        %v1160 = vld [vmem:[%s307 + $0xbc8] sm:$0xf]
        %v1161 = vld [vmem:[%s307 + $0xbcc] sm:$0xf]
        %v1162 = vld [vmem:[%s307 + $0xbd0] sm:$0xf]
        %v1163 = vld [vmem:[%s307 + $0xbd4] sm:$0xf]
        %v1164 = vld [vmem:[%s307 + $0xbd8] sm:$0xf]
        %v1165 = vld [vmem:[%s307 + $0xbdc] sm:$0xf]
        %v1166 = vld [vmem:[%s307 + $0xbe0] sm:$0xf]
        %v1167 = vld [vmem:[%s307 + $0xbe4] sm:$0xf]
        %v1168 = vld [vmem:[%s307 + $0xbe8] sm:$0xf]
        %v1169 = vld [vmem:[%s307 + $0xbec] sm:$0xf]
        %v1170 = vld [vmem:[%s307 + $0xbf0] sm:$0xf]
        %v1171 = vld [vmem:[%s307 + $0xbf4] sm:$0xf]
        %v1172 = vld [vmem:[%s307 + $0xbf8] sm:$0xf]
        %v1173 = vld [vmem:[%s307 + $0xbfc] sm:$0xf]
        %v1174 = vld [vmem:[%s307 + $0xc00] sm:$0xf]
        %v1175 = vld [vmem:[%s307 + $0xc04] sm:$0xf]
        %v1176 = vld [vmem:[%s307 + $0xc08] sm:$0xf]
        %v1177 = vld [vmem:[%s307 + $0xc0c] sm:$0xf]
        %v1178 = vld [vmem:[%s307 + $0xc10] sm:$0xf]
        %v1179 = vld [vmem:[%s307 + $0xc14] sm:$0xf]
        %v1180 = vld [vmem:[%s307 + $0xc18] sm:$0xf]
        %v1181 = vld [vmem:[%s307 + $0xc1c] sm:$0xf]
        %v1182 = vld [vmem:[%s307 + $0xc20] sm:$0xf]
        %v1183 = vld [vmem:[%s307 + $0xc24] sm:$0xf]
        %v1184 = vld [vmem:[%s307 + $0xc28] sm:$0xf]
        %v1185 = vld [vmem:[%s307 + $0xc2c] sm:$0xf]
        %v1186 = vld [vmem:[%s307 + $0xc30] sm:$0xf]
        %v1187 = vld [vmem:[%s307 + $0xc34] sm:$0xf]
        %v1188 = vld [vmem:[%s307 + $0xc38] sm:$0xf]
        %v1189 = vld [vmem:[%s307 + $0xc3c] sm:$0xf]
        %v1190 = vld [vmem:[%s307 + $0xc40] sm:$0xf]
        %v1191 = vld [vmem:[%s307 + $0xc44] sm:$0xf]
        %v1192 = vld [vmem:[%s307 + $0xc48] sm:$0xf]
        %v1193 = vld [vmem:[%s307 + $0xc4c] sm:$0xf]
        %v1194 = vld [vmem:[%s307 + $0xc50] sm:$0xf]
        %v1195 = vld [vmem:[%s307 + $0xc54] sm:$0xf]
        %v1196 = vld [vmem:[%s307 + $0xc58] sm:$0xf]
        %v1197 = vld [vmem:[%s307 + $0xc5c] sm:$0xf]
        %v1198 = vld [vmem:[%s307 + $0xc60] sm:$0xf]
        %v1199 = vld [vmem:[%s307 + $0xc64] sm:$0xf]
        %v1200 = vld [vmem:[%s307 + $0xc68] sm:$0xf]
        %v1201 = vld [vmem:[%s307 + $0xc6c] sm:$0xf]
        %v1202 = vld [vmem:[%s307 + $0xc70] sm:$0xf]
        %v1203 = vld [vmem:[%s307 + $0xc74] sm:$0xf]
        %v1204 = vld [vmem:[%s307 + $0xc78] sm:$0xf]
        %v1205 = vld [vmem:[%s307 + $0xc7c] sm:$0xf]
        %v1206 = vld [vmem:[%s307 + $0xc80] sm:$0xf]
        %v1207 = vld [vmem:[%s307 + $0xc84] sm:$0xf]
        %v1208 = vld [vmem:[%s307 + $0xc88] sm:$0xf]
        %v1209 = vld [vmem:[%s307 + $0xc8c] sm:$0xf]
        %v1210 = vld [vmem:[%s307 + $0xc90] sm:$0xf]
        %v1211 = vld [vmem:[%s307 + $0xc94] sm:$0xf]
        %v1212 = vld [vmem:[%s307 + $0xc98] sm:$0xf]
        %v1213 = vld [vmem:[%s307 + $0xc9c] sm:$0xf]
        %v1214 = vld [vmem:[%s307 + $0xca0] sm:$0xf]
        %v1215 = vld [vmem:[%s307 + $0xca4] sm:$0xf]
        %v1216 = vld [vmem:[%s307 + $0xca8] sm:$0xf]
        %v1217 = vld [vmem:[%s307 + $0xcac] sm:$0xf]
        %v1218 = vld [vmem:[%s307 + $0xcb0] sm:$0xf]
        %v1219 = vld [vmem:[%s307 + $0xcb4] sm:$0xf]
        %v1220 = vld [vmem:[%s307 + $0xcb8] sm:$0xf]
        %v1221 = vld [vmem:[%s307 + $0xcbc] sm:$0xf]
        %v1222 = vld [vmem:[%s307 + $0xcc0] sm:$0xf]
        %v1223 = vld [vmem:[%s307 + $0xcc4] sm:$0xf]
        %v1224 = vld [vmem:[%s307 + $0xcc8] sm:$0xf]
        %v1225 = vld [vmem:[%s307 + $0xccc] sm:$0xf]
        %v1226 = vld [vmem:[%s307 + $0xcd0] sm:$0xf]
        %v1227 = vld [vmem:[%s307 + $0xcd4] sm:$0xf]
        %v1228 = vld [vmem:[%s307 + $0xcd8] sm:$0xf]
        %v1229 = vld [vmem:[%s307 + $0xcdc] sm:$0xf]
        %v1230 = vld [vmem:[%s307 + $0xce0] sm:$0xf]
        %v1231 = vld [vmem:[%s307 + $0xce4] sm:$0xf]
        %v1232 = vld [vmem:[%s307 + $0xce8] sm:$0xf]
        %v1233 = vld [vmem:[%s307 + $0xcec] sm:$0xf]
        %v1234 = vld [vmem:[%s307 + $0xcf0] sm:$0xf]
        %v1235 = vld [vmem:[%s307 + $0xcf4] sm:$0xf]
        %v1236 = vld [vmem:[%s307 + $0xcf8] sm:$0xf]
        %v1237 = vld [vmem:[%s307 + $0xcfc] sm:$0xf]
        %v1238 = vld [vmem:[%s307 + $0xd00] sm:$0xf]
        %v1239 = vld [vmem:[%s307 + $0xd04] sm:$0xf]
        %v1240 = vld [vmem:[%s307 + $0xd08] sm:$0xf]
        %v1241 = vld [vmem:[%s307 + $0xd0c] sm:$0xf]
        %v1242 = vld [vmem:[%s307 + $0xd10] sm:$0xf]
        %v1243 = vld [vmem:[%s307 + $0xd14] sm:$0xf]
        %v1244 = vld [vmem:[%s307 + $0xd18] sm:$0xf]
        %v1245 = vld [vmem:[%s307 + $0xd1c] sm:$0xf]
        %v1246 = vld [vmem:[%s307 + $0xd20] sm:$0xf]
        %v1247 = vld [vmem:[%s307 + $0xd24] sm:$0xf]
        %v1248 = vld [vmem:[%s307 + $0xd28] sm:$0xf]
        %v1249 = vld [vmem:[%s307 + $0xd2c] sm:$0xf]
        %v1250 = vld [vmem:[%s307 + $0xd30] sm:$0xf]
        %v1251 = vld [vmem:[%s307 + $0xd34] sm:$0xf]
        %v1252 = vld [vmem:[%s307 + $0xd38] sm:$0xf]
        %v1253 = vld [vmem:[%s307 + $0xd3c] sm:$0xf]
        %v1254 = vld [vmem:[%s307 + $0xd40] sm:$0xf]
        %v1255 = vld [vmem:[%s307 + $0xd44] sm:$0xf]
        %v1256 = vld [vmem:[%s307 + $0xd48] sm:$0xf]
        %v1257 = vld [vmem:[%s307 + $0xd4c] sm:$0xf]
        %v1258 = vld [vmem:[%s307 + $0xd50] sm:$0xf]
        %v1259 = vld [vmem:[%s307 + $0xd54] sm:$0xf]
        %v1260 = vld [vmem:[%s307 + $0xd58] sm:$0xf]
        %v1261 = vld [vmem:[%s307 + $0xd5c] sm:$0xf]
        %v1262 = vld [vmem:[%s307 + $0xd60] sm:$0xf]
        %v1263 = vld [vmem:[%s307 + $0xd64] sm:$0xf]
        %v1264 = vld [vmem:[%s307 + $0xd68] sm:$0xf]
        %v1265 = vld [vmem:[%s307 + $0xd6c] sm:$0xf]
        %v1266 = vld [vmem:[%s307 + $0xd70] sm:$0xf]
        %v1267 = vld [vmem:[%s307 + $0xd74] sm:$0xf]
        %v1268 = vld [vmem:[%s307 + $0xd78] sm:$0xf]
        %v1269 = vld [vmem:[%s307 + $0xd7c] sm:$0xf]
        %v1270 = vld [vmem:[%s307 + $0xd80] sm:$0xf]
        %v1271 = vld [vmem:[%s307 + $0xd84] sm:$0xf]
        %v1272 = vld [vmem:[%s307 + $0xd88] sm:$0xf]
        %v1273 = vld [vmem:[%s307 + $0xd8c] sm:$0xf]
        %v1274 = vld [vmem:[%s307 + $0xd90] sm:$0xf]
        %v1275 = vld [vmem:[%s307 + $0xd94] sm:$0xf]
        %v1276 = vld [vmem:[%s307 + $0xd98] sm:$0xf]
        %v1277 = vld [vmem:[%s307 + $0xd9c] sm:$0xf]
        %v1278 = vld [vmem:[%s307 + $0xda0] sm:$0xf]
        %v1279 = vld [vmem:[%s307 + $0xda4] sm:$0xf]
        %v1280 = vld [vmem:[%s307 + $0xda8] sm:$0xf]
        %v1281 = vld [vmem:[%s307 + $0xdac] sm:$0xf]
        %v1282 = vld [vmem:[%s307 + $0xdb0] sm:$0xf]
        %v1283 = vld [vmem:[%s307 + $0xdb4] sm:$0xf]
        %v1284 = vld [vmem:[%s307 + $0xdb8] sm:$0xf]
        %v1285 = vld [vmem:[%s307 + $0xdbc] sm:$0xf]
        %v1286 = vld [vmem:[%s307 + $0xdc0] sm:$0xf]
        %v1287 = vld [vmem:[%s307 + $0xdc4] sm:$0xf]
        %v1288 = vld [vmem:[%s307 + $0xdc8] sm:$0xf]
        %v1289 = vld [vmem:[%s307 + $0xdcc] sm:$0xf]
        %v1290 = vld [vmem:[%s307 + $0xdd0] sm:$0xf]
        %v1291 = vld [vmem:[%s307 + $0xdd4] sm:$0xf]
        %v1292 = vld [vmem:[%s307 + $0xdd8] sm:$0xf]
        %v1293 = vld [vmem:[%s307 + $0xddc] sm:$0xf]
        %v1294 = vld [vmem:[%s307 + $0xde0] sm:$0xf]
        %v1295 = vld [vmem:[%s307 + $0xde4] sm:$0xf]
        %v1296 = vld [vmem:[%s307 + $0xde8] sm:$0xf]
        %v1297 = vld [vmem:[%s307 + $0xdec] sm:$0xf]
        %v1298 = vld [vmem:[%s307 + $0xdf0] sm:$0xf]
        %v1299 = vld [vmem:[%s307 + $0xdf4] sm:$0xf]
        %v1300 = vld [vmem:[%s307 + $0xdf8] sm:$0xf]
        %v1301 = vld [vmem:[%s307 + $0xdfc] sm:$0xf]
        %v1302 = vld [vmem:[%s307 + $0xe00] sm:$0xf]
        %v1303 = vld [vmem:[%s307 + $0xe04] sm:$0xf]
        %v1304 = vld [vmem:[%s307 + $0xe08] sm:$0xf]
        %v1305 = vld [vmem:[%s307 + $0xe0c] sm:$0xf]
        %v1306 = vld [vmem:[%s307 + $0xe10] sm:$0xf]
        %v1307 = vld [vmem:[%s307 + $0xe14] sm:$0xf]
        %v1308 = vld [vmem:[%s307 + $0xe18] sm:$0xf]
        %v1309 = vld [vmem:[%s307 + $0xe1c] sm:$0xf]
        %v1310 = vld [vmem:[%s307 + $0xe20] sm:$0xf]
        %v1311 = vld [vmem:[%s307 + $0xe24] sm:$0xf]
        %v1312 = vld [vmem:[%s307 + $0xe28] sm:$0xf]
        %v1313 = vld [vmem:[%s307 + $0xe2c] sm:$0xf]
        %v1314 = vld [vmem:[%s307 + $0xe30] sm:$0xf]
        %v1315 = vld [vmem:[%s307 + $0xe34] sm:$0xf]
        %v1316 = vld [vmem:[%s307 + $0xe38] sm:$0xf]
        %v1317 = vld [vmem:[%s307 + $0xe3c] sm:$0xf]
        %v1318 = vld [vmem:[%s307 + $0xe40] sm:$0xf]
        %v1319 = vld [vmem:[%s307 + $0xe44] sm:$0xf]
        %v1320 = vld [vmem:[%s307 + $0xe48] sm:$0xf]
        %v1321 = vld [vmem:[%s307 + $0xe4c] sm:$0xf]
        %v1322 = vld [vmem:[%s307 + $0xe50] sm:$0xf]
        %v1323 = vld [vmem:[%s307 + $0xe54] sm:$0xf]
        %v1324 = vld [vmem:[%s307 + $0xe58] sm:$0xf]
        %v1325 = vld [vmem:[%s307 + $0xe5c] sm:$0xf]
        %v1326 = vld [vmem:[%s307 + $0xe60] sm:$0xf]
        %v1327 = vld [vmem:[%s307 + $0xe64] sm:$0xf]
        %v1328 = vld [vmem:[%s307 + $0xe68] sm:$0xf]
        %v1329 = vld [vmem:[%s307 + $0xe6c] sm:$0xf]
        %v1330 = vld [vmem:[%s307 + $0xe70] sm:$0xf]
        %v1331 = vld [vmem:[%s307 + $0xe74] sm:$0xf]
        %v1332 = vld [vmem:[%s307 + $0xe78] sm:$0xf]
        %v1333 = vld [vmem:[%s307 + $0xe7c] sm:$0xf]
        %v1334 = vld [vmem:[%s307 + $0xe80] sm:$0xf]
        %v1335 = vld [vmem:[%s307 + $0xe84] sm:$0xf]
        %v1336 = vld [vmem:[%s307 + $0xe88] sm:$0xf]
        %v1337 = vld [vmem:[%s307 + $0xe8c] sm:$0xf]
        %v1338 = vld [vmem:[%s307 + $0xe90] sm:$0xf]
        %v1339 = vld [vmem:[%s307 + $0xe94] sm:$0xf]
        %v1340 = vld [vmem:[%s307 + $0xe98] sm:$0xf]
        %v1341 = vld [vmem:[%s307 + $0xe9c] sm:$0xf]
        %v1342 = vld [vmem:[%s307 + $0xea0] sm:$0xf]
        %v1343 = vld [vmem:[%s307 + $0xea4] sm:$0xf]
        %v1344 = vld [vmem:[%s307 + $0xea8] sm:$0xf]
        %v1345 = vld [vmem:[%s307 + $0xeac] sm:$0xf]
        %v1346 = vld [vmem:[%s307 + $0xeb0] sm:$0xf]
        %v1347 = vld [vmem:[%s307 + $0xeb4] sm:$0xf]
        %v1348 = vld [vmem:[%s307 + $0xeb8] sm:$0xf]
        %v1349 = vld [vmem:[%s307 + $0xebc] sm:$0xf]
        %v1350 = vld [vmem:[%s307 + $0xec0] sm:$0xf]
        %v1351 = vld [vmem:[%s307 + $0xec4] sm:$0xf]
        %v1352 = vld [vmem:[%s307 + $0xec8] sm:$0xf]
        %v1353 = vld [vmem:[%s307 + $0xecc] sm:$0xf]
        %v1354 = vld [vmem:[%s307 + $0xed0] sm:$0xf]
        %v1355 = vld [vmem:[%s307 + $0xed4] sm:$0xf]
        %v1356 = vld [vmem:[%s307 + $0xed8] sm:$0xf]
        %v1357 = vld [vmem:[%s307 + $0xedc] sm:$0xf]
        %v1358 = vld [vmem:[%s307 + $0xee0] sm:$0xf]
        %v1359 = vld [vmem:[%s307 + $0xee4] sm:$0xf]
        %v1360 = vld [vmem:[%s307 + $0xee8] sm:$0xf]
        %v1361 = vld [vmem:[%s307 + $0xeec] sm:$0xf]
        %v1362 = vld [vmem:[%s307 + $0xef0] sm:$0xf]
        %v1363 = vld [vmem:[%s307 + $0xef4] sm:$0xf]
        %v1364 = vld [vmem:[%s307 + $0xef8] sm:$0xf]
        %v1365 = vld [vmem:[%s307 + $0xefc] sm:$0xf]
        %v1366 = vld [vmem:[%s307 + $0xf00] sm:$0xf]
        %v1367 = vld [vmem:[%s307 + $0xf04] sm:$0xf]
        %v1368 = vld [vmem:[%s307 + $0xf08] sm:$0xf]
        %v1369 = vld [vmem:[%s307 + $0xf0c] sm:$0xf]
        %v1370 = vld [vmem:[%s307 + $0xf10] sm:$0xf]
        %v1371 = vld [vmem:[%s307 + $0xf14] sm:$0xf]
        %v1372 = vld [vmem:[%s307 + $0xf18] sm:$0xf]
        %v1373 = vld [vmem:[%s307 + $0xf1c] sm:$0xf]
        %v1374 = vld [vmem:[%s307 + $0xf20] sm:$0xf]
        %v1375 = vld [vmem:[%s307 + $0xf24] sm:$0xf]
        %v1376 = vld [vmem:[%s307 + $0xf28] sm:$0xf]
        %v1377 = vld [vmem:[%s307 + $0xf2c] sm:$0xf]
        %v1378 = vld [vmem:[%s307 + $0xf30] sm:$0xf]
        %v1379 = vld [vmem:[%s307 + $0xf34] sm:$0xf]
        %v1380 = vld [vmem:[%s307 + $0xf38] sm:$0xf]
        %v1381 = vld [vmem:[%s307 + $0xf3c] sm:$0xf]
        %v1382 = vld [vmem:[%s307 + $0xf40] sm:$0xf]
        %v1383 = vld [vmem:[%s307 + $0xf44] sm:$0xf]
        %v1384 = vld [vmem:[%s307 + $0xf48] sm:$0xf]
        %v1385 = vld [vmem:[%s307 + $0xf4c] sm:$0xf]
        %v1386 = vld [vmem:[%s307 + $0xf50] sm:$0xf]
        %v1387 = vld [vmem:[%s307 + $0xf54] sm:$0xf]
        %v1388 = vld [vmem:[%s307 + $0xf58] sm:$0xf]
        %v1389 = vld [vmem:[%s307 + $0xf5c] sm:$0xf]
        %v1390 = vld [vmem:[%s307 + $0xf60] sm:$0xf]
        %v1391 = vld [vmem:[%s307 + $0xf64] sm:$0xf]
        %v1392 = vld [vmem:[%s307 + $0xf68] sm:$0xf]
        %v1393 = vld [vmem:[%s307 + $0xf6c] sm:$0xf]
        %v1394 = vld [vmem:[%s307 + $0xf70] sm:$0xf]
        %v1395 = vld [vmem:[%s307 + $0xf74] sm:$0xf]
        %v1396 = vld [vmem:[%s307 + $0xf78] sm:$0xf]
        %v1397 = vld [vmem:[%s307 + $0xf7c] sm:$0xf]
        %v1398 = vld [vmem:[%s307 + $0xf80] sm:$0xf]
        %v1399 = vld [vmem:[%s307 + $0xf84] sm:$0xf]
        %v1400 = vld [vmem:[%s307 + $0xf88] sm:$0xf]
        %v1401 = vld [vmem:[%s307 + $0xf8c] sm:$0xf]
        %v1402 = vld [vmem:[%s307 + $0xf90] sm:$0xf]
        %v1403 = vld [vmem:[%s307 + $0xf94] sm:$0xf]
        %v1404 = vld [vmem:[%s307 + $0xf98] sm:$0xf]
        %v1405 = vld [vmem:[%s307 + $0xf9c] sm:$0xf]
        %v1406 = vld [vmem:[%s307 + $0xfa0] sm:$0xf]
        %v1407 = vld [vmem:[%s307 + $0xfa4] sm:$0xf]
        %v1408 = vld [vmem:[%s307 + $0xfa8] sm:$0xf]
        %v1409 = vld [vmem:[%s307 + $0xfac] sm:$0xf]
        %v1410 = vld [vmem:[%s307 + $0xfb0] sm:$0xf]
        %v1411 = vld [vmem:[%s307 + $0xfb4] sm:$0xf]
        %v1412 = vld [vmem:[%s307 + $0xfb8] sm:$0xf]
        %v1413 = vld [vmem:[%s307 + $0xfbc] sm:$0xf]
        %v1414 = vld [vmem:[%s307 + $0xfc0] sm:$0xf]
        %v1415 = vld [vmem:[%s307 + $0xfc4] sm:$0xf]
        %v1416 = vld [vmem:[%s307 + $0xfc8] sm:$0xf]
        %v1417 = vld [vmem:[%s307 + $0xfcc] sm:$0xf]
        %v1418 = vld [vmem:[%s307 + $0xfd0] sm:$0xf]
        %v1419 = vld [vmem:[%s307 + $0xfd4] sm:$0xf]
        %v1420 = vld [vmem:[%s307 + $0xfd8] sm:$0xf]
        %v1421 = vld [vmem:[%s307 + $0xfdc] sm:$0xf]
        %v1422 = vld [vmem:[%s307 + $0xfe0] sm:$0xf]
        %v1423 = vld [vmem:[%s307 + $0xfe4] sm:$0xf]
        %v1424 = vld [vmem:[%s307 + $0xfe8] sm:$0xf]
        %v1425 = vld [vmem:[%s307 + $0xfec] sm:$0xf]
        %v1426 = vld [vmem:[%s307 + $0xff0] sm:$0xf]
        %v1427 = vld [vmem:[%s307 + $0xff4] sm:$0xf]
        %v1428 = vld [vmem:[%s307 + $0xff8] sm:$0xf]
        %v1429 = vld [vmem:[%s307 + $0xffc] sm:$0xf]
        %v1430 = vld [vmem:[%s307 + $0x1000] sm:$0xf]
        %v1431 = vld [vmem:[%s307 + $0x1004] sm:$0xf]
        %v1432 = vld [vmem:[%s307 + $0x1008] sm:$0xf]
        %v1433 = vld [vmem:[%s307 + $0x100c] sm:$0xf]
        %v1434 = vld [vmem:[%s307 + $0x1010] sm:$0xf]
        %v1435 = vld [vmem:[%s307 + $0x1014] sm:$0xf]
        %v1436 = vld [vmem:[%s307 + $0x1018] sm:$0xf]
        %v1437 = vld [vmem:[%s307 + $0x101c] sm:$0xf]
        %v1438 = vld [vmem:[%s307 + $0x1020] sm:$0xf]
        %v1439 = vld [vmem:[%s307 + $0x1024] sm:$0xf]
        %v1440 = vld [vmem:[%s307 + $0x1028] sm:$0xf]
        %v1441 = vld [vmem:[%s307 + $0x102c] sm:$0xf]
        %v1442 = vld [vmem:[%s307 + $0x1030] sm:$0xf]
        %v1443 = vld [vmem:[%s307 + $0x1034] sm:$0xf]
        %v1444 = vld [vmem:[%s307 + $0x1038] sm:$0xf]
        %v1445 = vld [vmem:[%s307 + $0x103c] sm:$0xf]
        %v1446 = vld [vmem:[%s307 + $0x1040] sm:$0xf]
        %v1447 = vld [vmem:[%s307 + $0x1044] sm:$0xf]
        %v1448 = vld [vmem:[%s307 + $0x1048] sm:$0xf]
        %v1449 = vld [vmem:[%s307 + $0x104c] sm:$0xf]
        %v1450 = vld [vmem:[%s307 + $0x1050] sm:$0xf]
        %v1451 = vld [vmem:[%s307 + $0x1054] sm:$0xf]
        %v1452 = vld [vmem:[%s307 + $0x1058] sm:$0xf]
        %v1453 = vld [vmem:[%s307 + $0x105c] sm:$0xf]
        %v1454 = vld [vmem:[%s307 + $0x1060] sm:$0xf]
        %v1455 = vld [vmem:[%s307 + $0x1064] sm:$0xf]
        %v1456 = vld [vmem:[%s307 + $0x1068] sm:$0xf]
        %v1457 = vld [vmem:[%s307 + $0x106c] sm:$0xf]
        %v1458 = vld [vmem:[%s307 + $0x1070] sm:$0xf]
        %v1459 = vld [vmem:[%s307 + $0x1074] sm:$0xf]
        %v1460 = vld [vmem:[%s307 + $0x1078] sm:$0xf]
        %v1461 = vld [vmem:[%s307 + $0x107c] sm:$0xf]
        %v1462 = vld [vmem:[%s307 + $0x1080] sm:$0xf]
        %v1463 = vld [vmem:[%s307 + $0x1084] sm:$0xf]
        %v1464 = vld [vmem:[%s307 + $0x1088] sm:$0xf]
        %v1465 = vld [vmem:[%s307 + $0x108c] sm:$0xf]
        %v1466 = vld [vmem:[%s307 + $0x1090] sm:$0xf]
        %v1467 = vld [vmem:[%s307 + $0x1094] sm:$0xf]
        %v1468 = vld [vmem:[%s307 + $0x1098] sm:$0xf]
        %v1469 = vld [vmem:[%s307 + $0x109c] sm:$0xf]
        %v1470 = vld [vmem:[%s307 + $0x10a0] sm:$0xf]
        %v1471 = vld [vmem:[%s307 + $0x10a4] sm:$0xf]
        %v1472 = vld [vmem:[%s307 + $0x10a8] sm:$0xf]
        %v1473 = vld [vmem:[%s307 + $0x10ac] sm:$0xf]
        %v1474 = vld [vmem:[%s307 + $0x10b0] sm:$0xf]
        %v1475 = vld [vmem:[%s307 + $0x10b4] sm:$0xf]
        %v1476 = vld [vmem:[%s307 + $0x10b8] sm:$0xf]
        %v1477 = vld [vmem:[%s307 + $0x10bc] sm:$0xf]
        %v1478 = vld [vmem:[%s307 + $0x10c0] sm:$0xf]
        %v1479 = vld [vmem:[%s307 + $0x10c4] sm:$0xf]
        %v1480 = vld [vmem:[%s307 + $0x10c8] sm:$0xf]
        %v1481 = vld [vmem:[%s307 + $0x10cc] sm:$0xf]
        %v1482 = vld [vmem:[%s307 + $0x10d0] sm:$0xf]
        %v1483 = vld [vmem:[%s307 + $0x10d4] sm:$0xf]
        %v1484 = vld [vmem:[%s307 + $0x10d8] sm:$0xf]
        %v1485 = vld [vmem:[%s307 + $0x10dc] sm:$0xf]
        %v1486 = vld [vmem:[%s307 + $0x10e0] sm:$0xf]
        %v1487 = vld [vmem:[%s307 + $0x10e4] sm:$0xf]
        %v1488 = vld [vmem:[%s307 + $0x10e8] sm:$0xf]
        %v1489 = vld [vmem:[%s307 + $0x10ec] sm:$0xf]
        %v1490 = vld [vmem:[%s307 + $0x10f0] sm:$0xf]
        %v1491 = vld [vmem:[%s307 + $0x10f4] sm:$0xf]
        %v1492 = vld [vmem:[%s307 + $0x10f8] sm:$0xf]
        %v1493 = vld [vmem:[%s307 + $0x10fc] sm:$0xf]
        %v1494 = vld [vmem:[%s307 + $0x1100] sm:$0xf]
        %v1495 = vld [vmem:[%s307 + $0x1104] sm:$0xf]
        %v1496 = vld [vmem:[%s307 + $0x1108] sm:$0xf]
        %v1497 = vld [vmem:[%s307 + $0x110c] sm:$0xf]
        %v1498 = vld [vmem:[%s307 + $0x1110] sm:$0xf]
        %v1499 = vld [vmem:[%s307 + $0x1114] sm:$0xf]
        %v1500 = vld [vmem:[%s307 + $0x1118] sm:$0xf]
        %v1501 = vld [vmem:[%s307 + $0x111c] sm:$0xf]
        %v1502 = vld [vmem:[%s307 + $0x1120] sm:$0xf]
        %v1503 = vld [vmem:[%s307 + $0x1124] sm:$0xf]
        %v1504 = vld [vmem:[%s307 + $0x1128] sm:$0xf]
        %v1505 = vld [vmem:[%s307 + $0x112c] sm:$0xf]
        %v1506 = vld [vmem:[%s307 + $0x1130] sm:$0xf]
        %v1507 = vld [vmem:[%s307 + $0x1134] sm:$0xf]
        %v1508 = vld [vmem:[%s307 + $0x1138] sm:$0xf]
        %v1509 = vld [vmem:[%s307 + $0x113c] sm:$0xf]
        %v1510 = vld [vmem:[%s307 + $0x1140] sm:$0xf]
        %v1511 = vld [vmem:[%s307 + $0x1144] sm:$0xf]
        %v1512 = vld [vmem:[%s307 + $0x1148] sm:$0xf]
        %v1513 = vld [vmem:[%s307 + $0x114c] sm:$0xf]
        %v1514 = vld [vmem:[%s307 + $0x1150] sm:$0xf]
        %v1515 = vld [vmem:[%s307 + $0x1154] sm:$0xf]
        %v1516 = vld [vmem:[%s307 + $0x1158] sm:$0xf]
        %v1517 = vld [vmem:[%s307 + $0x115c] sm:$0xf]
        %v1518 = vld [vmem:[%s307 + $0x1160] sm:$0xf]
        %v1519 = vld [vmem:[%s307 + $0x1164] sm:$0xf]
        %v1520 = vld [vmem:[%s307 + $0x1168] sm:$0xf]
        %v1521 = vld [vmem:[%s307 + $0x116c] sm:$0xf]
        %v1522 = vld [vmem:[%s307 + $0x1170] sm:$0xf]
        %v1523 = vld [vmem:[%s307 + $0x1174] sm:$0xf]
        %v1524 = vld [vmem:[%s307 + $0x1178] sm:$0xf]
        %v1525 = vld [vmem:[%s307 + $0x117c] sm:$0xf]
        %v1526 = vld [vmem:[%s307 + $0x1180] sm:$0xf]
        %v1527 = vld [vmem:[%s307 + $0x1184] sm:$0xf]
        %v1528 = vld [vmem:[%s307 + $0x1188] sm:$0xf]
        %v1529 = vld [vmem:[%s307 + $0x118c] sm:$0xf]
        %v1530 = vld [vmem:[%s307 + $0x1190] sm:$0xf]
        %v1531 = vld [vmem:[%s307 + $0x1194] sm:$0xf]
        %v1532 = vld [vmem:[%s307 + $0x1198] sm:$0xf]
        %v1533 = vld [vmem:[%s307 + $0x119c] sm:$0xf]
        %v1534 = vld [vmem:[%s307 + $0x11a0] sm:$0xf]
        %v1535 = vld [vmem:[%s307 + $0x11a4] sm:$0xf]
        %v1536 = vld [vmem:[%s307 + $0x11a8] sm:$0xf]
        %v1537 = vld [vmem:[%s307 + $0x11ac] sm:$0xf]
        %v1538 = vld [vmem:[%s307 + $0x11b0] sm:$0xf]
        %v1539 = vld [vmem:[%s307 + $0x11b4] sm:$0xf]
        %v1540 = vld [vmem:[%s307 + $0x11b8] sm:$0xf]
        %v1541 = vld [vmem:[%s307 + $0x11bc] sm:$0xf]
        %v1542 = vld [vmem:[%s307 + $0x11c0] sm:$0xf]
        %v1543 = vld [vmem:[%s307 + $0x11c4] sm:$0xf]
        %v1544 = vld [vmem:[%s307 + $0x11c8] sm:$0xf]
        %v1545 = vld [vmem:[%s307 + $0x11cc] sm:$0xf]
        %v1546 = vld [vmem:[%s307 + $0x11d0] sm:$0xf]
        %v1547 = vld [vmem:[%s307 + $0x11d4] sm:$0xf]
        %v1548 = vld [vmem:[%s307 + $0x11d8] sm:$0xf]
        %v1549 = vld [vmem:[%s307 + $0x11dc] sm:$0xf]
        %v1550 = vld [vmem:[%s307 + $0x11e0] sm:$0xf]
        %v1551 = vld [vmem:[%s307 + $0x11e4] sm:$0xf]
        %v1552 = vld [vmem:[%s307 + $0x11e8] sm:$0xf]
        %v1553 = vld [vmem:[%s307 + $0x11ec] sm:$0xf]
        %v1554 = vld [vmem:[%s307 + $0x11f0] sm:$0xf]
        %v1555 = vld [vmem:[%s307 + $0x11f4] sm:$0xf]
        %v1556 = vld [vmem:[%s307 + $0x11f8] sm:$0xf]
        %v1557 = vld [vmem:[%s307 + $0x11fc] sm:$0xf]
        %v1558 = vld [vmem:[%s315] sm:$0x1]
        %v1560 = vlaneseq
        %v1561 = vshrl.u32 %v1560, 7
        %v1562 = vsub.s32 0, %v1561
        %v1563 = vrot.slane %v1558, %v1562
        %v1601 = vunpack.c.l.b16 %v370
        %v1602 = vunpack.c.h.b16 %v370
        %v1603 = vunpack.c.l.b16 %v371
        %v1604 = vunpack.c.h.b16 %v371
        %v1605 = vunpack.c.l.b16 %v372
        %v1606 = vunpack.c.h.b16 %v372
        %v1607 = vunpack.c.l.b16 %v373
        %v1608 = vunpack.c.h.b16 %v373
        %v1609 = vunpack.c.l.b16 %v374
        %v1610 = vunpack.c.h.b16 %v374
        %v1611 = vunpack.c.l.b16 %v375
        %v1612 = vunpack.c.h.b16 %v375
        %v1613 = vunpack.c.l.b16 %v376
        %v1614 = vunpack.c.h.b16 %v376
        %v1615 = vunpack.c.l.b16 %v377
        %v1616 = vunpack.c.h.b16 %v377
        %v1617 = vunpack.c.l.b16 %v378
        %v1618 = vunpack.c.h.b16 %v378
        %v1619 = vunpack.c.l.b16 %v379
        %v1620 = vunpack.c.h.b16 %v379
        %v1621 = vunpack.c.l.b16 %v380
        %v1622 = vunpack.c.h.b16 %v380
        %v1623 = vunpack.c.l.b16 %v381
        %v1624 = vunpack.c.h.b16 %v381
        %v1625 = vunpack.c.l.b16 %v382
        %v1626 = vunpack.c.h.b16 %v382
        %v1627 = vunpack.c.l.b16 %v383
        %v1628 = vunpack.c.h.b16 %v383
        %v1629 = vunpack.c.l.b16 %v384
        %v1630 = vunpack.c.h.b16 %v384
        %v1631 = vunpack.c.l.b16 %v385
        %v1632 = vunpack.c.h.b16 %v385
        %v1633 = vunpack.c.l.b16 %v386
        %v1634 = vunpack.c.h.b16 %v386
        %v1635 = vunpack.c.l.b16 %v387
        %v1636 = vunpack.c.h.b16 %v387
        %v1637 = vunpack.c.l.b16 %v388
        %v1638 = vunpack.c.h.b16 %v388
        %v1639 = vunpack.c.l.b16 %v389
        %v1640 = vunpack.c.h.b16 %v389
        %v1641 = vunpack.c.l.b16 %v390
        %v1642 = vunpack.c.h.b16 %v390
        %v1643 = vunpack.c.l.b16 %v391
        %v1644 = vunpack.c.h.b16 %v391
        %v1645 = vunpack.c.l.b16 %v392
        %v1646 = vunpack.c.h.b16 %v392
        %v1647 = vunpack.c.l.b16 %v393
        %v1648 = vunpack.c.h.b16 %v393
        %v1649 = vunpack.c.l.b16 %v394
        %v1650 = vunpack.c.h.b16 %v394
        %v1651 = vunpack.c.l.b16 %v395
        %v1652 = vunpack.c.h.b16 %v395
        %v1653 = vunpack.c.l.b16 %v396
        %v1654 = vunpack.c.h.b16 %v396
        %v1655 = vunpack.c.l.b16 %v397
        %v1656 = vunpack.c.h.b16 %v397
        %v1657 = vunpack.c.l.b16 %v398
        %v1658 = vunpack.c.h.b16 %v398
        %v1659 = vunpack.c.l.b16 %v399
        %v1660 = vunpack.c.h.b16 %v399
        %v1661 = vunpack.c.l.b16 %v400
        %v1662 = vunpack.c.h.b16 %v400
        %v1663 = vunpack.c.l.b16 %v401
        %v1664 = vunpack.c.h.b16 %v401
        %v1665 = vunpack.c.l.b16 %v402
        %v1666 = vunpack.c.h.b16 %v402
        %v1667 = vunpack.c.l.b16 %v403
        %v1668 = vunpack.c.h.b16 %v403
        %v1669 = vunpack.c.l.b16 %v404
        %v1670 = vunpack.c.h.b16 %v404
        %v1671 = vunpack.c.l.b16 %v405
        %v1672 = vunpack.c.h.b16 %v405
        %v1673 = vpack.c.b16 %v1601, %v1601
        %v1674 = vpack.c.b16 %v1602, %v1602
        %v1675 = vpack.c.b16 %v1603, %v1603
        %v1676 = vpack.c.b16 %v1604, %v1604
        %v1677 = vpack.c.b16 %v1605, %v1605
        %v1678 = vpack.c.b16 %v1606, %v1606
        %v1679 = vpack.c.b16 %v1607, %v1607
        %v1680 = vpack.c.b16 %v1608, %v1608
        %v1681 = vpack.c.b16 %v1609, %v1609
        %v1682 = vpack.c.b16 %v1610, %v1610
        %v1683 = vpack.c.b16 %v1611, %v1611
        %v1684 = vpack.c.b16 %v1612, %v1612
        %v1685 = vpack.c.b16 %v1613, %v1613
        %v1686 = vpack.c.b16 %v1614, %v1614
        %v1687 = vpack.c.b16 %v1615, %v1615
        %v1688 = vpack.c.b16 %v1616, %v1616
        %v1689 = vpack.c.b16 %v1617, %v1617
        %v1690 = vpack.c.b16 %v1618, %v1618
        %v1691 = vpack.c.b16 %v1619, %v1619
        %v1692 = vpack.c.b16 %v1620, %v1620
        %v1693 = vpack.c.b16 %v1621, %v1621
        %v1694 = vpack.c.b16 %v1622, %v1622
        %v1695 = vpack.c.b16 %v1623, %v1623
        %v1696 = vpack.c.b16 %v1624, %v1624
        %v1697 = vpack.c.b16 %v1625, %v1625
        %v1698 = vpack.c.b16 %v1626, %v1626
        %v1699 = vpack.c.b16 %v1627, %v1627
        %v1700 = vpack.c.b16 %v1628, %v1628
        %v1701 = vpack.c.b16 %v1629, %v1629
        %v1702 = vpack.c.b16 %v1630, %v1630
        %v1703 = vpack.c.b16 %v1631, %v1631
        %v1704 = vpack.c.b16 %v1632, %v1632
        %v1705 = vpack.c.b16 %v1633, %v1633
        %v1706 = vpack.c.b16 %v1634, %v1634
        %v1707 = vpack.c.b16 %v1635, %v1635
        %v1708 = vpack.c.b16 %v1636, %v1636
        %v1709 = vpack.c.b16 %v1637, %v1637
        %v1710 = vpack.c.b16 %v1638, %v1638
        %v1711 = vpack.c.b16 %v1639, %v1639
        %v1712 = vpack.c.b16 %v1640, %v1640
        %v1713 = vpack.c.b16 %v1641, %v1641
        %v1714 = vpack.c.b16 %v1642, %v1642
        %v1715 = vpack.c.b16 %v1643, %v1643
        %v1716 = vpack.c.b16 %v1644, %v1644
        %v1717 = vpack.c.b16 %v1645, %v1645
        %v1718 = vpack.c.b16 %v1646, %v1646
        %v1719 = vpack.c.b16 %v1647, %v1647
        %v1720 = vpack.c.b16 %v1648, %v1648
        %v1721 = vpack.c.b16 %v1649, %v1649
        %v1722 = vpack.c.b16 %v1650, %v1650
        %v1723 = vpack.c.b16 %v1651, %v1651
        %v1724 = vpack.c.b16 %v1652, %v1652
        %v1725 = vpack.c.b16 %v1653, %v1653
        %v1726 = vpack.c.b16 %v1654, %v1654
        %v1727 = vpack.c.b16 %v1655, %v1655
        %v1728 = vpack.c.b16 %v1656, %v1656
        %v1729 = vpack.c.b16 %v1657, %v1657
        %v1730 = vpack.c.b16 %v1658, %v1658
        %v1731 = vpack.c.b16 %v1659, %v1659
        %v1732 = vpack.c.b16 %v1660, %v1660
        %v1733 = vpack.c.b16 %v1661, %v1661
        %v1734 = vpack.c.b16 %v1662, %v1662
        %v1735 = vpack.c.b16 %v1663, %v1663
        %v1736 = vpack.c.b16 %v1664, %v1664
        %v1737 = vpack.c.b16 %v1665, %v1665
        %v1738 = vpack.c.b16 %v1666, %v1666
        %v1739 = vpack.c.b16 %v1667, %v1667
        %v1740 = vpack.c.b16 %v1668, %v1668
        %v1741 = vpack.c.b16 %v1669, %v1669
        %v1742 = vpack.c.b16 %v1670, %v1670
        %v1743 = vpack.c.b16 %v1671, %v1671
        %v1744 = vpack.c.b16 %v1672, %v1672
        %v2969 = vunpack.c.l.b16 %v406
        %v2970 = vunpack.c.l.b16 %v407
        %v2971 = vunpack.c.l.b16 %v408
        %v2972 = vunpack.c.l.b16 %v409
        %v2973 = vunpack.c.l.b16 %v410
        %v2974 = vunpack.c.l.b16 %v411
        %v2975 = vunpack.c.l.b16 %v412
        %v2976 = vunpack.c.l.b16 %v413
        %v2977 = vunpack.c.l.b16 %v414
        %v2978 = vunpack.c.l.b16 %v415
        %v2979 = vunpack.c.l.b16 %v416
        %v2980 = vunpack.c.l.b16 %v417
        %v2981 = vunpack.c.l.b16 %v418
        %v2982 = vunpack.c.l.b16 %v419
        %v2983 = vunpack.c.l.b16 %v420
        %v2984 = vunpack.c.l.b16 %v421
        %v2985 = vunpack.c.l.b16 %v422
        %v2986 = vunpack.c.l.b16 %v423
        %v2987 = vunpack.c.l.b16 %v424
        %v2988 = vunpack.c.l.b16 %v425
        %v2989 = vunpack.c.l.b16 %v426
        %v2990 = vunpack.c.l.b16 %v427
        %v2991 = vunpack.c.l.b16 %v428
        %v2992 = vunpack.c.l.b16 %v429
        %v2993 = vunpack.c.l.b16 %v430
        %v2994 = vunpack.c.l.b16 %v431
        %v2995 = vunpack.c.l.b16 %v432
        %v2996 = vunpack.c.l.b16 %v433
        %v2997 = vunpack.c.l.b16 %v434
        %v2998 = vunpack.c.l.b16 %v435
        %v2999 = vunpack.c.l.b16 %v436
        %v3000 = vunpack.c.l.b16 %v437
        %v3001 = vunpack.c.l.b16 %v438
        %v3002 = vunpack.c.l.b16 %v439
        %v3003 = vunpack.c.l.b16 %v440
        %v3004 = vunpack.c.l.b16 %v441
        %v3005 = vunpack.c.l.b16 %v442
        %v3006 = vunpack.c.l.b16 %v443
        %v3007 = vunpack.c.l.b16 %v444
        %v3008 = vunpack.c.l.b16 %v445
        %v3009 = vunpack.c.l.b16 %v446
        %v3010 = vunpack.c.l.b16 %v447
        %v3011 = vunpack.c.l.b16 %v448
        %v3012 = vunpack.c.l.b16 %v449
        %v3013 = vunpack.c.l.b16 %v450
        %v3014 = vunpack.c.l.b16 %v451
        %v3015 = vunpack.c.l.b16 %v452
        %v3016 = vunpack.c.l.b16 %v453
        %v3017 = vunpack.c.l.b16 %v454
        %v3018 = vunpack.c.l.b16 %v455
        %v3019 = vunpack.c.l.b16 %v456
        %v3020 = vunpack.c.l.b16 %v457
        %v3021 = vunpack.c.l.b16 %v458
        %v3022 = vunpack.c.l.b16 %v459
        %v3023 = vunpack.c.l.b16 %v460
        %v3024 = vunpack.c.l.b16 %v461
        %v3025 = vunpack.c.l.b16 %v462
        %v3026 = vunpack.c.l.b16 %v463
        %v3027 = vunpack.c.l.b16 %v464
        %v3028 = vunpack.c.l.b16 %v465
        %v3029 = vunpack.c.l.b16 %v466
        %v3030 = vunpack.c.l.b16 %v467
        %v3031 = vunpack.c.l.b16 %v468
        %v3032 = vunpack.c.l.b16 %v469
        %v3033 = vunpack.c.l.b16 %v470
        %v3034 = vunpack.c.l.b16 %v471
        %v3035 = vunpack.c.l.b16 %v472
        %v3036 = vunpack.c.l.b16 %v473
        %v3037 = vunpack.c.l.b16 %v474
        %v3038 = vunpack.c.l.b16 %v475
        %v3039 = vunpack.c.l.b16 %v476
        %v3040 = vunpack.c.l.b16 %v477
        %v3041 = vunpack.c.l.b16 %v478
        %v3042 = vunpack.c.l.b16 %v479
        %v3043 = vunpack.c.l.b16 %v480
        %v3044 = vunpack.c.l.b16 %v481
        %v3045 = vunpack.c.l.b16 %v482
        %v3046 = vunpack.c.l.b16 %v483
        %v3047 = vunpack.c.l.b16 %v484
        %v3048 = vunpack.c.l.b16 %v485
        %v3049 = vunpack.c.l.b16 %v486
        %v3050 = vunpack.c.l.b16 %v487
        %v3051 = vunpack.c.l.b16 %v488
        %v3052 = vunpack.c.l.b16 %v489
        %v3053 = vunpack.c.l.b16 %v490
        %v3054 = vunpack.c.l.b16 %v491
        %v3055 = vunpack.c.l.b16 %v492
        %v3056 = vunpack.c.l.b16 %v493
        %v3057 = vunpack.c.l.b16 %v494
        %v3058 = vunpack.c.l.b16 %v495
        %v3059 = vunpack.c.l.b16 %v496
        %v3060 = vunpack.c.l.b16 %v497
        %v3061 = vunpack.c.l.b16 %v498
        %v3062 = vunpack.c.l.b16 %v499
        %v3063 = vunpack.c.l.b16 %v500
        %v3064 = vunpack.c.l.b16 %v501
        %v3065 = vunpack.c.l.b16 %v502
        %v3066 = vunpack.c.l.b16 %v503
        %v3067 = vunpack.c.l.b16 %v504
        %v3068 = vunpack.c.l.b16 %v505
        %v3069 = vunpack.c.l.b16 %v506
        %v3070 = vunpack.c.l.b16 %v507
        %v3071 = vunpack.c.l.b16 %v508
        %v3072 = vunpack.c.l.b16 %v509
        %v3073 = vunpack.c.l.b16 %v510
        %v3074 = vunpack.c.l.b16 %v511
        %v3075 = vunpack.c.l.b16 %v512
        %v3076 = vunpack.c.l.b16 %v513
        %v3077 = vunpack.c.l.b16 %v514
        %v3078 = vunpack.c.l.b16 %v515
        %v3079 = vunpack.c.l.b16 %v516
        %v3080 = vunpack.c.l.b16 %v517
        %v3081 = vunpack.c.l.b16 %v518
        %v3082 = vunpack.c.l.b16 %v519
        %v3083 = vunpack.c.l.b16 %v520
        %v3084 = vunpack.c.l.b16 %v521
        %v3085 = vunpack.c.l.b16 %v522
        %v3086 = vunpack.c.l.b16 %v523
        %v3087 = vunpack.c.l.b16 %v524
        %v3088 = vunpack.c.l.b16 %v525
        %v3089 = vunpack.c.l.b16 %v526
        %v3090 = vunpack.c.l.b16 %v527
        %v3091 = vunpack.c.l.b16 %v528
        %v3092 = vunpack.c.l.b16 %v529
        %v3093 = vunpack.c.l.b16 %v530
        %v3094 = vunpack.c.l.b16 %v531
        %v3095 = vunpack.c.l.b16 %v532
        %v3096 = vunpack.c.l.b16 %v533
        %v3097 = vunpack.c.l.b16 %v534
        %v3098 = vunpack.c.l.b16 %v535
        %v3099 = vunpack.c.l.b16 %v536
        %v3100 = vunpack.c.l.b16 %v537
        %v3101 = vunpack.c.l.b16 %v538
        %v3102 = vunpack.c.l.b16 %v539
        %v3103 = vunpack.c.l.b16 %v540
        %v3104 = vunpack.c.l.b16 %v541
        %v3105 = vunpack.c.l.b16 %v542
        %v3106 = vunpack.c.l.b16 %v543
        %v3107 = vunpack.c.l.b16 %v544
        %v3108 = vunpack.c.l.b16 %v545
        %v3109 = vunpack.c.l.b16 %v546
        %v3110 = vunpack.c.l.b16 %v547
        %v3111 = vunpack.c.l.b16 %v548
        %v3112 = vunpack.c.l.b16 %v549
        %v3113 = vunpack.c.l.b16 %v550
        %v3114 = vunpack.c.l.b16 %v551
        %v3115 = vunpack.c.l.b16 %v552
        %v3116 = vunpack.c.l.b16 %v553
        %v3117 = vunpack.c.l.b16 %v554
        %v3118 = vunpack.c.l.b16 %v555
        %v3119 = vunpack.c.l.b16 %v556
        %v3120 = vunpack.c.l.b16 %v557
        %v3121 = vunpack.c.l.b16 %v558
        %v3122 = vunpack.c.l.b16 %v559
        %v3123 = vunpack.c.l.b16 %v560
        %v3124 = vunpack.c.l.b16 %v561
        %v3125 = vunpack.c.l.b16 %v562
        %v3126 = vunpack.c.l.b16 %v563
        %v3127 = vunpack.c.l.b16 %v564
        %v3128 = vunpack.c.l.b16 %v565
        %v3129 = vunpack.c.l.b16 %v566
        %v3130 = vunpack.c.l.b16 %v567
        %v3131 = vunpack.c.l.b16 %v568
        %v3132 = vunpack.c.l.b16 %v569
        %v3133 = vunpack.c.l.b16 %v570
        %v3134 = vunpack.c.l.b16 %v571
        %v3135 = vunpack.c.l.b16 %v572
        %v3136 = vunpack.c.l.b16 %v573
        %v3137 = vunpack.c.l.b16 %v574
        %v3138 = vunpack.c.l.b16 %v575
        %v3139 = vunpack.c.l.b16 %v576
        %v3140 = vunpack.c.l.b16 %v577
        %v3141 = vunpack.c.l.b16 %v578
        %v3142 = vunpack.c.l.b16 %v579
        %v3143 = vunpack.c.l.b16 %v580
        %v3144 = vunpack.c.l.b16 %v581
        %v3145 = vunpack.c.l.b16 %v582
        %v3146 = vunpack.c.l.b16 %v583
        %v3147 = vunpack.c.l.b16 %v584
        %v3148 = vunpack.c.l.b16 %v585
        %v3149 = vunpack.c.l.b16 %v586
        %v3150 = vunpack.c.l.b16 %v587
        %v3151 = vunpack.c.l.b16 %v588
        %v3152 = vunpack.c.l.b16 %v589
        %v3153 = vunpack.c.l.b16 %v590
        %v3154 = vunpack.c.l.b16 %v591
        %v3155 = vunpack.c.l.b16 %v592
        %v3156 = vunpack.c.l.b16 %v593
        %v3157 = vunpack.c.l.b16 %v594
        %v3158 = vunpack.c.l.b16 %v595
        %v3159 = vunpack.c.l.b16 %v596
        %v3160 = vunpack.c.l.b16 %v597
        %v3161 = vunpack.c.l.b16 %v598
        %v3162 = vunpack.c.l.b16 %v599
        %v3163 = vunpack.c.l.b16 %v600
        %v3164 = vunpack.c.l.b16 %v601
        %v3165 = vunpack.c.l.b16 %v602
        %v3166 = vunpack.c.l.b16 %v603
        %v3167 = vunpack.c.l.b16 %v604
        %v3168 = vunpack.c.l.b16 %v605
        %v3169 = vunpack.c.l.b16 %v606
        %v3170 = vunpack.c.l.b16 %v607
        %v3171 = vunpack.c.l.b16 %v608
        %v3172 = vunpack.c.l.b16 %v609
        %v3173 = vunpack.c.l.b16 %v610
        %v3174 = vunpack.c.l.b16 %v611
        %v3175 = vunpack.c.l.b16 %v612
        %v3176 = vunpack.c.l.b16 %v613
        %v3177 = vunpack.c.l.b16 %v614
        %v3178 = vunpack.c.l.b16 %v615
        %v3179 = vunpack.c.l.b16 %v616
        %v3180 = vunpack.c.l.b16 %v617
        %v3181 = vunpack.c.l.b16 %v618
        %v3182 = vunpack.c.l.b16 %v619
        %v3183 = vunpack.c.l.b16 %v620
        %v3184 = vunpack.c.l.b16 %v621
        %v3185 = vunpack.c.l.b16 %v622
        %v3186 = vunpack.c.l.b16 %v623
        %v3187 = vunpack.c.l.b16 %v624
        %v3188 = vunpack.c.l.b16 %v625
        %v3189 = vunpack.c.l.b16 %v626
        %v3190 = vunpack.c.l.b16 %v627
        %v3191 = vunpack.c.l.b16 %v628
        %v3192 = vunpack.c.l.b16 %v629
        %v3193 = vunpack.c.l.b16 %v630
        %v3194 = vunpack.c.l.b16 %v631
        %v3195 = vunpack.c.l.b16 %v632
        %v3196 = vunpack.c.l.b16 %v633
        %v3197 = vunpack.c.l.b16 %v634
        %v3198 = vunpack.c.l.b16 %v635
        %v3199 = vunpack.c.l.b16 %v636
        %v3200 = vunpack.c.l.b16 %v637
        %v3201 = vunpack.c.l.b16 %v638
        %v3202 = vunpack.c.l.b16 %v639
        %v3203 = vunpack.c.l.b16 %v640
        %v3204 = vunpack.c.l.b16 %v641
        %v3205 = vunpack.c.l.b16 %v642
        %v3206 = vunpack.c.l.b16 %v643
        %v3207 = vunpack.c.l.b16 %v644
        %v3208 = vunpack.c.l.b16 %v645
        %v3209 = vunpack.c.l.b16 %v646
        %v3210 = vunpack.c.l.b16 %v647
        %v3211 = vunpack.c.l.b16 %v648
        %v3212 = vunpack.c.l.b16 %v649
        %v3213 = vunpack.c.l.b16 %v650
        %v3214 = vunpack.c.l.b16 %v651
        %v3215 = vunpack.c.l.b16 %v652
        %v3216 = vunpack.c.l.b16 %v653
        %v3217 = vunpack.c.l.b16 %v654
        %v3218 = vunpack.c.l.b16 %v655
        %v3219 = vunpack.c.l.b16 %v656
        %v3220 = vunpack.c.l.b16 %v657
        %v3221 = vunpack.c.l.b16 %v658
        %v3222 = vunpack.c.l.b16 %v659
        %v3223 = vunpack.c.l.b16 %v660
        %v3224 = vunpack.c.l.b16 %v661
        %v3225 = vunpack.c.l.b16 %v662
        %v3226 = vunpack.c.l.b16 %v663
        %v3227 = vunpack.c.l.b16 %v664
        %v3228 = vunpack.c.l.b16 %v665
        %v3229 = vunpack.c.l.b16 %v666
        %v3230 = vunpack.c.l.b16 %v667
        %v3231 = vunpack.c.l.b16 %v668
        %v3232 = vunpack.c.l.b16 %v669
        %v3233 = vunpack.c.l.b16 %v670
        %v3234 = vunpack.c.l.b16 %v671
        %v3235 = vunpack.c.l.b16 %v672
        %v3236 = vunpack.c.l.b16 %v673
        %v3237 = vunpack.c.l.b16 %v674
        %v3238 = vunpack.c.l.b16 %v675
        %v3239 = vunpack.c.l.b16 %v676
        %v3240 = vunpack.c.l.b16 %v677
        %v3241 = vunpack.c.l.b16 %v678
        %v3242 = vunpack.c.l.b16 %v679
        %v3243 = vunpack.c.l.b16 %v680
        %v3244 = vunpack.c.l.b16 %v681
        %v3245 = vunpack.c.l.b16 %v682
        %v3246 = vunpack.c.l.b16 %v683
        %v3247 = vunpack.c.l.b16 %v684
        %v3248 = vunpack.c.l.b16 %v685
        %v3249 = vunpack.c.l.b16 %v686
        %v3250 = vunpack.c.l.b16 %v687
        %v3251 = vunpack.c.l.b16 %v688
        %v3252 = vunpack.c.l.b16 %v689
        %v3253 = vunpack.c.l.b16 %v690
        %v3254 = vunpack.c.l.b16 %v691
        %v3255 = vunpack.c.l.b16 %v692
        %v3256 = vunpack.c.l.b16 %v693
        %v3257 = vunpack.c.l.b16 %v694
        %v3258 = vunpack.c.l.b16 %v695
        %v3259 = vunpack.c.l.b16 %v696
        %v3260 = vunpack.c.l.b16 %v697
        %v3261 = vunpack.c.l.b16 %v698
        %v3262 = vunpack.c.l.b16 %v699
        %v3263 = vunpack.c.l.b16 %v700
        %v3264 = vunpack.c.l.b16 %v701
        %v3265 = vunpack.c.l.b16 %v702
        %v3266 = vunpack.c.l.b16 %v703
        %v3267 = vunpack.c.l.b16 %v704
        %v3268 = vunpack.c.l.b16 %v705
        %v3269 = vunpack.c.l.b16 %v706
        %v3270 = vunpack.c.l.b16 %v707
        %v3271 = vunpack.c.l.b16 %v708
        %v3272 = vunpack.c.l.b16 %v709
        %v3273 = vunpack.c.l.b16 %v710
        %v3274 = vunpack.c.l.b16 %v711
        %v3275 = vunpack.c.l.b16 %v712
        %v3276 = vunpack.c.l.b16 %v713
        %v3277 = vunpack.c.l.b16 %v714
        %v3278 = vunpack.c.l.b16 %v715
        %v3279 = vunpack.c.l.b16 %v716
        %v3280 = vunpack.c.l.b16 %v717
        %v3281 = vunpack.c.l.b16 %v718
        %v3282 = vunpack.c.l.b16 %v719
        %v3283 = vunpack.c.l.b16 %v720
        %v3284 = vunpack.c.l.b16 %v721
        %v3285 = vunpack.c.l.b16 %v722
        %v3286 = vunpack.c.l.b16 %v723
        %v3287 = vunpack.c.l.b16 %v724
        %v3288 = vunpack.c.l.b16 %v725
        %v3289 = vunpack.c.l.b16 %v726
        %v3290 = vunpack.c.l.b16 %v727
        %v3291 = vunpack.c.l.b16 %v728
        %v3292 = vunpack.c.l.b16 %v729
        %v3293 = vunpack.c.l.b16 %v730
        %v3294 = vunpack.c.l.b16 %v731
        %v3295 = vunpack.c.l.b16 %v732
        %v3296 = vunpack.c.l.b16 %v733
        %v3297 = vunpack.c.l.b16 %v734
        %v3298 = vunpack.c.l.b16 %v735
        %v3299 = vunpack.c.l.b16 %v736
        %v3300 = vunpack.c.l.b16 %v737
        %v3301 = vunpack.c.l.b16 %v738
        %v3302 = vunpack.c.l.b16 %v739
        %v3303 = vunpack.c.l.b16 %v740
        %v3304 = vunpack.c.l.b16 %v741
        %v3305 = vunpack.c.l.b16 %v742
        %v3306 = vunpack.c.l.b16 %v743
        %v3307 = vunpack.c.l.b16 %v744
        %v3308 = vunpack.c.l.b16 %v745
        %v3309 = vunpack.c.l.b16 %v746
        %v3310 = vunpack.c.l.b16 %v747
        %v3311 = vunpack.c.l.b16 %v748
        %v3312 = vunpack.c.l.b16 %v749
        %v3313 = vunpack.c.l.b16 %v750
        %v3314 = vunpack.c.l.b16 %v751
        %v3315 = vunpack.c.l.b16 %v752
        %v3316 = vunpack.c.l.b16 %v753
        %v3317 = vunpack.c.l.b16 %v754
        %v3318 = vunpack.c.l.b16 %v755
        %v3319 = vunpack.c.l.b16 %v756
        %v3320 = vunpack.c.l.b16 %v757
        %v3321 = vunpack.c.l.b16 %v758
        %v3322 = vunpack.c.l.b16 %v759
        %v3323 = vunpack.c.l.b16 %v760
        %v3324 = vunpack.c.l.b16 %v761
        %v3325 = vunpack.c.l.b16 %v762
        %v3326 = vunpack.c.l.b16 %v763
        %v3327 = vunpack.c.l.b16 %v764
        %v3328 = vunpack.c.l.b16 %v765
        %v3329 = vunpack.c.l.b16 %v766
        %v3330 = vunpack.c.l.b16 %v767
        %v3331 = vunpack.c.l.b16 %v768
        %v3332 = vunpack.c.l.b16 %v769
        %v3333 = vunpack.c.l.b16 %v770
        %v3334 = vunpack.c.l.b16 %v771
        %v3335 = vunpack.c.l.b16 %v772
        %v3336 = vunpack.c.l.b16 %v773
        %v3337 = vunpack.c.l.b16 %v774
        %v3338 = vunpack.c.l.b16 %v775
        %v3339 = vunpack.c.l.b16 %v776
        %v3340 = vunpack.c.l.b16 %v777
        %v3341 = vunpack.c.l.b16 %v778
        %v3342 = vunpack.c.l.b16 %v779
        %v3343 = vunpack.c.l.b16 %v780
        %v3344 = vunpack.c.l.b16 %v781
        %v3345 = vunpack.c.l.b16 %v782
        %v3346 = vunpack.c.l.b16 %v783
        %v3347 = vunpack.c.l.b16 %v784
        %v3348 = vunpack.c.l.b16 %v785
        %v3349 = vunpack.c.l.b16 %v786
        %v3350 = vunpack.c.l.b16 %v787
        %v3351 = vunpack.c.l.b16 %v788
        %v3352 = vunpack.c.l.b16 %v789
        %v3353 = vunpack.c.l.b16 %v790
        %v3354 = vunpack.c.l.b16 %v791
        %v3355 = vunpack.c.l.b16 %v792
        %v3356 = vunpack.c.l.b16 %v793
        %v3357 = vunpack.c.l.b16 %v794
        %v3358 = vunpack.c.l.b16 %v795
        %v3359 = vunpack.c.l.b16 %v796
        %v3360 = vunpack.c.l.b16 %v797
        %v3361 = vunpack.c.l.b16 %v798
        %v3362 = vunpack.c.l.b16 %v799
        %v3363 = vunpack.c.l.b16 %v800
        %v3364 = vunpack.c.l.b16 %v801
        %v3365 = vunpack.c.l.b16 %v802
        %v3366 = vunpack.c.l.b16 %v803
        %v3367 = vunpack.c.l.b16 %v804
        %v3368 = vunpack.c.l.b16 %v805
        %v3369 = vunpack.c.l.b16 %v806
        %v3370 = vunpack.c.l.b16 %v807
        %v3371 = vunpack.c.l.b16 %v808
        %v3372 = vunpack.c.l.b16 %v809
        %v3373 = vunpack.c.l.b16 %v810
        %v3374 = vunpack.c.l.b16 %v811
        %v3375 = vunpack.c.l.b16 %v812
        %v3376 = vunpack.c.l.b16 %v813
        %v3377 = vunpack.c.l.b16 %v814
        %v3378 = vunpack.c.l.b16 %v815
        %v3379 = vunpack.c.l.b16 %v816
        %v3380 = vunpack.c.l.b16 %v817
        %v3381 = vunpack.c.l.b16 %v818
        %v3382 = vunpack.c.l.b16 %v819
        %v3383 = vunpack.c.l.b16 %v820
        %v3384 = vunpack.c.l.b16 %v821
        %v3385 = vunpack.c.l.b16 %v822
        %v3386 = vunpack.c.l.b16 %v823
        %v3387 = vunpack.c.l.b16 %v824
        %v3388 = vunpack.c.l.b16 %v825
        %v3389 = vunpack.c.l.b16 %v826
        %v3390 = vunpack.c.l.b16 %v827
        %v3391 = vunpack.c.l.b16 %v828
        %v3392 = vunpack.c.l.b16 %v829
        %v3393 = vunpack.c.l.b16 %v830
        %v3394 = vunpack.c.l.b16 %v831
        %v3395 = vunpack.c.l.b16 %v832
        %v3396 = vunpack.c.l.b16 %v833
        %v3397 = vunpack.c.l.b16 %v834
        %v3398 = vunpack.c.l.b16 %v835
        %v3399 = vunpack.c.l.b16 %v836
        %v3400 = vunpack.c.l.b16 %v837
        %v3401 = vunpack.c.l.b16 %v838
        %v3402 = vunpack.c.l.b16 %v839
        %v3403 = vunpack.c.l.b16 %v840
        %v3404 = vunpack.c.l.b16 %v841
        %v3405 = vunpack.c.l.b16 %v842
        %v3406 = vunpack.c.l.b16 %v843
        %v3407 = vunpack.c.l.b16 %v844
        %v3408 = vunpack.c.l.b16 %v845
        %v3409 = vunpack.c.l.b16 %v846
        %v3410 = vunpack.c.l.b16 %v847
        %v3411 = vunpack.c.l.b16 %v848
        %v3412 = vunpack.c.l.b16 %v849
        %v3413 = vunpack.c.l.b16 %v850
        %v3414 = vunpack.c.l.b16 %v851
        %v3415 = vunpack.c.l.b16 %v852
        %v3416 = vunpack.c.l.b16 %v853
        %v3417 = vunpack.c.l.b16 %v854
        %v3418 = vunpack.c.l.b16 %v855
        %v3419 = vunpack.c.l.b16 %v856
        %v3420 = vunpack.c.l.b16 %v857
        %v3421 = vunpack.c.l.b16 %v858
        %v3422 = vunpack.c.l.b16 %v859
        %v3423 = vunpack.c.l.b16 %v860
        %v3424 = vunpack.c.l.b16 %v861
        %v3425 = vunpack.c.l.b16 %v862
        %v3426 = vunpack.c.l.b16 %v863
        %v3427 = vunpack.c.l.b16 %v864
        %v3428 = vunpack.c.l.b16 %v865
        %v3429 = vunpack.c.l.b16 %v866
        %v3430 = vunpack.c.l.b16 %v867
        %v3431 = vunpack.c.l.b16 %v868
        %v3432 = vunpack.c.l.b16 %v869
        %v3433 = vunpack.c.l.b16 %v870
        %v3434 = vunpack.c.l.b16 %v871
        %v3435 = vunpack.c.l.b16 %v872
        %v3436 = vunpack.c.l.b16 %v873
        %v3437 = vunpack.c.l.b16 %v874
        %v3438 = vunpack.c.l.b16 %v875
        %v3439 = vunpack.c.l.b16 %v876
        %v3440 = vunpack.c.l.b16 %v877
        %v3441 = vunpack.c.l.b16 %v878
        %v3442 = vunpack.c.l.b16 %v879
        %v3443 = vunpack.c.l.b16 %v880
        %v3444 = vunpack.c.l.b16 %v881
        %v3445 = vunpack.c.l.b16 %v882
        %v3446 = vunpack.c.l.b16 %v883
        %v3447 = vunpack.c.l.b16 %v884
        %v3448 = vunpack.c.l.b16 %v885
        %v3449 = vunpack.c.l.b16 %v886
        %v3450 = vunpack.c.l.b16 %v887
        %v3451 = vunpack.c.l.b16 %v888
        %v3452 = vunpack.c.l.b16 %v889
        %v3453 = vunpack.c.l.b16 %v890
        %v3454 = vunpack.c.l.b16 %v891
        %v3455 = vunpack.c.l.b16 %v892
        %v3456 = vunpack.c.l.b16 %v893
        %v3457 = vunpack.c.l.b16 %v894
        %v3458 = vunpack.c.l.b16 %v895
        %v3459 = vunpack.c.l.b16 %v896
        %v3460 = vunpack.c.l.b16 %v897
        %v3461 = vunpack.c.l.b16 %v898
        %v3462 = vunpack.c.l.b16 %v899
        %v3463 = vunpack.c.l.b16 %v900
        %v3464 = vunpack.c.l.b16 %v901
        %v3465 = vunpack.c.l.b16 %v902
        %v3466 = vunpack.c.l.b16 %v903
        %v3467 = vunpack.c.l.b16 %v904
        %v3468 = vunpack.c.l.b16 %v905
        %v3469 = vunpack.c.l.b16 %v906
        %v3470 = vunpack.c.l.b16 %v907
        %v3471 = vunpack.c.l.b16 %v908
        %v3472 = vunpack.c.l.b16 %v909
        %v3473 = vunpack.c.l.b16 %v910
        %v3474 = vunpack.c.l.b16 %v911
        %v3475 = vunpack.c.l.b16 %v912
        %v3476 = vunpack.c.l.b16 %v913
        %v3477 = vunpack.c.l.b16 %v914
        %v3478 = vunpack.c.l.b16 %v915
        %v3479 = vunpack.c.l.b16 %v916
        %v3480 = vunpack.c.l.b16 %v917
        %v3481 = vunpack.c.l.b16 %v918
        %v3482 = vunpack.c.l.b16 %v919
        %v3483 = vunpack.c.l.b16 %v920
        %v3484 = vunpack.c.l.b16 %v921
        %v3485 = vunpack.c.l.b16 %v922
        %v3486 = vunpack.c.l.b16 %v923
        %v3487 = vunpack.c.l.b16 %v924
        %v3488 = vunpack.c.l.b16 %v925
        %v3489 = vunpack.c.l.b16 %v926
        %v3490 = vunpack.c.l.b16 %v927
        %v3491 = vunpack.c.l.b16 %v928
        %v3492 = vunpack.c.l.b16 %v929
        %v3493 = vunpack.c.l.b16 %v930
        %v3494 = vunpack.c.l.b16 %v931
        %v3495 = vunpack.c.l.b16 %v932
        %v3496 = vunpack.c.l.b16 %v933
        %v3497 = vunpack.c.l.b16 %v934
        %v3498 = vunpack.c.l.b16 %v935
        %v3499 = vunpack.c.l.b16 %v936
        %v3500 = vunpack.c.l.b16 %v937
        %v3501 = vunpack.c.l.b16 %v938
        %v3502 = vunpack.c.l.b16 %v939
        %v3503 = vunpack.c.l.b16 %v940
        %v3504 = vunpack.c.l.b16 %v941
        %v3505 = vunpack.c.l.b16 %v942
        %v3506 = vunpack.c.l.b16 %v943
        %v3507 = vunpack.c.l.b16 %v944
        %v3508 = vunpack.c.l.b16 %v945
        %v3509 = vunpack.c.l.b16 %v946
        %v3510 = vunpack.c.l.b16 %v947
        %v3511 = vunpack.c.l.b16 %v948
        %v3512 = vunpack.c.l.b16 %v949
        %v3513 = vunpack.c.l.b16 %v950
        %v3514 = vunpack.c.l.b16 %v951
        %v3515 = vunpack.c.l.b16 %v952
        %v3516 = vunpack.c.l.b16 %v953
        %v3517 = vunpack.c.l.b16 %v954
        %v3518 = vunpack.c.l.b16 %v955
        %v3519 = vunpack.c.l.b16 %v956
        %v3520 = vunpack.c.l.b16 %v957
        %v3521 = vunpack.c.l.b16 %v958
        %v3522 = vunpack.c.l.b16 %v959
        %v3523 = vunpack.c.l.b16 %v960
        %v3524 = vunpack.c.l.b16 %v961
        %v3525 = vunpack.c.l.b16 %v962
        %v3526 = vunpack.c.l.b16 %v963
        %v3527 = vunpack.c.l.b16 %v964
        %v3528 = vunpack.c.l.b16 %v965
        %v3529 = vunpack.c.l.b16 %v966
        %v3530 = vunpack.c.l.b16 %v967
        %v3531 = vunpack.c.l.b16 %v968
        %v3532 = vunpack.c.l.b16 %v969
        %v3533 = vunpack.c.l.b16 %v970
        %v3534 = vunpack.c.l.b16 %v971
        %v3535 = vunpack.c.l.b16 %v972
        %v3536 = vunpack.c.l.b16 %v973
        %v3537 = vunpack.c.l.b16 %v974
        %v3538 = vunpack.c.l.b16 %v975
        %v3539 = vunpack.c.l.b16 %v976
        %v3540 = vunpack.c.l.b16 %v977
        %v3541 = vunpack.c.l.b16 %v978
        %v3542 = vunpack.c.l.b16 %v979
        %v3543 = vunpack.c.l.b16 %v980
        %v3544 = vunpack.c.l.b16 %v981
        %v3545 = vunpack.c.l.b16 %v982
        %v3546 = vunpack.c.l.b16 %v983
        %v3547 = vunpack.c.l.b16 %v984
        %v3548 = vunpack.c.l.b16 %v985
        %v3549 = vunpack.c.l.b16 %v986
        %v3550 = vunpack.c.l.b16 %v987
        %v3551 = vunpack.c.l.b16 %v988
        %v3552 = vunpack.c.l.b16 %v989
        %v3553 = vunpack.c.l.b16 %v990
        %v3554 = vunpack.c.l.b16 %v991
        %v3555 = vunpack.c.l.b16 %v992
        %v3556 = vunpack.c.l.b16 %v993
        %v3557 = vunpack.c.l.b16 %v994
        %v3558 = vunpack.c.l.b16 %v995
        %v3559 = vunpack.c.l.b16 %v996
        %v3560 = vunpack.c.l.b16 %v997
        %v3561 = vunpack.c.l.b16 %v998
        %v3562 = vunpack.c.l.b16 %v999
        %v3563 = vunpack.c.l.b16 %v1000
        %v3564 = vunpack.c.l.b16 %v1001
        %v3565 = vunpack.c.l.b16 %v1002
        %v3566 = vunpack.c.l.b16 %v1003
        %v3567 = vunpack.c.l.b16 %v1004
        %v3568 = vunpack.c.l.b16 %v1005
        %v3569 = vunpack.c.l.b16 %v1006
        %v3570 = vunpack.c.l.b16 %v1007
        %v3571 = vunpack.c.l.b16 %v1008
        %v3572 = vunpack.c.l.b16 %v1009
        %v3573 = vunpack.c.l.b16 %v1010
        %v3574 = vunpack.c.l.b16 %v1011
        %v3575 = vunpack.c.l.b16 %v1012
        %v3576 = vunpack.c.l.b16 %v1013
        %v3577 = vunpack.c.l.b16 %v1014
        %v3578 = vunpack.c.l.b16 %v1015
        %v3579 = vunpack.c.l.b16 %v1016
        %v3580 = vunpack.c.l.b16 %v1017
        %v3581 = vunpack.c.l.b16 %v1018
        %v3582 = vunpack.c.l.b16 %v1019
        %v3583 = vunpack.c.l.b16 %v1020
        %v3584 = vunpack.c.l.b16 %v1021
        %v3585 = vunpack.c.l.b16 %v1022
        %v3586 = vunpack.c.l.b16 %v1023
        %v3587 = vunpack.c.l.b16 %v1024
        %v3588 = vunpack.c.l.b16 %v1025
        %v3589 = vunpack.c.l.b16 %v1026
        %v3590 = vunpack.c.l.b16 %v1027
        %v3591 = vunpack.c.l.b16 %v1028
        %v3592 = vunpack.c.l.b16 %v1029
        %v3593 = vunpack.c.l.b16 %v1030
        %v3594 = vunpack.c.l.b16 %v1031
        %v3595 = vunpack.c.l.b16 %v1032
        %v3596 = vunpack.c.l.b16 %v1033
        %v3597 = vunpack.c.l.b16 %v1034
        %v3598 = vunpack.c.l.b16 %v1035
        %v3599 = vunpack.c.l.b16 %v1036
        %v3600 = vunpack.c.l.b16 %v1037
        %v3601 = vunpack.c.l.b16 %v1038
        %v3602 = vunpack.c.l.b16 %v1039
        %v3603 = vunpack.c.l.b16 %v1040
        %v3604 = vunpack.c.l.b16 %v1041
        %v3605 = vunpack.c.l.b16 %v1042
        %v3606 = vunpack.c.l.b16 %v1043
        %v3607 = vunpack.c.l.b16 %v1044
        %v3608 = vunpack.c.l.b16 %v1045
        %v3609 = vunpack.c.l.b16 %v1046
        %v3610 = vunpack.c.l.b16 %v1047
        %v3611 = vunpack.c.l.b16 %v1048
        %v3612 = vunpack.c.l.b16 %v1049
        %v3613 = vunpack.c.l.b16 %v1050
        %v3614 = vunpack.c.l.b16 %v1051
        %v3615 = vunpack.c.l.b16 %v1052
        %v3616 = vunpack.c.l.b16 %v1053
        %v3617 = vunpack.c.l.b16 %v1054
        %v3618 = vunpack.c.l.b16 %v1055
        %v3619 = vunpack.c.l.b16 %v1056
        %v3620 = vunpack.c.l.b16 %v1057
        %v3621 = vunpack.c.l.b16 %v1058
        %v3622 = vunpack.c.l.b16 %v1059
        %v3623 = vunpack.c.l.b16 %v1060
        %v3624 = vunpack.c.l.b16 %v1061
        %v3625 = vunpack.c.l.b16 %v1062
        %v3626 = vunpack.c.l.b16 %v1063
        %v3627 = vunpack.c.l.b16 %v1064
        %v3628 = vunpack.c.l.b16 %v1065
        %v3629 = vunpack.c.l.b16 %v1066
        %v3630 = vunpack.c.l.b16 %v1067
        %v3631 = vunpack.c.l.b16 %v1068
        %v3632 = vunpack.c.l.b16 %v1069
        %v3633 = vunpack.c.l.b16 %v1070
        %v3634 = vunpack.c.l.b16 %v1071
        %v3635 = vunpack.c.l.b16 %v1072
        %v3636 = vunpack.c.l.b16 %v1073
        %v3637 = vunpack.c.l.b16 %v1074
        %v3638 = vunpack.c.l.b16 %v1075
        %v3639 = vunpack.c.l.b16 %v1076
        %v3640 = vunpack.c.l.b16 %v1077
        %v3641 = vunpack.c.l.b16 %v1078
        %v3642 = vunpack.c.l.b16 %v1079
        %v3643 = vunpack.c.l.b16 %v1080
        %v3644 = vunpack.c.l.b16 %v1081
        %v3645 = vunpack.c.l.b16 %v1082
        %v3646 = vunpack.c.l.b16 %v1083
        %v3647 = vunpack.c.l.b16 %v1084
        %v3648 = vunpack.c.l.b16 %v1085
        %v3649 = vunpack.c.l.b16 %v1086
        %v3650 = vunpack.c.l.b16 %v1087
        %v3651 = vunpack.c.l.b16 %v1088
        %v3652 = vunpack.c.l.b16 %v1089
        %v3653 = vunpack.c.l.b16 %v1090
        %v3654 = vunpack.c.l.b16 %v1091
        %v3655 = vunpack.c.l.b16 %v1092
        %v3656 = vunpack.c.l.b16 %v1093
        %v3657 = vunpack.c.l.b16 %v1094
        %v3658 = vunpack.c.l.b16 %v1095
        %v3659 = vunpack.c.l.b16 %v1096
        %v3660 = vunpack.c.l.b16 %v1097
        %v3661 = vunpack.c.l.b16 %v1098
        %v3662 = vunpack.c.l.b16 %v1099
        %v3663 = vunpack.c.l.b16 %v1100
        %v3664 = vunpack.c.l.b16 %v1101
        %v3665 = vunpack.c.l.b16 %v1102
        %v3666 = vunpack.c.l.b16 %v1103
        %v3667 = vunpack.c.l.b16 %v1104
        %v3668 = vunpack.c.l.b16 %v1105
        %v3669 = vunpack.c.l.b16 %v1106
        %v3670 = vunpack.c.l.b16 %v1107
        %v3671 = vunpack.c.l.b16 %v1108
        %v3672 = vunpack.c.l.b16 %v1109
        %v3673 = vunpack.c.l.b16 %v1110
        %v3674 = vunpack.c.l.b16 %v1111
        %v3675 = vunpack.c.l.b16 %v1112
        %v3676 = vunpack.c.l.b16 %v1113
        %v3677 = vunpack.c.l.b16 %v1114
        %v3678 = vunpack.c.l.b16 %v1115
        %v3679 = vunpack.c.l.b16 %v1116
        %v3680 = vunpack.c.l.b16 %v1117
        %v3681 = vunpack.c.l.b16 %v1118
        %v3682 = vunpack.c.l.b16 %v1119
        %v3683 = vunpack.c.l.b16 %v1120
        %v3684 = vunpack.c.l.b16 %v1121
        %v3685 = vunpack.c.l.b16 %v1122
        %v3686 = vunpack.c.l.b16 %v1123
        %v3687 = vunpack.c.l.b16 %v1124
        %v3688 = vunpack.c.l.b16 %v1125
        %v3689 = vunpack.c.l.b16 %v1126
        %v3690 = vunpack.c.l.b16 %v1127
        %v3691 = vunpack.c.l.b16 %v1128
        %v3692 = vunpack.c.l.b16 %v1129
        %v3693 = vunpack.c.l.b16 %v1130
        %v3694 = vunpack.c.l.b16 %v1131
        %v3695 = vunpack.c.l.b16 %v1132
        %v3696 = vunpack.c.l.b16 %v1133
        %v3697 = vunpack.c.l.b16 %v1134
        %v3698 = vunpack.c.l.b16 %v1135
        %v3699 = vunpack.c.l.b16 %v1136
        %v3700 = vunpack.c.l.b16 %v1137
        %v3701 = vunpack.c.l.b16 %v1138
        %v3702 = vunpack.c.l.b16 %v1139
        %v3703 = vunpack.c.l.b16 %v1140
        %v3704 = vunpack.c.l.b16 %v1141
        %v3705 = vunpack.c.l.b16 %v1142
        %v3706 = vunpack.c.l.b16 %v1143
        %v3707 = vunpack.c.l.b16 %v1144
        %v3708 = vunpack.c.l.b16 %v1145
        %v3709 = vunpack.c.l.b16 %v1146
        %v3710 = vunpack.c.l.b16 %v1147
        %v3711 = vunpack.c.l.b16 %v1148
        %v3712 = vunpack.c.l.b16 %v1149
        %v3713 = vunpack.c.l.b16 %v1150
        %v3714 = vunpack.c.l.b16 %v1151
        %v3715 = vunpack.c.l.b16 %v1152
        %v3716 = vunpack.c.l.b16 %v1153
        %v3717 = vunpack.c.l.b16 %v1154
        %v3718 = vunpack.c.l.b16 %v1155
        %v3719 = vunpack.c.l.b16 %v1156
        %v3720 = vunpack.c.l.b16 %v1157
        %v3721 = vunpack.c.l.b16 %v1158
        %v3722 = vunpack.c.l.b16 %v1159
        %v3723 = vunpack.c.l.b16 %v1160
        %v3724 = vunpack.c.l.b16 %v1161
        %v3725 = vunpack.c.l.b16 %v1162
        %v3726 = vunpack.c.l.b16 %v1163
        %v3727 = vunpack.c.l.b16 %v1164
        %v3728 = vunpack.c.l.b16 %v1165
        %v3729 = vunpack.c.l.b16 %v1166
        %v3730 = vunpack.c.l.b16 %v1167
        %v3731 = vunpack.c.l.b16 %v1168
        %v3732 = vunpack.c.l.b16 %v1169
        %v3733 = vunpack.c.l.b16 %v1170
        %v3734 = vunpack.c.l.b16 %v1171
        %v3735 = vunpack.c.l.b16 %v1172
        %v3736 = vunpack.c.l.b16 %v1173
        %v3737 = vunpack.c.l.b16 %v1174
        %v3738 = vunpack.c.l.b16 %v1175
        %v3739 = vunpack.c.l.b16 %v1176
        %v3740 = vunpack.c.l.b16 %v1177
        %v3741 = vunpack.c.l.b16 %v1178
        %v3742 = vunpack.c.l.b16 %v1179
        %v3743 = vunpack.c.l.b16 %v1180
        %v3744 = vunpack.c.l.b16 %v1181
        %v3745 = vunpack.c.l.b16 %v1182
        %v3746 = vunpack.c.l.b16 %v1183
        %v3747 = vunpack.c.l.b16 %v1184
        %v3748 = vunpack.c.l.b16 %v1185
        %v3749 = vunpack.c.l.b16 %v1186
        %v3750 = vunpack.c.l.b16 %v1187
        %v3751 = vunpack.c.l.b16 %v1188
        %v3752 = vunpack.c.l.b16 %v1189
        %v3753 = vunpack.c.l.b16 %v1190
        %v3754 = vunpack.c.l.b16 %v1191
        %v3755 = vunpack.c.l.b16 %v1192
        %v3756 = vunpack.c.l.b16 %v1193
        %v3757 = vunpack.c.l.b16 %v1194
        %v3758 = vunpack.c.l.b16 %v1195
        %v3759 = vunpack.c.l.b16 %v1196
        %v3760 = vunpack.c.l.b16 %v1197
        %v3761 = vunpack.c.l.b16 %v1198
        %v3762 = vunpack.c.l.b16 %v1199
        %v3763 = vunpack.c.l.b16 %v1200
        %v3764 = vunpack.c.l.b16 %v1201
        %v3765 = vunpack.c.l.b16 %v1202
        %v3766 = vunpack.c.l.b16 %v1203
        %v3767 = vunpack.c.l.b16 %v1204
        %v3768 = vunpack.c.l.b16 %v1205
        %v3769 = vunpack.c.l.b16 %v1206
        %v3770 = vunpack.c.l.b16 %v1207
        %v3771 = vunpack.c.l.b16 %v1208
        %v3772 = vunpack.c.l.b16 %v1209
        %v3773 = vunpack.c.l.b16 %v1210
        %v3774 = vunpack.c.l.b16 %v1211
        %v3775 = vunpack.c.l.b16 %v1212
        %v3776 = vunpack.c.l.b16 %v1213
        %v3777 = vunpack.c.l.b16 %v1214
        %v3778 = vunpack.c.l.b16 %v1215
        %v3779 = vunpack.c.l.b16 %v1216
        %v3780 = vunpack.c.l.b16 %v1217
        %v3781 = vunpack.c.l.b16 %v1218
        %v3782 = vunpack.c.l.b16 %v1219
        %v3783 = vunpack.c.l.b16 %v1220
        %v3784 = vunpack.c.l.b16 %v1221
        %v3785 = vunpack.c.l.b16 %v1222
        %v3786 = vunpack.c.l.b16 %v1223
        %v3787 = vunpack.c.l.b16 %v1224
        %v3788 = vunpack.c.l.b16 %v1225
        %v3789 = vunpack.c.l.b16 %v1226
        %v3790 = vunpack.c.l.b16 %v1227
        %v3791 = vunpack.c.l.b16 %v1228
        %v3792 = vunpack.c.l.b16 %v1229
        %v3793 = vunpack.c.l.b16 %v1230
        %v3794 = vunpack.c.l.b16 %v1231
        %v3795 = vunpack.c.l.b16 %v1232
        %v3796 = vunpack.c.l.b16 %v1233
        %v3797 = vunpack.c.l.b16 %v1234
        %v3798 = vunpack.c.l.b16 %v1235
        %v3799 = vunpack.c.l.b16 %v1236
        %v3800 = vunpack.c.l.b16 %v1237
        %v3801 = vunpack.c.l.b16 %v1238
        %v3802 = vunpack.c.l.b16 %v1239
        %v3803 = vunpack.c.l.b16 %v1240
        %v3804 = vunpack.c.l.b16 %v1241
        %v3805 = vunpack.c.l.b16 %v1242
        %v3806 = vunpack.c.l.b16 %v1243
        %v3807 = vunpack.c.l.b16 %v1244
        %v3808 = vunpack.c.l.b16 %v1245
        %v3809 = vunpack.c.l.b16 %v1246
        %v3810 = vunpack.c.l.b16 %v1247
        %v3811 = vunpack.c.l.b16 %v1248
        %v3812 = vunpack.c.l.b16 %v1249
        %v3813 = vunpack.c.l.b16 %v1250
        %v3814 = vunpack.c.l.b16 %v1251
        %v3815 = vunpack.c.l.b16 %v1252
        %v3816 = vunpack.c.l.b16 %v1253
        %v3817 = vunpack.c.l.b16 %v1254
        %v3818 = vunpack.c.l.b16 %v1255
        %v3819 = vunpack.c.l.b16 %v1256
        %v3820 = vunpack.c.l.b16 %v1257
        %v3821 = vunpack.c.l.b16 %v1258
        %v3822 = vunpack.c.l.b16 %v1259
        %v3823 = vunpack.c.l.b16 %v1260
        %v3824 = vunpack.c.l.b16 %v1261
        %v3825 = vunpack.c.l.b16 %v1262
        %v3826 = vunpack.c.l.b16 %v1263
        %v3827 = vunpack.c.l.b16 %v1264
        %v3828 = vunpack.c.l.b16 %v1265
        %v3829 = vunpack.c.l.b16 %v1266
        %v3830 = vunpack.c.l.b16 %v1267
        %v3831 = vunpack.c.l.b16 %v1268
        %v3832 = vunpack.c.l.b16 %v1269
        %v3833 = vunpack.c.l.b16 %v1270
        %v3834 = vunpack.c.l.b16 %v1271
        %v3835 = vunpack.c.l.b16 %v1272
        %v3836 = vunpack.c.l.b16 %v1273
        %v3837 = vunpack.c.l.b16 %v1274
        %v3838 = vunpack.c.l.b16 %v1275
        %v3839 = vunpack.c.l.b16 %v1276
        %v3840 = vunpack.c.l.b16 %v1277
        %v3841 = vunpack.c.l.b16 %v1278
        %v3842 = vunpack.c.l.b16 %v1279
        %v3843 = vunpack.c.l.b16 %v1280
        %v3844 = vunpack.c.l.b16 %v1281
        %v3845 = vunpack.c.l.b16 %v1282
        %v3846 = vunpack.c.l.b16 %v1283
        %v3847 = vunpack.c.l.b16 %v1284
        %v3848 = vunpack.c.l.b16 %v1285
        %v3849 = vunpack.c.l.b16 %v1286
        %v3850 = vunpack.c.l.b16 %v1287
        %v3851 = vunpack.c.l.b16 %v1288
        %v3852 = vunpack.c.l.b16 %v1289
        %v3853 = vunpack.c.l.b16 %v1290
        %v3854 = vunpack.c.l.b16 %v1291
        %v3855 = vunpack.c.l.b16 %v1292
        %v3856 = vunpack.c.l.b16 %v1293
        %v3857 = vunpack.c.l.b16 %v1294
        %v3858 = vunpack.c.l.b16 %v1295
        %v3859 = vunpack.c.l.b16 %v1296
        %v3860 = vunpack.c.l.b16 %v1297
        %v3861 = vunpack.c.l.b16 %v1298
        %v3862 = vunpack.c.l.b16 %v1299
        %v3863 = vunpack.c.l.b16 %v1300
        %v3864 = vunpack.c.l.b16 %v1301
        %v3865 = vunpack.c.l.b16 %v1302
        %v3866 = vunpack.c.l.b16 %v1303
        %v3867 = vunpack.c.l.b16 %v1304
        %v3868 = vunpack.c.l.b16 %v1305
        %v3869 = vunpack.c.l.b16 %v1306
        %v3870 = vunpack.c.l.b16 %v1307
        %v3871 = vunpack.c.l.b16 %v1308
        %v3872 = vunpack.c.l.b16 %v1309
        %v3873 = vunpack.c.l.b16 %v1310
        %v3874 = vunpack.c.l.b16 %v1311
        %v3875 = vunpack.c.l.b16 %v1312
        %v3876 = vunpack.c.l.b16 %v1313
        %v3877 = vunpack.c.l.b16 %v1314
        %v3878 = vunpack.c.l.b16 %v1315
        %v3879 = vunpack.c.l.b16 %v1316
        %v3880 = vunpack.c.l.b16 %v1317
        %v3881 = vunpack.c.l.b16 %v1318
        %v3882 = vunpack.c.l.b16 %v1319
        %v3883 = vunpack.c.l.b16 %v1320
        %v3884 = vunpack.c.l.b16 %v1321
        %v3885 = vunpack.c.l.b16 %v1322
        %v3886 = vunpack.c.l.b16 %v1323
        %v3887 = vunpack.c.l.b16 %v1324
        %v3888 = vunpack.c.l.b16 %v1325
        %v3889 = vunpack.c.l.b16 %v1326
        %v3890 = vunpack.c.l.b16 %v1327
        %v3891 = vunpack.c.l.b16 %v1328
        %v3892 = vunpack.c.l.b16 %v1329
        %v3893 = vunpack.c.l.b16 %v1330
        %v3894 = vunpack.c.l.b16 %v1331
        %v3895 = vunpack.c.l.b16 %v1332
        %v3896 = vunpack.c.l.b16 %v1333
        %v3897 = vunpack.c.l.b16 %v1334
        %v3898 = vunpack.c.l.b16 %v1335
        %v3899 = vunpack.c.l.b16 %v1336
        %v3900 = vunpack.c.l.b16 %v1337
        %v3901 = vunpack.c.l.b16 %v1338
        %v3902 = vunpack.c.l.b16 %v1339
        %v3903 = vunpack.c.l.b16 %v1340
        %v3904 = vunpack.c.l.b16 %v1341
        %v3905 = vunpack.c.l.b16 %v1342
        %v3906 = vunpack.c.l.b16 %v1343
        %v3907 = vunpack.c.l.b16 %v1344
        %v3908 = vunpack.c.l.b16 %v1345
        %v3909 = vunpack.c.l.b16 %v1346
        %v3910 = vunpack.c.l.b16 %v1347
        %v3911 = vunpack.c.l.b16 %v1348
        %v3912 = vunpack.c.l.b16 %v1349
        %v3913 = vunpack.c.l.b16 %v1350
        %v3914 = vunpack.c.l.b16 %v1351
        %v3915 = vunpack.c.l.b16 %v1352
        %v3916 = vunpack.c.l.b16 %v1353
        %v3917 = vunpack.c.l.b16 %v1354
        %v3918 = vunpack.c.l.b16 %v1355
        %v3919 = vunpack.c.l.b16 %v1356
        %v3920 = vunpack.c.l.b16 %v1357
        %v3921 = vunpack.c.l.b16 %v1358
        %v3922 = vunpack.c.l.b16 %v1359
        %v3923 = vunpack.c.l.b16 %v1360
        %v3924 = vunpack.c.l.b16 %v1361
        %v3925 = vunpack.c.l.b16 %v1362
        %v3926 = vunpack.c.l.b16 %v1363
        %v3927 = vunpack.c.l.b16 %v1364
        %v3928 = vunpack.c.l.b16 %v1365
        %v3929 = vunpack.c.l.b16 %v1366
        %v3930 = vunpack.c.l.b16 %v1367
        %v3931 = vunpack.c.l.b16 %v1368
        %v3932 = vunpack.c.l.b16 %v1369
        %v3933 = vunpack.c.l.b16 %v1370
        %v3934 = vunpack.c.l.b16 %v1371
        %v3935 = vunpack.c.l.b16 %v1372
        %v3936 = vunpack.c.l.b16 %v1373
        %v3937 = vunpack.c.l.b16 %v1374
        %v3938 = vunpack.c.l.b16 %v1375
        %v3939 = vunpack.c.l.b16 %v1376
        %v3940 = vunpack.c.l.b16 %v1377
        %v3941 = vunpack.c.l.b16 %v1378
        %v3942 = vunpack.c.l.b16 %v1379
        %v3943 = vunpack.c.l.b16 %v1380
        %v3944 = vunpack.c.l.b16 %v1381
        %v3945 = vunpack.c.l.b16 %v1382
        %v3946 = vunpack.c.l.b16 %v1383
        %v3947 = vunpack.c.l.b16 %v1384
        %v3948 = vunpack.c.l.b16 %v1385
        %v3949 = vunpack.c.l.b16 %v1386
        %v3950 = vunpack.c.l.b16 %v1387
        %v3951 = vunpack.c.l.b16 %v1388
        %v3952 = vunpack.c.l.b16 %v1389
        %v3953 = vunpack.c.l.b16 %v1390
        %v3954 = vunpack.c.l.b16 %v1391
        %v3955 = vunpack.c.l.b16 %v1392
        %v3956 = vunpack.c.l.b16 %v1393
        %v3957 = vunpack.c.l.b16 %v1394
        %v3958 = vunpack.c.l.b16 %v1395
        %v3959 = vunpack.c.l.b16 %v1396
        %v3960 = vunpack.c.l.b16 %v1397
        %v3961 = vunpack.c.l.b16 %v1398
        %v3962 = vunpack.c.l.b16 %v1399
        %v3963 = vunpack.c.l.b16 %v1400
        %v3964 = vunpack.c.l.b16 %v1401
        %v3965 = vunpack.c.l.b16 %v1402
        %v3966 = vunpack.c.l.b16 %v1403
        %v3967 = vunpack.c.l.b16 %v1404
        %v3968 = vunpack.c.l.b16 %v1405
        %v3969 = vunpack.c.l.b16 %v1406
        %v3970 = vunpack.c.l.b16 %v1407
        %v3971 = vunpack.c.l.b16 %v1408
        %v3972 = vunpack.c.l.b16 %v1409
        %v3973 = vunpack.c.l.b16 %v1410
        %v3974 = vunpack.c.l.b16 %v1411
        %v3975 = vunpack.c.l.b16 %v1412
        %v3976 = vunpack.c.l.b16 %v1413
        %v3977 = vunpack.c.l.b16 %v1414
        %v3978 = vunpack.c.l.b16 %v1415
        %v3979 = vunpack.c.l.b16 %v1416
        %v3980 = vunpack.c.l.b16 %v1417
        %v3981 = vunpack.c.l.b16 %v1418
        %v3982 = vunpack.c.l.b16 %v1419
        %v3983 = vunpack.c.l.b16 %v1420
        %v3984 = vunpack.c.l.b16 %v1421
        %v3985 = vunpack.c.l.b16 %v1422
        %v3986 = vunpack.c.l.b16 %v1423
        %v3987 = vunpack.c.l.b16 %v1424
        %v3988 = vunpack.c.l.b16 %v1425
        %v3989 = vunpack.c.l.b16 %v1426
        %v3990 = vunpack.c.l.b16 %v1427
        %v3991 = vunpack.c.l.b16 %v1428
        %v3992 = vunpack.c.l.b16 %v1429
        %v3993 = vunpack.c.l.b16 %v1430
        %v3994 = vunpack.c.l.b16 %v1431
        %v3995 = vunpack.c.l.b16 %v1432
        %v3996 = vunpack.c.l.b16 %v1433
        %v3997 = vunpack.c.l.b16 %v1434
        %v3998 = vunpack.c.l.b16 %v1435
        %v3999 = vunpack.c.l.b16 %v1436
        %v4000 = vunpack.c.l.b16 %v1437
        %v4001 = vunpack.c.l.b16 %v1438
        %v4002 = vunpack.c.l.b16 %v1439
        %v4003 = vunpack.c.l.b16 %v1440
        %v4004 = vunpack.c.l.b16 %v1441
        %v4005 = vunpack.c.l.b16 %v1442
        %v4006 = vunpack.c.l.b16 %v1443
        %v4007 = vunpack.c.l.b16 %v1444
        %v4008 = vunpack.c.l.b16 %v1445
        %v4009 = vunpack.c.l.b16 %v1446
        %v4010 = vunpack.c.l.b16 %v1447
        %v4011 = vunpack.c.l.b16 %v1448
        %v4012 = vunpack.c.l.b16 %v1449
        %v4013 = vunpack.c.l.b16 %v1450
        %v4014 = vunpack.c.l.b16 %v1451
        %v4015 = vunpack.c.l.b16 %v1452
        %v4016 = vunpack.c.l.b16 %v1453
        %v4017 = vunpack.c.l.b16 %v1454
        %v4018 = vunpack.c.l.b16 %v1455
        %v4019 = vunpack.c.l.b16 %v1456
        %v4020 = vunpack.c.l.b16 %v1457
        %v4021 = vunpack.c.l.b16 %v1458
        %v4022 = vunpack.c.l.b16 %v1459
        %v4023 = vunpack.c.l.b16 %v1460
        %v4024 = vunpack.c.l.b16 %v1461
        %v4025 = vunpack.c.l.b16 %v1462
        %v4026 = vunpack.c.l.b16 %v1463
        %v4027 = vunpack.c.l.b16 %v1464
        %v4028 = vunpack.c.l.b16 %v1465
        %v4029 = vunpack.c.l.b16 %v1466
        %v4030 = vunpack.c.l.b16 %v1467
        %v4031 = vunpack.c.l.b16 %v1468
        %v4032 = vunpack.c.l.b16 %v1469
        %v4033 = vunpack.c.l.b16 %v1470
        %v4034 = vunpack.c.l.b16 %v1471
        %v4035 = vunpack.c.l.b16 %v1472
        %v4036 = vunpack.c.l.b16 %v1473
        %v4037 = vunpack.c.l.b16 %v1474
        %v4038 = vunpack.c.l.b16 %v1475
        %v4039 = vunpack.c.l.b16 %v1476
        %v4040 = vunpack.c.l.b16 %v1477
        %v4041 = vunpack.c.l.b16 %v1478
        %v4042 = vunpack.c.l.b16 %v1479
        %v4043 = vunpack.c.l.b16 %v1480
        %v4044 = vunpack.c.l.b16 %v1481
        %v4045 = vunpack.c.l.b16 %v1482
        %v4046 = vunpack.c.l.b16 %v1483
        %v4047 = vunpack.c.l.b16 %v1484
        %v4048 = vunpack.c.l.b16 %v1485
        %v4049 = vunpack.c.l.b16 %v1486
        %v4050 = vunpack.c.l.b16 %v1487
        %v4051 = vunpack.c.l.b16 %v1488
        %v4052 = vunpack.c.l.b16 %v1489
        %v4053 = vunpack.c.l.b16 %v1490
        %v4054 = vunpack.c.l.b16 %v1491
        %v4055 = vunpack.c.l.b16 %v1492
        %v4056 = vunpack.c.l.b16 %v1493
        %v4057 = vunpack.c.l.b16 %v1494
        %v4058 = vunpack.c.l.b16 %v1495
        %v4059 = vunpack.c.l.b16 %v1496
        %v4060 = vunpack.c.l.b16 %v1497
        %v4061 = vunpack.c.l.b16 %v1498
        %v4062 = vunpack.c.l.b16 %v1499
        %v4063 = vunpack.c.l.b16 %v1500
        %v4064 = vunpack.c.l.b16 %v1501
        %v4065 = vunpack.c.l.b16 %v1502
        %v4066 = vunpack.c.l.b16 %v1503
        %v4067 = vunpack.c.l.b16 %v1504
        %v4068 = vunpack.c.l.b16 %v1505
        %v4069 = vunpack.c.l.b16 %v1506
        %v4070 = vunpack.c.l.b16 %v1507
        %v4071 = vunpack.c.l.b16 %v1508
        %v4072 = vunpack.c.l.b16 %v1509
        %v4073 = vunpack.c.l.b16 %v1510
        %v4074 = vunpack.c.l.b16 %v1511
        %v4075 = vunpack.c.l.b16 %v1512
        %v4076 = vunpack.c.l.b16 %v1513
        %v4077 = vunpack.c.l.b16 %v1514
        %v4078 = vunpack.c.l.b16 %v1515
        %v4079 = vunpack.c.l.b16 %v1516
        %v4080 = vunpack.c.l.b16 %v1517
        %v4081 = vunpack.c.l.b16 %v1518
        %v4082 = vunpack.c.l.b16 %v1519
        %v4083 = vunpack.c.l.b16 %v1520
        %v4084 = vunpack.c.l.b16 %v1521
        %v4085 = vunpack.c.l.b16 %v1522
        %v4086 = vunpack.c.l.b16 %v1523
        %v4087 = vunpack.c.l.b16 %v1524
        %v4088 = vunpack.c.l.b16 %v1525
        %v4089 = vunpack.c.l.b16 %v1526
        %v4090 = vunpack.c.l.b16 %v1527
        %v4091 = vunpack.c.l.b16 %v1528
        %v4092 = vunpack.c.l.b16 %v1529
        %v4093 = vunpack.c.l.b16 %v1530
        %v4094 = vunpack.c.l.b16 %v1531
        %v4095 = vunpack.c.l.b16 %v1532
        %v4096 = vunpack.c.l.b16 %v1533
        %v4097 = vunpack.c.l.b16 %v1534
        %v4098 = vunpack.c.l.b16 %v1535
        %v4099 = vunpack.c.l.b16 %v1536
        %v4100 = vunpack.c.l.b16 %v1537
        %v4101 = vunpack.c.l.b16 %v1538
        %v4102 = vunpack.c.l.b16 %v1539
        %v4103 = vunpack.c.l.b16 %v1540
        %v4104 = vunpack.c.l.b16 %v1541
        %v4105 = vunpack.c.l.b16 %v1542
        %v4106 = vunpack.c.l.b16 %v1543
        %v4107 = vunpack.c.l.b16 %v1544
        %v4108 = vunpack.c.l.b16 %v1545
        %v4109 = vunpack.c.l.b16 %v1546
        %v4110 = vunpack.c.l.b16 %v1547
        %v4111 = vunpack.c.l.b16 %v1548
        %v4112 = vunpack.c.l.b16 %v1549
        %v4113 = vunpack.c.l.b16 %v1550
        %v4114 = vunpack.c.l.b16 %v1551
        %v4115 = vunpack.c.l.b16 %v1552
        %v4116 = vunpack.c.l.b16 %v1553
        %v4117 = vunpack.c.l.b16 %v1554
        %v4118 = vunpack.c.l.b16 %v1555
        %v4119 = vunpack.c.l.b16 %v1556
        %v4120 = vunpack.c.l.b16 %v1557
        %v4121 = vpack.c.b16 %v2970, %v2969
        %v4122 = vpack.c.b16 %v2972, %v2971
        %v4123 = vpack.c.b16 %v2974, %v2973
        %v4124 = vpack.c.b16 %v2976, %v2975
        %v4125 = vpack.c.b16 %v2978, %v2977
        %v4126 = vpack.c.b16 %v2980, %v2979
        %v4127 = vpack.c.b16 %v2982, %v2981
        %v4128 = vpack.c.b16 %v2984, %v2983
        %v4129 = vpack.c.b16 %v2986, %v2985
        %v4130 = vpack.c.b16 %v2988, %v2987
        %v4131 = vpack.c.b16 %v2990, %v2989
        %v4132 = vpack.c.b16 %v2992, %v2991
        %v4133 = vpack.c.b16 %v2994, %v2993
        %v4134 = vpack.c.b16 %v2996, %v2995
        %v4135 = vpack.c.b16 %v2998, %v2997
        %v4136 = vpack.c.b16 %v3000, %v2999
        %v4137 = vpack.c.b16 %v3002, %v3001
        %v4138 = vpack.c.b16 %v3004, %v3003
        %v4139 = vpack.c.b16 %v3006, %v3005
        %v4140 = vpack.c.b16 %v3008, %v3007
        %v4141 = vpack.c.b16 %v3010, %v3009
        %v4142 = vpack.c.b16 %v3012, %v3011
        %v4143 = vpack.c.b16 %v3014, %v3013
        %v4144 = vpack.c.b16 %v3016, %v3015
        %v4145 = vpack.c.b16 %v3018, %v3017
        %v4146 = vpack.c.b16 %v3020, %v3019
        %v4147 = vpack.c.b16 %v3022, %v3021
        %v4148 = vpack.c.b16 %v3024, %v3023
        %v4149 = vpack.c.b16 %v3026, %v3025
        %v4150 = vpack.c.b16 %v3028, %v3027
        %v4151 = vpack.c.b16 %v3030, %v3029
        %v4152 = vpack.c.b16 %v3032, %v3031
        %v4153 = vpack.c.b16 %v3034, %v3033
        %v4154 = vpack.c.b16 %v3036, %v3035
        %v4155 = vpack.c.b16 %v3038, %v3037
        %v4156 = vpack.c.b16 %v3040, %v3039
        %v4157 = vpack.c.b16 %v3042, %v3041
        %v4158 = vpack.c.b16 %v3044, %v3043
        %v4159 = vpack.c.b16 %v3046, %v3045
        %v4160 = vpack.c.b16 %v3048, %v3047
        %v4161 = vpack.c.b16 %v3050, %v3049
        %v4162 = vpack.c.b16 %v3052, %v3051
        %v4163 = vpack.c.b16 %v3054, %v3053
        %v4164 = vpack.c.b16 %v3056, %v3055
        %v4165 = vpack.c.b16 %v3058, %v3057
        %v4166 = vpack.c.b16 %v3060, %v3059
        %v4167 = vpack.c.b16 %v3062, %v3061
        %v4168 = vpack.c.b16 %v3064, %v3063
        %v4169 = vpack.c.b16 %v3066, %v3065
        %v4170 = vpack.c.b16 %v3068, %v3067
        %v4171 = vpack.c.b16 %v3070, %v3069
        %v4172 = vpack.c.b16 %v3072, %v3071
        %v4173 = vpack.c.b16 %v3074, %v3073
        %v4174 = vpack.c.b16 %v3076, %v3075
        %v4175 = vpack.c.b16 %v3078, %v3077
        %v4176 = vpack.c.b16 %v3080, %v3079
        %v4177 = vpack.c.b16 %v3082, %v3081
        %v4178 = vpack.c.b16 %v3084, %v3083
        %v4179 = vpack.c.b16 %v3086, %v3085
        %v4180 = vpack.c.b16 %v3088, %v3087
        %v4181 = vpack.c.b16 %v3090, %v3089
        %v4182 = vpack.c.b16 %v3092, %v3091
        %v4183 = vpack.c.b16 %v3094, %v3093
        %v4184 = vpack.c.b16 %v3096, %v3095
        %v4185 = vpack.c.b16 %v3098, %v3097
        %v4186 = vpack.c.b16 %v3100, %v3099
        %v4187 = vpack.c.b16 %v3102, %v3101
        %v4188 = vpack.c.b16 %v3104, %v3103
        %v4189 = vpack.c.b16 %v3106, %v3105
        %v4190 = vpack.c.b16 %v3108, %v3107
        %v4191 = vpack.c.b16 %v3110, %v3109
        %v4192 = vpack.c.b16 %v3112, %v3111
        %v4193 = vpack.c.b16 %v3114, %v3113
        %v4194 = vpack.c.b16 %v3116, %v3115
        %v4195 = vpack.c.b16 %v3118, %v3117
        %v4196 = vpack.c.b16 %v3120, %v3119
        %v4197 = vpack.c.b16 %v3122, %v3121
        %v4198 = vpack.c.b16 %v3124, %v3123
        %v4199 = vpack.c.b16 %v3126, %v3125
        %v4200 = vpack.c.b16 %v3128, %v3127
        %v4201 = vpack.c.b16 %v3130, %v3129
        %v4202 = vpack.c.b16 %v3132, %v3131
        %v4203 = vpack.c.b16 %v3134, %v3133
        %v4204 = vpack.c.b16 %v3136, %v3135
        %v4205 = vpack.c.b16 %v3138, %v3137
        %v4206 = vpack.c.b16 %v3140, %v3139
        %v4207 = vpack.c.b16 %v3142, %v3141
        %v4208 = vpack.c.b16 %v3144, %v3143
        %v4209 = vpack.c.b16 %v3146, %v3145
        %v4210 = vpack.c.b16 %v3148, %v3147
        %v4211 = vpack.c.b16 %v3150, %v3149
        %v4212 = vpack.c.b16 %v3152, %v3151
        %v4213 = vpack.c.b16 %v3154, %v3153
        %v4214 = vpack.c.b16 %v3156, %v3155
        %v4215 = vpack.c.b16 %v3158, %v3157
        %v4216 = vpack.c.b16 %v3160, %v3159
        %v4217 = vpack.c.b16 %v3162, %v3161
        %v4218 = vpack.c.b16 %v3164, %v3163
        %v4219 = vpack.c.b16 %v3166, %v3165
        %v4220 = vpack.c.b16 %v3168, %v3167
        %v4221 = vpack.c.b16 %v3170, %v3169
        %v4222 = vpack.c.b16 %v3172, %v3171
        %v4223 = vpack.c.b16 %v3174, %v3173
        %v4224 = vpack.c.b16 %v3176, %v3175
        %v4225 = vpack.c.b16 %v3178, %v3177
        %v4226 = vpack.c.b16 %v3180, %v3179
        %v4227 = vpack.c.b16 %v3182, %v3181
        %v4228 = vpack.c.b16 %v3184, %v3183
        %v4229 = vpack.c.b16 %v3186, %v3185
        %v4230 = vpack.c.b16 %v3188, %v3187
        %v4231 = vpack.c.b16 %v3190, %v3189
        %v4232 = vpack.c.b16 %v3192, %v3191
        %v4233 = vpack.c.b16 %v3194, %v3193
        %v4234 = vpack.c.b16 %v3196, %v3195
        %v4235 = vpack.c.b16 %v3198, %v3197
        %v4236 = vpack.c.b16 %v3200, %v3199
        %v4237 = vpack.c.b16 %v3202, %v3201
        %v4238 = vpack.c.b16 %v3204, %v3203
        %v4239 = vpack.c.b16 %v3206, %v3205
        %v4240 = vpack.c.b16 %v3208, %v3207
        %v4241 = vpack.c.b16 %v3210, %v3209
        %v4242 = vpack.c.b16 %v3212, %v3211
        %v4243 = vpack.c.b16 %v3214, %v3213
        %v4244 = vpack.c.b16 %v3216, %v3215
        %v4245 = vpack.c.b16 %v3218, %v3217
        %v4246 = vpack.c.b16 %v3220, %v3219
        %v4247 = vpack.c.b16 %v3222, %v3221
        %v4248 = vpack.c.b16 %v3224, %v3223
        %v4249 = vpack.c.b16 %v3226, %v3225
        %v4250 = vpack.c.b16 %v3228, %v3227
        %v4251 = vpack.c.b16 %v3230, %v3229
        %v4252 = vpack.c.b16 %v3232, %v3231
        %v4253 = vpack.c.b16 %v3234, %v3233
        %v4254 = vpack.c.b16 %v3236, %v3235
        %v4255 = vpack.c.b16 %v3238, %v3237
        %v4256 = vpack.c.b16 %v3240, %v3239
        %v4257 = vpack.c.b16 %v3242, %v3241
        %v4258 = vpack.c.b16 %v3244, %v3243
        %v4259 = vpack.c.b16 %v3246, %v3245
        %v4260 = vpack.c.b16 %v3248, %v3247
        %v4261 = vpack.c.b16 %v3250, %v3249
        %v4262 = vpack.c.b16 %v3252, %v3251
        %v4263 = vpack.c.b16 %v3254, %v3253
        %v4264 = vpack.c.b16 %v3256, %v3255
        %v4265 = vpack.c.b16 %v3258, %v3257
        %v4266 = vpack.c.b16 %v3260, %v3259
        %v4267 = vpack.c.b16 %v3262, %v3261
        %v4268 = vpack.c.b16 %v3264, %v3263
        %v4269 = vpack.c.b16 %v3266, %v3265
        %v4270 = vpack.c.b16 %v3268, %v3267
        %v4271 = vpack.c.b16 %v3270, %v3269
        %v4272 = vpack.c.b16 %v3272, %v3271
        %v4273 = vpack.c.b16 %v3274, %v3273
        %v4274 = vpack.c.b16 %v3276, %v3275
        %v4275 = vpack.c.b16 %v3278, %v3277
        %v4276 = vpack.c.b16 %v3280, %v3279
        %v4277 = vpack.c.b16 %v3282, %v3281
        %v4278 = vpack.c.b16 %v3284, %v3283
        %v4279 = vpack.c.b16 %v3286, %v3285
        %v4280 = vpack.c.b16 %v3288, %v3287
        %v4281 = vpack.c.b16 %v3290, %v3289
        %v4282 = vpack.c.b16 %v3292, %v3291
        %v4283 = vpack.c.b16 %v3294, %v3293
        %v4284 = vpack.c.b16 %v3296, %v3295
        %v4285 = vpack.c.b16 %v3298, %v3297
        %v4286 = vpack.c.b16 %v3300, %v3299
        %v4287 = vpack.c.b16 %v3302, %v3301
        %v4288 = vpack.c.b16 %v3304, %v3303
        %v4289 = vpack.c.b16 %v3306, %v3305
        %v4290 = vpack.c.b16 %v3308, %v3307
        %v4291 = vpack.c.b16 %v3310, %v3309
        %v4292 = vpack.c.b16 %v3312, %v3311
        %v4293 = vpack.c.b16 %v3314, %v3313
        %v4294 = vpack.c.b16 %v3316, %v3315
        %v4295 = vpack.c.b16 %v3318, %v3317
        %v4296 = vpack.c.b16 %v3320, %v3319
        %v4297 = vpack.c.b16 %v3322, %v3321
        %v4298 = vpack.c.b16 %v3324, %v3323
        %v4299 = vpack.c.b16 %v3326, %v3325
        %v4300 = vpack.c.b16 %v3328, %v3327
        %v4301 = vpack.c.b16 %v3330, %v3329
        %v4302 = vpack.c.b16 %v3332, %v3331
        %v4303 = vpack.c.b16 %v3334, %v3333
        %v4304 = vpack.c.b16 %v3336, %v3335
        %v4305 = vpack.c.b16 %v3338, %v3337
        %v4306 = vpack.c.b16 %v3340, %v3339
        %v4307 = vpack.c.b16 %v3342, %v3341
        %v4308 = vpack.c.b16 %v3344, %v3343
        %v4309 = vpack.c.b16 %v3346, %v3345
        %v4310 = vpack.c.b16 %v3348, %v3347
        %v4311 = vpack.c.b16 %v3350, %v3349
        %v4312 = vpack.c.b16 %v3352, %v3351
        %v4313 = vpack.c.b16 %v3354, %v3353
        %v4314 = vpack.c.b16 %v3356, %v3355
        %v4315 = vpack.c.b16 %v3358, %v3357
        %v4316 = vpack.c.b16 %v3360, %v3359
        %v4317 = vpack.c.b16 %v3362, %v3361
        %v4318 = vpack.c.b16 %v3364, %v3363
        %v4319 = vpack.c.b16 %v3366, %v3365
        %v4320 = vpack.c.b16 %v3368, %v3367
        %v4321 = vpack.c.b16 %v3370, %v3369
        %v4322 = vpack.c.b16 %v3372, %v3371
        %v4323 = vpack.c.b16 %v3374, %v3373
        %v4324 = vpack.c.b16 %v3376, %v3375
        %v4325 = vpack.c.b16 %v3378, %v3377
        %v4326 = vpack.c.b16 %v3380, %v3379
        %v4327 = vpack.c.b16 %v3382, %v3381
        %v4328 = vpack.c.b16 %v3384, %v3383
        %v4329 = vpack.c.b16 %v3386, %v3385
        %v4330 = vpack.c.b16 %v3388, %v3387
        %v4331 = vpack.c.b16 %v3390, %v3389
        %v4332 = vpack.c.b16 %v3392, %v3391
        %v4333 = vpack.c.b16 %v3394, %v3393
        %v4334 = vpack.c.b16 %v3396, %v3395
        %v4335 = vpack.c.b16 %v3398, %v3397
        %v4336 = vpack.c.b16 %v3400, %v3399
        %v4337 = vpack.c.b16 %v3402, %v3401
        %v4338 = vpack.c.b16 %v3404, %v3403
        %v4339 = vpack.c.b16 %v3406, %v3405
        %v4340 = vpack.c.b16 %v3408, %v3407
        %v4341 = vpack.c.b16 %v3410, %v3409
        %v4342 = vpack.c.b16 %v3412, %v3411
        %v4343 = vpack.c.b16 %v3414, %v3413
        %v4344 = vpack.c.b16 %v3416, %v3415
        %v4345 = vpack.c.b16 %v3418, %v3417
        %v4346 = vpack.c.b16 %v3420, %v3419
        %v4347 = vpack.c.b16 %v3422, %v3421
        %v4348 = vpack.c.b16 %v3424, %v3423
        %v4349 = vpack.c.b16 %v3426, %v3425
        %v4350 = vpack.c.b16 %v3428, %v3427
        %v4351 = vpack.c.b16 %v3430, %v3429
        %v4352 = vpack.c.b16 %v3432, %v3431
        %v4353 = vpack.c.b16 %v3434, %v3433
        %v4354 = vpack.c.b16 %v3436, %v3435
        %v4355 = vpack.c.b16 %v3438, %v3437
        %v4356 = vpack.c.b16 %v3440, %v3439
        %v4357 = vpack.c.b16 %v3442, %v3441
        %v4358 = vpack.c.b16 %v3444, %v3443
        %v4359 = vpack.c.b16 %v3446, %v3445
        %v4360 = vpack.c.b16 %v3448, %v3447
        %v4361 = vpack.c.b16 %v3450, %v3449
        %v4362 = vpack.c.b16 %v3452, %v3451
        %v4363 = vpack.c.b16 %v3454, %v3453
        %v4364 = vpack.c.b16 %v3456, %v3455
        %v4365 = vpack.c.b16 %v3458, %v3457
        %v4366 = vpack.c.b16 %v3460, %v3459
        %v4367 = vpack.c.b16 %v3462, %v3461
        %v4368 = vpack.c.b16 %v3464, %v3463
        %v4369 = vpack.c.b16 %v3466, %v3465
        %v4370 = vpack.c.b16 %v3468, %v3467
        %v4371 = vpack.c.b16 %v3470, %v3469
        %v4372 = vpack.c.b16 %v3472, %v3471
        %v4373 = vpack.c.b16 %v3474, %v3473
        %v4374 = vpack.c.b16 %v3476, %v3475
        %v4375 = vpack.c.b16 %v3478, %v3477
        %v4376 = vpack.c.b16 %v3480, %v3479
        %v4377 = vpack.c.b16 %v3482, %v3481
        %v4378 = vpack.c.b16 %v3484, %v3483
        %v4379 = vpack.c.b16 %v3486, %v3485
        %v4380 = vpack.c.b16 %v3488, %v3487
        %v4381 = vpack.c.b16 %v3490, %v3489
        %v4382 = vpack.c.b16 %v3492, %v3491
        %v4383 = vpack.c.b16 %v3494, %v3493
        %v4384 = vpack.c.b16 %v3496, %v3495
        %v4385 = vpack.c.b16 %v3498, %v3497
        %v4386 = vpack.c.b16 %v3500, %v3499
        %v4387 = vpack.c.b16 %v3502, %v3501
        %v4388 = vpack.c.b16 %v3504, %v3503
        %v4389 = vpack.c.b16 %v3506, %v3505
        %v4390 = vpack.c.b16 %v3508, %v3507
        %v4391 = vpack.c.b16 %v3510, %v3509
        %v4392 = vpack.c.b16 %v3512, %v3511
        %v4393 = vpack.c.b16 %v3514, %v3513
        %v4394 = vpack.c.b16 %v3516, %v3515
        %v4395 = vpack.c.b16 %v3518, %v3517
        %v4396 = vpack.c.b16 %v3520, %v3519
        %v4397 = vpack.c.b16 %v3522, %v3521
        %v4398 = vpack.c.b16 %v3524, %v3523
        %v4399 = vpack.c.b16 %v3526, %v3525
        %v4400 = vpack.c.b16 %v3528, %v3527
        %v4401 = vpack.c.b16 %v3530, %v3529
        %v4402 = vpack.c.b16 %v3532, %v3531
        %v4403 = vpack.c.b16 %v3534, %v3533
        %v4404 = vpack.c.b16 %v3536, %v3535
        %v4405 = vpack.c.b16 %v3538, %v3537
        %v4406 = vpack.c.b16 %v3540, %v3539
        %v4407 = vpack.c.b16 %v3542, %v3541
        %v4408 = vpack.c.b16 %v3544, %v3543
        %v4409 = vpack.c.b16 %v3546, %v3545
        %v4410 = vpack.c.b16 %v3548, %v3547
        %v4411 = vpack.c.b16 %v3550, %v3549
        %v4412 = vpack.c.b16 %v3552, %v3551
        %v4413 = vpack.c.b16 %v3554, %v3553
        %v4414 = vpack.c.b16 %v3556, %v3555
        %v4415 = vpack.c.b16 %v3558, %v3557
        %v4416 = vpack.c.b16 %v3560, %v3559
        %v4417 = vpack.c.b16 %v3562, %v3561
        %v4418 = vpack.c.b16 %v3564, %v3563
        %v4419 = vpack.c.b16 %v3566, %v3565
        %v4420 = vpack.c.b16 %v3568, %v3567
        %v4421 = vpack.c.b16 %v3570, %v3569
        %v4422 = vpack.c.b16 %v3572, %v3571
        %v4423 = vpack.c.b16 %v3574, %v3573
        %v4424 = vpack.c.b16 %v3576, %v3575
        %v4425 = vpack.c.b16 %v3578, %v3577
        %v4426 = vpack.c.b16 %v3580, %v3579
        %v4427 = vpack.c.b16 %v3582, %v3581
        %v4428 = vpack.c.b16 %v3584, %v3583
        %v4429 = vpack.c.b16 %v3586, %v3585
        %v4430 = vpack.c.b16 %v3588, %v3587
        %v4431 = vpack.c.b16 %v3590, %v3589
        %v4432 = vpack.c.b16 %v3592, %v3591
        %v4433 = vpack.c.b16 %v3594, %v3593
        %v4434 = vpack.c.b16 %v3596, %v3595
        %v4435 = vpack.c.b16 %v3598, %v3597
        %v4436 = vpack.c.b16 %v3600, %v3599
        %v4437 = vpack.c.b16 %v3602, %v3601
        %v4438 = vpack.c.b16 %v3604, %v3603
        %v4439 = vpack.c.b16 %v3606, %v3605
        %v4440 = vpack.c.b16 %v3608, %v3607
        %v4441 = vpack.c.b16 %v3610, %v3609
        %v4442 = vpack.c.b16 %v3612, %v3611
        %v4443 = vpack.c.b16 %v3614, %v3613
        %v4444 = vpack.c.b16 %v3616, %v3615
        %v4445 = vpack.c.b16 %v3618, %v3617
        %v4446 = vpack.c.b16 %v3620, %v3619
        %v4447 = vpack.c.b16 %v3622, %v3621
        %v4448 = vpack.c.b16 %v3624, %v3623
        %v4449 = vpack.c.b16 %v3626, %v3625
        %v4450 = vpack.c.b16 %v3628, %v3627
        %v4451 = vpack.c.b16 %v3630, %v3629
        %v4452 = vpack.c.b16 %v3632, %v3631
        %v4453 = vpack.c.b16 %v3634, %v3633
        %v4454 = vpack.c.b16 %v3636, %v3635
        %v4455 = vpack.c.b16 %v3638, %v3637
        %v4456 = vpack.c.b16 %v3640, %v3639
        %v4457 = vpack.c.b16 %v3642, %v3641
        %v4458 = vpack.c.b16 %v3644, %v3643
        %v4459 = vpack.c.b16 %v3646, %v3645
        %v4460 = vpack.c.b16 %v3648, %v3647
        %v4461 = vpack.c.b16 %v3650, %v3649
        %v4462 = vpack.c.b16 %v3652, %v3651
        %v4463 = vpack.c.b16 %v3654, %v3653
        %v4464 = vpack.c.b16 %v3656, %v3655
        %v4465 = vpack.c.b16 %v3658, %v3657
        %v4466 = vpack.c.b16 %v3660, %v3659
        %v4467 = vpack.c.b16 %v3662, %v3661
        %v4468 = vpack.c.b16 %v3664, %v3663
        %v4469 = vpack.c.b16 %v3666, %v3665
        %v4470 = vpack.c.b16 %v3668, %v3667
        %v4471 = vpack.c.b16 %v3670, %v3669
        %v4472 = vpack.c.b16 %v3672, %v3671
        %v4473 = vpack.c.b16 %v3674, %v3673
        %v4474 = vpack.c.b16 %v3676, %v3675
        %v4475 = vpack.c.b16 %v3678, %v3677
        %v4476 = vpack.c.b16 %v3680, %v3679
        %v4477 = vpack.c.b16 %v3682, %v3681
        %v4478 = vpack.c.b16 %v3684, %v3683
        %v4479 = vpack.c.b16 %v3686, %v3685
        %v4480 = vpack.c.b16 %v3688, %v3687
        %v4481 = vpack.c.b16 %v3690, %v3689
        %v4482 = vpack.c.b16 %v3692, %v3691
        %v4483 = vpack.c.b16 %v3694, %v3693
        %v4484 = vpack.c.b16 %v3696, %v3695
        %v4485 = vpack.c.b16 %v3698, %v3697
        %v4486 = vpack.c.b16 %v3700, %v3699
        %v4487 = vpack.c.b16 %v3702, %v3701
        %v4488 = vpack.c.b16 %v3704, %v3703
        %v4489 = vpack.c.b16 %v3706, %v3705
        %v4490 = vpack.c.b16 %v3708, %v3707
        %v4491 = vpack.c.b16 %v3710, %v3709
        %v4492 = vpack.c.b16 %v3712, %v3711
        %v4493 = vpack.c.b16 %v3714, %v3713
        %v4494 = vpack.c.b16 %v3716, %v3715
        %v4495 = vpack.c.b16 %v3718, %v3717
        %v4496 = vpack.c.b16 %v3720, %v3719
        %v4497 = vpack.c.b16 %v3722, %v3721
        %v4498 = vpack.c.b16 %v3724, %v3723
        %v4499 = vpack.c.b16 %v3726, %v3725
        %v4500 = vpack.c.b16 %v3728, %v3727
        %v4501 = vpack.c.b16 %v3730, %v3729
        %v4502 = vpack.c.b16 %v3732, %v3731
        %v4503 = vpack.c.b16 %v3734, %v3733
        %v4504 = vpack.c.b16 %v3736, %v3735
        %v4505 = vpack.c.b16 %v3738, %v3737
        %v4506 = vpack.c.b16 %v3740, %v3739
        %v4507 = vpack.c.b16 %v3742, %v3741
        %v4508 = vpack.c.b16 %v3744, %v3743
        %v4509 = vpack.c.b16 %v3746, %v3745
        %v4510 = vpack.c.b16 %v3748, %v3747
        %v4511 = vpack.c.b16 %v3750, %v3749
        %v4512 = vpack.c.b16 %v3752, %v3751
        %v4513 = vpack.c.b16 %v3754, %v3753
        %v4514 = vpack.c.b16 %v3756, %v3755
        %v4515 = vpack.c.b16 %v3758, %v3757
        %v4516 = vpack.c.b16 %v3760, %v3759
        %v4517 = vpack.c.b16 %v3762, %v3761
        %v4518 = vpack.c.b16 %v3764, %v3763
        %v4519 = vpack.c.b16 %v3766, %v3765
        %v4520 = vpack.c.b16 %v3768, %v3767
        %v4521 = vpack.c.b16 %v3770, %v3769
        %v4522 = vpack.c.b16 %v3772, %v3771
        %v4523 = vpack.c.b16 %v3774, %v3773
        %v4524 = vpack.c.b16 %v3776, %v3775
        %v4525 = vpack.c.b16 %v3778, %v3777
        %v4526 = vpack.c.b16 %v3780, %v3779
        %v4527 = vpack.c.b16 %v3782, %v3781
        %v4528 = vpack.c.b16 %v3784, %v3783
        %v4529 = vpack.c.b16 %v3786, %v3785
        %v4530 = vpack.c.b16 %v3788, %v3787
        %v4531 = vpack.c.b16 %v3790, %v3789
        %v4532 = vpack.c.b16 %v3792, %v3791
        %v4533 = vpack.c.b16 %v3794, %v3793
        %v4534 = vpack.c.b16 %v3796, %v3795
        %v4535 = vpack.c.b16 %v3798, %v3797
        %v4536 = vpack.c.b16 %v3800, %v3799
        %v4537 = vpack.c.b16 %v3802, %v3801
        %v4538 = vpack.c.b16 %v3804, %v3803
        %v4539 = vpack.c.b16 %v3806, %v3805
        %v4540 = vpack.c.b16 %v3808, %v3807
        %v4541 = vpack.c.b16 %v3810, %v3809
        %v4542 = vpack.c.b16 %v3812, %v3811
        %v4543 = vpack.c.b16 %v3814, %v3813
        %v4544 = vpack.c.b16 %v3816, %v3815
        %v4545 = vpack.c.b16 %v3818, %v3817
        %v4546 = vpack.c.b16 %v3820, %v3819
        %v4547 = vpack.c.b16 %v3822, %v3821
        %v4548 = vpack.c.b16 %v3824, %v3823
        %v4549 = vpack.c.b16 %v3826, %v3825
        %v4550 = vpack.c.b16 %v3828, %v3827
        %v4551 = vpack.c.b16 %v3830, %v3829
        %v4552 = vpack.c.b16 %v3832, %v3831
        %v4553 = vpack.c.b16 %v3834, %v3833
        %v4554 = vpack.c.b16 %v3836, %v3835
        %v4555 = vpack.c.b16 %v3838, %v3837
        %v4556 = vpack.c.b16 %v3840, %v3839
        %v4557 = vpack.c.b16 %v3842, %v3841
        %v4558 = vpack.c.b16 %v3844, %v3843
        %v4559 = vpack.c.b16 %v3846, %v3845
        %v4560 = vpack.c.b16 %v3848, %v3847
        %v4561 = vpack.c.b16 %v3850, %v3849
        %v4562 = vpack.c.b16 %v3852, %v3851
        %v4563 = vpack.c.b16 %v3854, %v3853
        %v4564 = vpack.c.b16 %v3856, %v3855
        %v4565 = vpack.c.b16 %v3858, %v3857
        %v4566 = vpack.c.b16 %v3860, %v3859
        %v4567 = vpack.c.b16 %v3862, %v3861
        %v4568 = vpack.c.b16 %v3864, %v3863
        %v4569 = vpack.c.b16 %v3866, %v3865
        %v4570 = vpack.c.b16 %v3868, %v3867
        %v4571 = vpack.c.b16 %v3870, %v3869
        %v4572 = vpack.c.b16 %v3872, %v3871
        %v4573 = vpack.c.b16 %v3874, %v3873
        %v4574 = vpack.c.b16 %v3876, %v3875
        %v4575 = vpack.c.b16 %v3878, %v3877
        %v4576 = vpack.c.b16 %v3880, %v3879
        %v4577 = vpack.c.b16 %v3882, %v3881
        %v4578 = vpack.c.b16 %v3884, %v3883
        %v4579 = vpack.c.b16 %v3886, %v3885
        %v4580 = vpack.c.b16 %v3888, %v3887
        %v4581 = vpack.c.b16 %v3890, %v3889
        %v4582 = vpack.c.b16 %v3892, %v3891
        %v4583 = vpack.c.b16 %v3894, %v3893
        %v4584 = vpack.c.b16 %v3896, %v3895
        %v4585 = vpack.c.b16 %v3898, %v3897
        %v4586 = vpack.c.b16 %v3900, %v3899
        %v4587 = vpack.c.b16 %v3902, %v3901
        %v4588 = vpack.c.b16 %v3904, %v3903
        %v4589 = vpack.c.b16 %v3906, %v3905
        %v4590 = vpack.c.b16 %v3908, %v3907
        %v4591 = vpack.c.b16 %v3910, %v3909
        %v4592 = vpack.c.b16 %v3912, %v3911
        %v4593 = vpack.c.b16 %v3914, %v3913
        %v4594 = vpack.c.b16 %v3916, %v3915
        %v4595 = vpack.c.b16 %v3918, %v3917
        %v4596 = vpack.c.b16 %v3920, %v3919
        %v4597 = vpack.c.b16 %v3922, %v3921
        %v4598 = vpack.c.b16 %v3924, %v3923
        %v4599 = vpack.c.b16 %v3926, %v3925
        %v4600 = vpack.c.b16 %v3928, %v3927
        %v4601 = vpack.c.b16 %v3930, %v3929
        %v4602 = vpack.c.b16 %v3932, %v3931
        %v4603 = vpack.c.b16 %v3934, %v3933
        %v4604 = vpack.c.b16 %v3936, %v3935
        %v4605 = vpack.c.b16 %v3938, %v3937
        %v4606 = vpack.c.b16 %v3940, %v3939
        %v4607 = vpack.c.b16 %v3942, %v3941
        %v4608 = vpack.c.b16 %v3944, %v3943
        %v4609 = vpack.c.b16 %v3946, %v3945
        %v4610 = vpack.c.b16 %v3948, %v3947
        %v4611 = vpack.c.b16 %v3950, %v3949
        %v4612 = vpack.c.b16 %v3952, %v3951
        %v4613 = vpack.c.b16 %v3954, %v3953
        %v4614 = vpack.c.b16 %v3956, %v3955
        %v4615 = vpack.c.b16 %v3958, %v3957
        %v4616 = vpack.c.b16 %v3960, %v3959
        %v4617 = vpack.c.b16 %v3962, %v3961
        %v4618 = vpack.c.b16 %v3964, %v3963
        %v4619 = vpack.c.b16 %v3966, %v3965
        %v4620 = vpack.c.b16 %v3968, %v3967
        %v4621 = vpack.c.b16 %v3970, %v3969
        %v4622 = vpack.c.b16 %v3972, %v3971
        %v4623 = vpack.c.b16 %v3974, %v3973
        %v4624 = vpack.c.b16 %v3976, %v3975
        %v4625 = vpack.c.b16 %v3978, %v3977
        %v4626 = vpack.c.b16 %v3980, %v3979
        %v4627 = vpack.c.b16 %v3982, %v3981
        %v4628 = vpack.c.b16 %v3984, %v3983
        %v4629 = vpack.c.b16 %v3986, %v3985
        %v4630 = vpack.c.b16 %v3988, %v3987
        %v4631 = vpack.c.b16 %v3990, %v3989
        %v4632 = vpack.c.b16 %v3992, %v3991
        %v4633 = vpack.c.b16 %v3994, %v3993
        %v4634 = vpack.c.b16 %v3996, %v3995
        %v4635 = vpack.c.b16 %v3998, %v3997
        %v4636 = vpack.c.b16 %v4000, %v3999
        %v4637 = vpack.c.b16 %v4002, %v4001
        %v4638 = vpack.c.b16 %v4004, %v4003
        %v4639 = vpack.c.b16 %v4006, %v4005
        %v4640 = vpack.c.b16 %v4008, %v4007
        %v4641 = vpack.c.b16 %v4010, %v4009
        %v4642 = vpack.c.b16 %v4012, %v4011
        %v4643 = vpack.c.b16 %v4014, %v4013
        %v4644 = vpack.c.b16 %v4016, %v4015
        %v4645 = vpack.c.b16 %v4018, %v4017
        %v4646 = vpack.c.b16 %v4020, %v4019
        %v4647 = vpack.c.b16 %v4022, %v4021
        %v4648 = vpack.c.b16 %v4024, %v4023
        %v4649 = vpack.c.b16 %v4026, %v4025
        %v4650 = vpack.c.b16 %v4028, %v4027
        %v4651 = vpack.c.b16 %v4030, %v4029
        %v4652 = vpack.c.b16 %v4032, %v4031
        %v4653 = vpack.c.b16 %v4034, %v4033
        %v4654 = vpack.c.b16 %v4036, %v4035
        %v4655 = vpack.c.b16 %v4038, %v4037
        %v4656 = vpack.c.b16 %v4040, %v4039
        %v4657 = vpack.c.b16 %v4042, %v4041
        %v4658 = vpack.c.b16 %v4044, %v4043
        %v4659 = vpack.c.b16 %v4046, %v4045
        %v4660 = vpack.c.b16 %v4048, %v4047
        %v4661 = vpack.c.b16 %v4050, %v4049
        %v4662 = vpack.c.b16 %v4052, %v4051
        %v4663 = vpack.c.b16 %v4054, %v4053
        %v4664 = vpack.c.b16 %v4056, %v4055
        %v4665 = vpack.c.b16 %v4058, %v4057
        %v4666 = vpack.c.b16 %v4060, %v4059
        %v4667 = vpack.c.b16 %v4062, %v4061
        %v4668 = vpack.c.b16 %v4064, %v4063
        %v4669 = vpack.c.b16 %v4066, %v4065
        %v4670 = vpack.c.b16 %v4068, %v4067
        %v4671 = vpack.c.b16 %v4070, %v4069
        %v4672 = vpack.c.b16 %v4072, %v4071
        %v4673 = vpack.c.b16 %v4074, %v4073
        %v4674 = vpack.c.b16 %v4076, %v4075
        %v4675 = vpack.c.b16 %v4078, %v4077
        %v4676 = vpack.c.b16 %v4080, %v4079
        %v4677 = vpack.c.b16 %v4082, %v4081
        %v4678 = vpack.c.b16 %v4084, %v4083
        %v4679 = vpack.c.b16 %v4086, %v4085
        %v4680 = vpack.c.b16 %v4088, %v4087
        %v4681 = vpack.c.b16 %v4090, %v4089
        %v4682 = vpack.c.b16 %v4092, %v4091
        %v4683 = vpack.c.b16 %v4094, %v4093
        %v4684 = vpack.c.b16 %v4096, %v4095
        %v4685 = vpack.c.b16 %v4098, %v4097
        %v4686 = vpack.c.b16 %v4100, %v4099
        %v4687 = vpack.c.b16 %v4102, %v4101
        %v4688 = vpack.c.b16 %v4104, %v4103
        %v4689 = vpack.c.b16 %v4106, %v4105
        %v4690 = vpack.c.b16 %v4108, %v4107
        %v4691 = vpack.c.b16 %v4110, %v4109
        %v4692 = vpack.c.b16 %v4112, %v4111
        %v4693 = vpack.c.b16 %v4114, %v4113
        %v4694 = vpack.c.b16 %v4116, %v4115
        %v4695 = vpack.c.b16 %v4118, %v4117
        %v4696 = vpack.c.b16 %v4120, %v4119
        %5273 = vmatprep.subr.bf16.mxu0 0
        %5274 = vmatpush1.bf16.msra.mxu0 %v4121
        %5275 = vmatprep.subr.bf16.mxu0 0
        %5276 = vmatpush1.bf16.msra.mxu0 %v4122
        %5277 = vmatprep.subr.bf16.mxu0 0
        %5278 = vmatpush1.bf16.msra.mxu0 %v4123
        %5279 = vmatprep.subr.bf16.mxu0 0
        %5280 = vmatpush1.bf16.msra.mxu0 %v4124
        %5281 = vmatprep.subr.bf16.mxu0 0
        %5282 = vmatpush1.bf16.msra.mxu0 %v4125
        %5283 = vmatprep.subr.bf16.mxu0 0
        %5284 = vmatpush1.bf16.msra.mxu0 %v4126
        %5285 = vmatprep.subr.bf16.mxu0 0
        %5286 = vmatpush1.bf16.msra.mxu0 %v4127
        %5287 = vmatprep.subr.bf16.mxu0 0
        %5288 = vmatpush1.bf16.msra.mxu0 %v4128
        %5289 = vmatprep.subr.bf16.mxu0 0
        %5290 = vmatpush1.bf16.msra.mxu0 %v4129
        %5291 = vmatprep.subr.bf16.mxu0 0
        %5292 = vmatpush1.bf16.msra.mxu0 %v4130
        %5293 = vmatprep.subr.bf16.mxu0 0
        %5294 = vmatpush1.bf16.msra.mxu0 %v4131
        %5295 = vmatprep.subr.bf16.mxu0 0
        %5296 = vmatpush1.bf16.msra.mxu0 %v4132
        %5297 = vmatprep.subr.bf16.mxu0 0
        %5298 = vmatpush1.bf16.msra.mxu0 %v4133
        %5299 = vmatprep.subr.bf16.mxu0 0
        %5300 = vmatpush1.bf16.msra.mxu0 %v4134
        %5301 = vmatprep.subr.bf16.mxu0 0
        %5302 = vmatpush1.bf16.msra.mxu0 %v4135
        %5303 = vmatprep.subr.bf16.mxu0 0
        %5304 = vmatpush1.bf16.msra.mxu0 %v4136
        %5305 = vmatprep.mubr.bf16.mxu0 %v1674
        %5306 = vmatmul.mubr.bf16.gmra.mrb[0].mxu0 %v1673
        %v5307 = vpop.f32.mrb[0].mxu0
        %v5308 = vadd.f32 %v1563, %v5307
        %v5309 = vpop.f32.mrb[0].mxu0
        %v5310 = vpop.f32.mrb[0].mxu0
        %v5311 = vpop.f32.mrb[0].mxu0
        %5312 = vdwg.mxu0
        %5313 = vmatprep.subr.bf16.mxu0 0
        %5314 = vmatpush1.bf16.msra.mxu0 %v4137
        %5315 = vmatprep.subr.bf16.mxu0 0
        %5316 = vmatpush1.bf16.msra.mxu0 %v4138
        %5317 = vmatprep.subr.bf16.mxu0 0
        %5318 = vmatpush1.bf16.msra.mxu0 %v4139
        %5319 = vmatprep.subr.bf16.mxu0 0
        %5320 = vmatpush1.bf16.msra.mxu0 %v4140
        %5321 = vmatprep.subr.bf16.mxu0 0
        %5322 = vmatpush1.bf16.msra.mxu0 %v4141
        %5323 = vmatprep.subr.bf16.mxu0 0
        %5324 = vmatpush1.bf16.msra.mxu0 %v4142
        %5325 = vmatprep.subr.bf16.mxu0 0
        %5326 = vmatpush1.bf16.msra.mxu0 %v4143
        %5327 = vmatprep.subr.bf16.mxu0 0
        %5328 = vmatpush1.bf16.msra.mxu0 %v4144
        %5329 = vmatprep.subr.bf16.mxu0 0
        %5330 = vmatpush1.bf16.msra.mxu0 %v4145
        %5331 = vmatprep.subr.bf16.mxu0 0
        %5332 = vmatpush1.bf16.msra.mxu0 %v4146
        %5333 = vmatprep.subr.bf16.mxu0 0
        %5334 = vmatpush1.bf16.msra.mxu0 %v4147
        %5335 = vmatprep.subr.bf16.mxu0 0
        %5336 = vmatpush1.bf16.msra.mxu0 %v4148
        %5337 = vmatprep.subr.bf16.mxu0 0
        %5338 = vmatpush1.bf16.msra.mxu0 %v4149
        %5339 = vmatprep.subr.bf16.mxu0 0
        %5340 = vmatpush1.bf16.msra.mxu0 %v4150
        %5341 = vmatprep.subr.bf16.mxu0 0
        %5342 = vmatpush1.bf16.msra.mxu0 %v4151
        %5343 = vmatprep.subr.bf16.mxu0 0
        %5344 = vmatpush1.bf16.msra.mxu0 %v4152
        %5345 = vmatprep.mubr.bf16.mxu0 %v1676
        %5346 = vmatmul.mubr.bf16.gmra.mrb[0].mxu0 %v1675
        %v5347 = vpop.f32.mrb[0].mxu0
        %v5348 = vadd.f32 %v5308, %v5347
        %v5349 = vpop.f32.mrb[0].mxu0
        %v5350 = vpop.f32.mrb[0].mxu0
        %v5351 = vpop.f32.mrb[0].mxu0
        %5352 = vdwg.mxu0
        %5353 = vmatprep.subr.bf16.mxu0 0
        %5354 = vmatpush1.bf16.msra.mxu0 %v4153
        %5355 = vmatprep.subr.bf16.mxu0 0
        %5356 = vmatpush1.bf16.msra.mxu0 %v4154
        %5357 = vmatprep.subr.bf16.mxu0 0
        %5358 = vmatpush1.bf16.msra.mxu0 %v4155
        %5359 = vmatprep.subr.bf16.mxu0 0
        %5360 = vmatpush1.bf16.msra.mxu0 %v4156
        %5361 = vmatprep.subr.bf16.mxu0 0
        %5362 = vmatpush1.bf16.msra.mxu0 %v4157
        %5363 = vmatprep.subr.bf16.mxu0 0
        %5364 = vmatpush1.bf16.msra.mxu0 %v4158
        %5365 = vmatprep.subr.bf16.mxu0 0
        %5366 = vmatpush1.bf16.msra.mxu0 %v4159
        %5367 = vmatprep.subr.bf16.mxu0 0
        %5368 = vmatpush1.bf16.msra.mxu0 %v4160
        %5369 = vmatprep.subr.bf16.mxu0 0
        %5370 = vmatpush1.bf16.msra.mxu0 %v4161
        %5371 = vmatprep.subr.bf16.mxu0 0
        %5372 = vmatpush1.bf16.msra.mxu0 %v4162
        %5373 = vmatprep.subr.bf16.mxu0 0
        %5374 = vmatpush1.bf16.msra.mxu0 %v4163
        %5375 = vmatprep.subr.bf16.mxu0 0
        %5376 = vmatpush1.bf16.msra.mxu0 %v4164
        %5377 = vmatprep.subr.bf16.mxu0 0
        %5378 = vmatpush1.bf16.msra.mxu0 %v4165
        %5379 = vmatprep.subr.bf16.mxu0 0
        %5380 = vmatpush1.bf16.msra.mxu0 %v4166
        %5381 = vmatprep.subr.bf16.mxu0 0
        %5382 = vmatpush1.bf16.msra.mxu0 %v4167
        %5383 = vmatprep.subr.bf16.mxu0 0
        %5384 = vmatpush1.bf16.msra.mxu0 %v4168
        %5385 = vmatprep.mubr.bf16.mxu0 %v1678
        %5386 = vmatmul.mubr.bf16.gmra.mrb[0].mxu0 %v1677
        %v5387 = vpop.f32.mrb[0].mxu0
        %v5388 = vadd.f32 %v5348, %v5387
        %v5389 = vpop.f32.mrb[0].mxu0
        %v5390 = vpop.f32.mrb[0].mxu0
        %v5391 = vpop.f32.mrb[0].mxu0
        %5392 = vdwg.mxu0
        %5393 = vmatprep.subr.bf16.mxu0 0
        %5394 = vmatpush1.bf16.msra.mxu0 %v4169
        %5395 = vmatprep.subr.bf16.mxu0 0
        %5396 = vmatpush1.bf16.msra.mxu0 %v4170
        %5397 = vmatprep.subr.bf16.mxu0 0
        %5398 = vmatpush1.bf16.msra.mxu0 %v4171
        %5399 = vmatprep.subr.bf16.mxu0 0
        %5400 = vmatpush1.bf16.msra.mxu0 %v4172
        %5401 = vmatprep.subr.bf16.mxu0 0
        %5402 = vmatpush1.bf16.msra.mxu0 %v4173
        %5403 = vmatprep.subr.bf16.mxu0 0
        %5404 = vmatpush1.bf16.msra.mxu0 %v4174
        %5405 = vmatprep.subr.bf16.mxu0 0
        %5406 = vmatpush1.bf16.msra.mxu0 %v4175
        %5407 = vmatprep.subr.bf16.mxu0 0
        %5408 = vmatpush1.bf16.msra.mxu0 %v4176
        %5409 = vmatprep.subr.bf16.mxu0 0
        %5410 = vmatpush1.bf16.msra.mxu0 %v4177
        %5411 = vmatprep.subr.bf16.mxu0 0
        %5412 = vmatpush1.bf16.msra.mxu0 %v4178
        %5413 = vmatprep.subr.bf16.mxu0 0
        %5414 = vmatpush1.bf16.msra.mxu0 %v4179
        %5415 = vmatprep.subr.bf16.mxu0 0
        %5416 = vmatpush1.bf16.msra.mxu0 %v4180
        %5417 = vmatprep.subr.bf16.mxu0 0
        %5418 = vmatpush1.bf16.msra.mxu0 %v4181
        %5419 = vmatprep.subr.bf16.mxu0 0
        %5420 = vmatpush1.bf16.msra.mxu0 %v4182
        %5421 = vmatprep.subr.bf16.mxu0 0
        %5422 = vmatpush1.bf16.msra.mxu0 %v4183
        %5423 = vmatprep.subr.bf16.mxu0 0
        %5424 = vmatpush1.bf16.msra.mxu0 %v4184
        %5425 = vmatprep.mubr.bf16.mxu0 %v1680
        %5426 = vmatmul.mubr.bf16.gmra.mrb[0].mxu0 %v1679
        %v5427 = vpop.f32.mrb[0].mxu0
        %v5428 = vadd.f32 %v5388, %v5427
        %v5429 = vpop.f32.mrb[0].mxu0
        %v5430 = vpop.f32.mrb[0].mxu0
        %v5431 = vpop.f32.mrb[0].mxu0
        %5432 = vdwg.mxu0
        %5433 = vmatprep.subr.bf16.mxu0 0
        %5434 = vmatpush1.bf16.msra.mxu0 %v4185
        %5435 = vmatprep.subr.bf16.mxu0 0
        %5436 = vmatpush1.bf16.msra.mxu0 %v4186
        %5437 = vmatprep.subr.bf16.mxu0 0
        %5438 = vmatpush1.bf16.msra.mxu0 %v4187
        %5439 = vmatprep.subr.bf16.mxu0 0
        %5440 = vmatpush1.bf16.msra.mxu0 %v4188
        %5441 = vmatprep.subr.bf16.mxu0 0
        %5442 = vmatpush1.bf16.msra.mxu0 %v4189
        %5443 = vmatprep.subr.bf16.mxu0 0
        %5444 = vmatpush1.bf16.msra.mxu0 %v4190
        %5445 = vmatprep.subr.bf16.mxu0 0
        %5446 = vmatpush1.bf16.msra.mxu0 %v4191
        %5447 = vmatprep.subr.bf16.mxu0 0
        %5448 = vmatpush1.bf16.msra.mxu0 %v4192
        %5449 = vmatprep.subr.bf16.mxu0 0
        %5450 = vmatpush1.bf16.msra.mxu0 %v4193
        %5451 = vmatprep.subr.bf16.mxu0 0
        %5452 = vmatpush1.bf16.msra.mxu0 %v4194
        %5453 = vmatprep.subr.bf16.mxu0 0
        %5454 = vmatpush1.bf16.msra.mxu0 %v4195
        %5455 = vmatprep.subr.bf16.mxu0 0
        %5456 = vmatpush1.bf16.msra.mxu0 %v4196
        %5457 = vmatprep.subr.bf16.mxu0 0
        %5458 = vmatpush1.bf16.msra.mxu0 %v4197
        %5459 = vmatprep.subr.bf16.mxu0 0
        %5460 = vmatpush1.bf16.msra.mxu0 %v4198
        %5461 = vmatprep.subr.bf16.mxu0 0
        %5462 = vmatpush1.bf16.msra.mxu0 %v4199
        %5463 = vmatprep.subr.bf16.mxu0 0
        %5464 = vmatpush1.bf16.msra.mxu0 %v4200
        %5465 = vmatprep.mubr.bf16.mxu0 %v1682
        %5466 = vmatmul.mubr.bf16.gmra.mrb[0].mxu0 %v1681
        %v5467 = vpop.f32.mrb[0].mxu0
        %v5468 = vadd.f32 %v5428, %v5467
        %v5469 = vpop.f32.mrb[0].mxu0
        %v5470 = vpop.f32.mrb[0].mxu0
        %v5471 = vpop.f32.mrb[0].mxu0
        %5472 = vdwg.mxu0
        %5473 = vmatprep.subr.bf16.mxu0 0
        %5474 = vmatpush1.bf16.msra.mxu0 %v4201
        %5475 = vmatprep.subr.bf16.mxu0 0
        %5476 = vmatpush1.bf16.msra.mxu0 %v4202
        %5477 = vmatprep.subr.bf16.mxu0 0
        %5478 = vmatpush1.bf16.msra.mxu0 %v4203
        %5479 = vmatprep.subr.bf16.mxu0 0
        %5480 = vmatpush1.bf16.msra.mxu0 %v4204
        %5481 = vmatprep.subr.bf16.mxu0 0
        %5482 = vmatpush1.bf16.msra.mxu0 %v4205
        %5483 = vmatprep.subr.bf16.mxu0 0
        %5484 = vmatpush1.bf16.msra.mxu0 %v4206
        %5485 = vmatprep.subr.bf16.mxu0 0
        %5486 = vmatpush1.bf16.msra.mxu0 %v4207
        %5487 = vmatprep.subr.bf16.mxu0 0
        %5488 = vmatpush1.bf16.msra.mxu0 %v4208
        %5489 = vmatprep.subr.bf16.mxu0 0
        %5490 = vmatpush1.bf16.msra.mxu0 %v4209
        %5491 = vmatprep.subr.bf16.mxu0 0
        %5492 = vmatpush1.bf16.msra.mxu0 %v4210
        %5493 = vmatprep.subr.bf16.mxu0 0
        %5494 = vmatpush1.bf16.msra.mxu0 %v4211
        %5495 = vmatprep.subr.bf16.mxu0 0
        %5496 = vmatpush1.bf16.msra.mxu0 %v4212
        %5497 = vmatprep.subr.bf16.mxu0 0
        %5498 = vmatpush1.bf16.msra.mxu0 %v4213
        %5499 = vmatprep.subr.bf16.mxu0 0
        %5500 = vmatpush1.bf16.msra.mxu0 %v4214
        %5501 = vmatprep.subr.bf16.mxu0 0
        %5502 = vmatpush1.bf16.msra.mxu0 %v4215
        %5503 = vmatprep.subr.bf16.mxu0 0
        %5504 = vmatpush1.bf16.msra.mxu0 %v4216
        %5505 = vmatprep.mubr.bf16.mxu0 %v1684
        %5506 = vmatmul.mubr.bf16.gmra.mrb[0].mxu0 %v1683
        %v5507 = vpop.f32.mrb[0].mxu0
        %v5508 = vadd.f32 %v5468, %v5507
        %v5509 = vpop.f32.mrb[0].mxu0
        %v5510 = vpop.f32.mrb[0].mxu0
        %v5511 = vpop.f32.mrb[0].mxu0
        %5512 = vdwg.mxu0
        %5513 = vmatprep.subr.bf16.mxu0 0
        %5514 = vmatpush1.bf16.msra.mxu0 %v4217
        %5515 = vmatprep.subr.bf16.mxu0 0
        %5516 = vmatpush1.bf16.msra.mxu0 %v4218
        %5517 = vmatprep.subr.bf16.mxu0 0
        %5518 = vmatpush1.bf16.msra.mxu0 %v4219
        %5519 = vmatprep.subr.bf16.mxu0 0
        %5520 = vmatpush1.bf16.msra.mxu0 %v4220
        %5521 = vmatprep.subr.bf16.mxu0 0
        %5522 = vmatpush1.bf16.msra.mxu0 %v4221
        %5523 = vmatprep.subr.bf16.mxu0 0
        %5524 = vmatpush1.bf16.msra.mxu0 %v4222
        %5525 = vmatprep.subr.bf16.mxu0 0
        %5526 = vmatpush1.bf16.msra.mxu0 %v4223
        %5527 = vmatprep.subr.bf16.mxu0 0
        %5528 = vmatpush1.bf16.msra.mxu0 %v4224
        %5529 = vmatprep.subr.bf16.mxu0 0
        %5530 = vmatpush1.bf16.msra.mxu0 %v4225
        %5531 = vmatprep.subr.bf16.mxu0 0
        %5532 = vmatpush1.bf16.msra.mxu0 %v4226
        %5533 = vmatprep.subr.bf16.mxu0 0
        %5534 = vmatpush1.bf16.msra.mxu0 %v4227
        %5535 = vmatprep.subr.bf16.mxu0 0
        %5536 = vmatpush1.bf16.msra.mxu0 %v4228
        %5537 = vmatprep.subr.bf16.mxu0 0
        %5538 = vmatpush1.bf16.msra.mxu0 %v4229
        %5539 = vmatprep.subr.bf16.mxu0 0
        %5540 = vmatpush1.bf16.msra.mxu0 %v4230
        %5541 = vmatprep.subr.bf16.mxu0 0
        %5542 = vmatpush1.bf16.msra.mxu0 %v4231
        %5543 = vmatprep.subr.bf16.mxu0 0
        %5544 = vmatpush1.bf16.msra.mxu0 %v4232
        %5545 = vmatprep.mubr.bf16.mxu0 %v1686
        %5546 = vmatmul.mubr.bf16.gmra.mrb[0].mxu0 %v1685
        %v5547 = vpop.f32.mrb[0].mxu0
        %v5548 = vadd.f32 %v5508, %v5547
        %v5549 = vpop.f32.mrb[0].mxu0
        %v5550 = vpop.f32.mrb[0].mxu0
        %v5551 = vpop.f32.mrb[0].mxu0
        %5552 = vdwg.mxu0
        %5553 = vmatprep.subr.bf16.mxu0 0
        %5554 = vmatpush1.bf16.msra.mxu0 %v4233
        %5555 = vmatprep.subr.bf16.mxu0 0
        %5556 = vmatpush1.bf16.msra.mxu0 %v4234
        %5557 = vmatprep.subr.bf16.mxu0 0
        %5558 = vmatpush1.bf16.msra.mxu0 %v4235
        %5559 = vmatprep.subr.bf16.mxu0 0
        %5560 = vmatpush1.bf16.msra.mxu0 %v4236
        %5561 = vmatprep.subr.bf16.mxu0 0
        %5562 = vmatpush1.bf16.msra.mxu0 %v4237
        %5563 = vmatprep.subr.bf16.mxu0 0
        %5564 = vmatpush1.bf16.msra.mxu0 %v4238
        %5565 = vmatprep.subr.bf16.mxu0 0
        %5566 = vmatpush1.bf16.msra.mxu0 %v4239
        %5567 = vmatprep.subr.bf16.mxu0 0
        %5568 = vmatpush1.bf16.msra.mxu0 %v4240
        %5569 = vmatprep.subr.bf16.mxu0 0
        %5570 = vmatpush1.bf16.msra.mxu0 %v4241
        %5571 = vmatprep.subr.bf16.mxu0 0
        %5572 = vmatpush1.bf16.msra.mxu0 %v4242
        %5573 = vmatprep.subr.bf16.mxu0 0
        %5574 = vmatpush1.bf16.msra.mxu0 %v4243
        %5575 = vmatprep.subr.bf16.mxu0 0
        %5576 = vmatpush1.bf16.msra.mxu0 %v4244
        %5577 = vmatprep.subr.bf16.mxu0 0
        %5578 = vmatpush1.bf16.msra.mxu0 %v4245
        %5579 = vmatprep.subr.bf16.mxu0 0
        %5580 = vmatpush1.bf16.msra.mxu0 %v4246
        %5581 = vmatprep.subr.bf16.mxu0 0
        %5582 = vmatpush1.bf16.msra.mxu0 %v4247
        %5583 = vmatprep.subr.bf16.mxu0 0
        %5584 = vmatpush1.bf16.msra.mxu0 %v4248
        %5585 = vmatprep.mubr.bf16.mxu0 %v1688
        %5586 = vmatmul.mubr.bf16.gmra.mrb[0].mxu0 %v1687
        %v5587 = vpop.f32.mrb[0].mxu0
        %v5588 = vadd.f32 %v5548, %v5587
        %v5589 = vpop.f32.mrb[0].mxu0
        %v5590 = vpop.f32.mrb[0].mxu0
        %v5591 = vpop.f32.mrb[0].mxu0
        %5592 = vdwg.mxu0
        %5593 = vmatprep.subr.bf16.mxu0 0
        %5594 = vmatpush1.bf16.msra.mxu0 %v4249
        %5595 = vmatprep.subr.bf16.mxu0 0
        %5596 = vmatpush1.bf16.msra.mxu0 %v4250
        %5597 = vmatprep.subr.bf16.mxu0 0
        %5598 = vmatpush1.bf16.msra.mxu0 %v4251
        %5599 = vmatprep.subr.bf16.mxu0 0
        %5600 = vmatpush1.bf16.msra.mxu0 %v4252
        %5601 = vmatprep.subr.bf16.mxu0 0
        %5602 = vmatpush1.bf16.msra.mxu0 %v4253
        %5603 = vmatprep.subr.bf16.mxu0 0
        %5604 = vmatpush1.bf16.msra.mxu0 %v4254
        %5605 = vmatprep.subr.bf16.mxu0 0
        %5606 = vmatpush1.bf16.msra.mxu0 %v4255
        %5607 = vmatprep.subr.bf16.mxu0 0
        %5608 = vmatpush1.bf16.msra.mxu0 %v4256
        %5609 = vmatprep.subr.bf16.mxu0 0
        %5610 = vmatpush1.bf16.msra.mxu0 %v4257
        %5611 = vmatprep.subr.bf16.mxu0 0
        %5612 = vmatpush1.bf16.msra.mxu0 %v4258
        %5613 = vmatprep.subr.bf16.mxu0 0
        %5614 = vmatpush1.bf16.msra.mxu0 %v4259
        %5615 = vmatprep.subr.bf16.mxu0 0
        %5616 = vmatpush1.bf16.msra.mxu0 %v4260
        %5617 = vmatprep.subr.bf16.mxu0 0
        %5618 = vmatpush1.bf16.msra.mxu0 %v4261
        %5619 = vmatprep.subr.bf16.mxu0 0
        %5620 = vmatpush1.bf16.msra.mxu0 %v4262
        %5621 = vmatprep.subr.bf16.mxu0 0
        %5622 = vmatpush1.bf16.msra.mxu0 %v4263
        %5623 = vmatprep.subr.bf16.mxu0 0
        %5624 = vmatpush1.bf16.msra.mxu0 %v4264
        %5625 = vmatprep.mubr.bf16.mxu0 %v1690
        %5626 = vmatmul.mubr.bf16.gmra.mrb[0].mxu0 %v1689
        %v5627 = vpop.f32.mrb[0].mxu0
        %v5628 = vadd.f32 %v5588, %v5627
        %v5629 = vpop.f32.mrb[0].mxu0
        %v5630 = vpop.f32.mrb[0].mxu0
        %v5631 = vpop.f32.mrb[0].mxu0
        %5632 = vdwg.mxu0
        %5633 = vmatprep.subr.bf16.mxu0 0
        %5634 = vmatpush1.bf16.msra.mxu0 %v4265
        %5635 = vmatprep.subr.bf16.mxu0 0
        %5636 = vmatpush1.bf16.msra.mxu0 %v4266
        %5637 = vmatprep.subr.bf16.mxu0 0
        %5638 = vmatpush1.bf16.msra.mxu0 %v4267
        %5639 = vmatprep.subr.bf16.mxu0 0
        %5640 = vmatpush1.bf16.msra.mxu0 %v4268
        %5641 = vmatprep.subr.bf16.mxu0 0
        %5642 = vmatpush1.bf16.msra.mxu0 %v4269
        %5643 = vmatprep.subr.bf16.mxu0 0
        %5644 = vmatpush1.bf16.msra.mxu0 %v4270
        %5645 = vmatprep.subr.bf16.mxu0 0
        %5646 = vmatpush1.bf16.msra.mxu0 %v4271
        %5647 = vmatprep.subr.bf16.mxu0 0
        %5648 = vmatpush1.bf16.msra.mxu0 %v4272
        %5649 = vmatprep.subr.bf16.mxu0 0
        %5650 = vmatpush1.bf16.msra.mxu0 %v4273
        %5651 = vmatprep.subr.bf16.mxu0 0
        %5652 = vmatpush1.bf16.msra.mxu0 %v4274
        %5653 = vmatprep.subr.bf16.mxu0 0
        %5654 = vmatpush1.bf16.msra.mxu0 %v4275
        %5655 = vmatprep.subr.bf16.mxu0 0
        %5656 = vmatpush1.bf16.msra.mxu0 %v4276
        %5657 = vmatprep.subr.bf16.mxu0 0
        %5658 = vmatpush1.bf16.msra.mxu0 %v4277
        %5659 = vmatprep.subr.bf16.mxu0 0
        %5660 = vmatpush1.bf16.msra.mxu0 %v4278
        %5661 = vmatprep.subr.bf16.mxu0 0
        %5662 = vmatpush1.bf16.msra.mxu0 %v4279
        %5663 = vmatprep.subr.bf16.mxu0 0
        %5664 = vmatpush1.bf16.msra.mxu0 %v4280
        %5665 = vmatprep.mubr.bf16.mxu0 %v1692
        %5666 = vmatmul.mubr.bf16.gmra.mrb[0].mxu0 %v1691
        %v5667 = vpop.f32.mrb[0].mxu0
        %v5668 = vadd.f32 %v5628, %v5667
        %v5669 = vpop.f32.mrb[0].mxu0
        %v5670 = vpop.f32.mrb[0].mxu0
        %v5671 = vpop.f32.mrb[0].mxu0
        %5672 = vdwg.mxu0
        %5673 = vmatprep.subr.bf16.mxu0 0
        %5674 = vmatpush1.bf16.msra.mxu0 %v4281
        %5675 = vmatprep.subr.bf16.mxu0 0
        %5676 = vmatpush1.bf16.msra.mxu0 %v4282
        %5677 = vmatprep.subr.bf16.mxu0 0
        %5678 = vmatpush1.bf16.msra.mxu0 %v4283
        %5679 = vmatprep.subr.bf16.mxu0 0
        %5680 = vmatpush1.bf16.msra.mxu0 %v4284
        %5681 = vmatprep.subr.bf16.mxu0 0
        %5682 = vmatpush1.bf16.msra.mxu0 %v4285
        %5683 = vmatprep.subr.bf16.mxu0 0
        %5684 = vmatpush1.bf16.msra.mxu0 %v4286
        %5685 = vmatprep.subr.bf16.mxu0 0
        %5686 = vmatpush1.bf16.msra.mxu0 %v4287
        %5687 = vmatprep.subr.bf16.mxu0 0
        %5688 = vmatpush1.bf16.msra.mxu0 %v4288
        %5689 = vmatprep.subr.bf16.mxu0 0
        %5690 = vmatpush1.bf16.msra.mxu0 %v4289
        %5691 = vmatprep.subr.bf16.mxu0 0
        %5692 = vmatpush1.bf16.msra.mxu0 %v4290
        %5693 = vmatprep.subr.bf16.mxu0 0
        %5694 = vmatpush1.bf16.msra.mxu0 %v4291
        %5695 = vmatprep.subr.bf16.mxu0 0
        %5696 = vmatpush1.bf16.msra.mxu0 %v4292
        %5697 = vmatprep.subr.bf16.mxu0 0
        %5698 = vmatpush1.bf16.msra.mxu0 %v4293
        %5699 = vmatprep.subr.bf16.mxu0 0
        %5700 = vmatpush1.bf16.msra.mxu0 %v4294
        %5701 = vmatprep.subr.bf16.mxu0 0
        %5702 = vmatpush1.bf16.msra.mxu0 %v4295
        %5703 = vmatprep.subr.bf16.mxu0 0
        %5704 = vmatpush1.bf16.msra.mxu0 %v4296
        %5705 = vmatprep.mubr.bf16.mxu0 %v1694
        %5706 = vmatmul.mubr.bf16.gmra.mrb[0].mxu0 %v1693
        %v5707 = vpop.f32.mrb[0].mxu0
        %v5708 = vadd.f32 %v5668, %v5707
        %v5709 = vpop.f32.mrb[0].mxu0
        %v5710 = vpop.f32.mrb[0].mxu0
        %v5711 = vpop.f32.mrb[0].mxu0
        %5712 = vdwg.mxu0
        %5713 = vmatprep.subr.bf16.mxu0 0
        %5714 = vmatpush1.bf16.msra.mxu0 %v4297
        %5715 = vmatprep.subr.bf16.mxu0 0
        %5716 = vmatpush1.bf16.msra.mxu0 %v4298
        %5717 = vmatprep.subr.bf16.mxu0 0
        %5718 = vmatpush1.bf16.msra.mxu0 %v4299
        %5719 = vmatprep.subr.bf16.mxu0 0
        %5720 = vmatpush1.bf16.msra.mxu0 %v4300
        %5721 = vmatprep.subr.bf16.mxu0 0
        %5722 = vmatpush1.bf16.msra.mxu0 %v4301
        %5723 = vmatprep.subr.bf16.mxu0 0
        %5724 = vmatpush1.bf16.msra.mxu0 %v4302
        %5725 = vmatprep.subr.bf16.mxu0 0
        %5726 = vmatpush1.bf16.msra.mxu0 %v4303
        %5727 = vmatprep.subr.bf16.mxu0 0
        %5728 = vmatpush1.bf16.msra.mxu0 %v4304
        %5729 = vmatprep.subr.bf16.mxu0 0
        %5730 = vmatpush1.bf16.msra.mxu0 %v4305
        %5731 = vmatprep.subr.bf16.mxu0 0
        %5732 = vmatpush1.bf16.msra.mxu0 %v4306
        %5733 = vmatprep.subr.bf16.mxu0 0
        %5734 = vmatpush1.bf16.msra.mxu0 %v4307
        %5735 = vmatprep.subr.bf16.mxu0 0
        %5736 = vmatpush1.bf16.msra.mxu0 %v4308
        %5737 = vmatprep.subr.bf16.mxu0 0
        %5738 = vmatpush1.bf16.msra.mxu0 %v4309
        %5739 = vmatprep.subr.bf16.mxu0 0
        %5740 = vmatpush1.bf16.msra.mxu0 %v4310
        %5741 = vmatprep.subr.bf16.mxu0 0
        %5742 = vmatpush1.bf16.msra.mxu0 %v4311
        %5743 = vmatprep.subr.bf16.mxu0 0
        %5744 = vmatpush1.bf16.msra.mxu0 %v4312
        %5745 = vmatprep.mubr.bf16.mxu0 %v1696
        %5746 = vmatmul.mubr.bf16.gmra.mrb[0].mxu0 %v1695
        %v5747 = vpop.f32.mrb[0].mxu0
        %v5748 = vadd.f32 %v5708, %v5747
        %v5749 = vpop.f32.mrb[0].mxu0
        %v5750 = vpop.f32.mrb[0].mxu0
        %v5751 = vpop.f32.mrb[0].mxu0
        %5752 = vdwg.mxu0
        %5753 = vmatprep.subr.bf16.mxu0 0
        %5754 = vmatpush1.bf16.msra.mxu0 %v4313
        %5755 = vmatprep.subr.bf16.mxu0 0
        %5756 = vmatpush1.bf16.msra.mxu0 %v4314
        %5757 = vmatprep.subr.bf16.mxu0 0
        %5758 = vmatpush1.bf16.msra.mxu0 %v4315
        %5759 = vmatprep.subr.bf16.mxu0 0
        %5760 = vmatpush1.bf16.msra.mxu0 %v4316
        %5761 = vmatprep.subr.bf16.mxu0 0
        %5762 = vmatpush1.bf16.msra.mxu0 %v4317
        %5763 = vmatprep.subr.bf16.mxu0 0
        %5764 = vmatpush1.bf16.msra.mxu0 %v4318
        %5765 = vmatprep.subr.bf16.mxu0 0
        %5766 = vmatpush1.bf16.msra.mxu0 %v4319
        %5767 = vmatprep.subr.bf16.mxu0 0
        %5768 = vmatpush1.bf16.msra.mxu0 %v4320
        %5769 = vmatprep.subr.bf16.mxu0 0
        %5770 = vmatpush1.bf16.msra.mxu0 %v4321
        %5771 = vmatprep.subr.bf16.mxu0 0
        %5772 = vmatpush1.bf16.msra.mxu0 %v4322
        %5773 = vmatprep.subr.bf16.mxu0 0
        %5774 = vmatpush1.bf16.msra.mxu0 %v4323
        %5775 = vmatprep.subr.bf16.mxu0 0
        %5776 = vmatpush1.bf16.msra.mxu0 %v4324
        %5777 = vmatprep.subr.bf16.mxu0 0
        %5778 = vmatpush1.bf16.msra.mxu0 %v4325
        %5779 = vmatprep.subr.bf16.mxu0 0
        %5780 = vmatpush1.bf16.msra.mxu0 %v4326
        %5781 = vmatprep.subr.bf16.mxu0 0
        %5782 = vmatpush1.bf16.msra.mxu0 %v4327
        %5783 = vmatprep.subr.bf16.mxu0 0
        %5784 = vmatpush1.bf16.msra.mxu0 %v4328
        %5785 = vmatprep.mubr.bf16.mxu0 %v1698
        %5786 = vmatmul.mubr.bf16.gmra.mrb[0].mxu0 %v1697
        %v5787 = vpop.f32.mrb[0].mxu0
        %v5788 = vadd.f32 %v5748, %v5787
        %v5789 = vpop.f32.mrb[0].mxu0
        %v5790 = vpop.f32.mrb[0].mxu0
        %v5791 = vpop.f32.mrb[0].mxu0
        %5792 = vdwg.mxu0
        %5793 = vmatprep.subr.bf16.mxu0 0
        %5794 = vmatpush1.bf16.msra.mxu0 %v4329
        %5795 = vmatprep.subr.bf16.mxu0 0
        %5796 = vmatpush1.bf16.msra.mxu0 %v4330
        %5797 = vmatprep.subr.bf16.mxu0 0
        %5798 = vmatpush1.bf16.msra.mxu0 %v4331
        %5799 = vmatprep.subr.bf16.mxu0 0
        %5800 = vmatpush1.bf16.msra.mxu0 %v4332
        %5801 = vmatprep.subr.bf16.mxu0 0
        %5802 = vmatpush1.bf16.msra.mxu0 %v4333
        %5803 = vmatprep.subr.bf16.mxu0 0
        %5804 = vmatpush1.bf16.msra.mxu0 %v4334
        %5805 = vmatprep.subr.bf16.mxu0 0
        %5806 = vmatpush1.bf16.msra.mxu0 %v4335
        %5807 = vmatprep.subr.bf16.mxu0 0
        %5808 = vmatpush1.bf16.msra.mxu0 %v4336
        %5809 = vmatprep.subr.bf16.mxu0 0
        %5810 = vmatpush1.bf16.msra.mxu0 %v4337
        %5811 = vmatprep.subr.bf16.mxu0 0
        %5812 = vmatpush1.bf16.msra.mxu0 %v4338
        %5813 = vmatprep.subr.bf16.mxu0 0
        %5814 = vmatpush1.bf16.msra.mxu0 %v4339
        %5815 = vmatprep.subr.bf16.mxu0 0
        %5816 = vmatpush1.bf16.msra.mxu0 %v4340
        %5817 = vmatprep.subr.bf16.mxu0 0
        %5818 = vmatpush1.bf16.msra.mxu0 %v4341
        %5819 = vmatprep.subr.bf16.mxu0 0
        %5820 = vmatpush1.bf16.msra.mxu0 %v4342
        %5821 = vmatprep.subr.bf16.mxu0 0
        %5822 = vmatpush1.bf16.msra.mxu0 %v4343
        %5823 = vmatprep.subr.bf16.mxu0 0
        %5824 = vmatpush1.bf16.msra.mxu0 %v4344
        %5825 = vmatprep.mubr.bf16.mxu0 %v1700
        %5826 = vmatmul.mubr.bf16.gmra.mrb[0].mxu0 %v1699
        %v5827 = vpop.f32.mrb[0].mxu0
        %v5828 = vadd.f32 %v5788, %v5827
        %v5829 = vpop.f32.mrb[0].mxu0
        %v5830 = vpop.f32.mrb[0].mxu0
        %v5831 = vpop.f32.mrb[0].mxu0
        %5832 = vdwg.mxu0
        %5833 = vmatprep.subr.bf16.mxu0 0
        %5834 = vmatpush1.bf16.msra.mxu0 %v4345
        %5835 = vmatprep.subr.bf16.mxu0 0
        %5836 = vmatpush1.bf16.msra.mxu0 %v4346
        %5837 = vmatprep.subr.bf16.mxu0 0
        %5838 = vmatpush1.bf16.msra.mxu0 %v4347
        %5839 = vmatprep.subr.bf16.mxu0 0
        %5840 = vmatpush1.bf16.msra.mxu0 %v4348
        %5841 = vmatprep.subr.bf16.mxu0 0
        %5842 = vmatpush1.bf16.msra.mxu0 %v4349
        %5843 = vmatprep.subr.bf16.mxu0 0
        %5844 = vmatpush1.bf16.msra.mxu0 %v4350
        %5845 = vmatprep.subr.bf16.mxu0 0
        %5846 = vmatpush1.bf16.msra.mxu0 %v4351
        %5847 = vmatprep.subr.bf16.mxu0 0
        %5848 = vmatpush1.bf16.msra.mxu0 %v4352
        %5849 = vmatprep.subr.bf16.mxu0 0
        %5850 = vmatpush1.bf16.msra.mxu0 %v4353
        %5851 = vmatprep.subr.bf16.mxu0 0
        %5852 = vmatpush1.bf16.msra.mxu0 %v4354
        %5853 = vmatprep.subr.bf16.mxu0 0
        %5854 = vmatpush1.bf16.msra.mxu0 %v4355
        %5855 = vmatprep.subr.bf16.mxu0 0
        %5856 = vmatpush1.bf16.msra.mxu0 %v4356
        %5857 = vmatprep.subr.bf16.mxu0 0
        %5858 = vmatpush1.bf16.msra.mxu0 %v4357
        %5859 = vmatprep.subr.bf16.mxu0 0
        %5860 = vmatpush1.bf16.msra.mxu0 %v4358
        %5861 = vmatprep.subr.bf16.mxu0 0
        %5862 = vmatpush1.bf16.msra.mxu0 %v4359
        %5863 = vmatprep.subr.bf16.mxu0 0
        %5864 = vmatpush1.bf16.msra.mxu0 %v4360
        %5865 = vmatprep.mubr.bf16.mxu0 %v1702
        %5866 = vmatmul.mubr.bf16.gmra.mrb[0].mxu0 %v1701
        %v5867 = vpop.f32.mrb[0].mxu0
        %v5868 = vadd.f32 %v5828, %v5867
        %v5869 = vpop.f32.mrb[0].mxu0
        %v5870 = vpop.f32.mrb[0].mxu0
        %v5871 = vpop.f32.mrb[0].mxu0
        %5872 = vdwg.mxu0
        %5873 = vmatprep.subr.bf16.mxu0 0
        %5874 = vmatpush1.bf16.msra.mxu0 %v4361
        %5875 = vmatprep.subr.bf16.mxu0 0
        %5876 = vmatpush1.bf16.msra.mxu0 %v4362
        %5877 = vmatprep.subr.bf16.mxu0 0
        %5878 = vmatpush1.bf16.msra.mxu0 %v4363
        %5879 = vmatprep.subr.bf16.mxu0 0
        %5880 = vmatpush1.bf16.msra.mxu0 %v4364
        %5881 = vmatprep.subr.bf16.mxu0 0
        %5882 = vmatpush1.bf16.msra.mxu0 %v4365
        %5883 = vmatprep.subr.bf16.mxu0 0
        %5884 = vmatpush1.bf16.msra.mxu0 %v4366
        %5885 = vmatprep.subr.bf16.mxu0 0
        %5886 = vmatpush1.bf16.msra.mxu0 %v4367
        %5887 = vmatprep.subr.bf16.mxu0 0
        %5888 = vmatpush1.bf16.msra.mxu0 %v4368
        %5889 = vmatprep.subr.bf16.mxu0 0
        %5890 = vmatpush1.bf16.msra.mxu0 %v4369
        %5891 = vmatprep.subr.bf16.mxu0 0
        %5892 = vmatpush1.bf16.msra.mxu0 %v4370
        %5893 = vmatprep.subr.bf16.mxu0 0
        %5894 = vmatpush1.bf16.msra.mxu0 %v4371
        %5895 = vmatprep.subr.bf16.mxu0 0
        %5896 = vmatpush1.bf16.msra.mxu0 %v4372
        %5897 = vmatprep.subr.bf16.mxu0 0
        %5898 = vmatpush1.bf16.msra.mxu0 %v4373
        %5899 = vmatprep.subr.bf16.mxu0 0
        %5900 = vmatpush1.bf16.msra.mxu0 %v4374
        %5901 = vmatprep.subr.bf16.mxu0 0
        %5902 = vmatpush1.bf16.msra.mxu0 %v4375
        %5903 = vmatprep.subr.bf16.mxu0 0
        %5904 = vmatpush1.bf16.msra.mxu0 %v4376
        %5905 = vmatprep.mubr.bf16.mxu0 %v1704
        %5906 = vmatmul.mubr.bf16.gmra.mrb[0].mxu0 %v1703
        %v5907 = vpop.f32.mrb[0].mxu0
        %v5908 = vadd.f32 %v5868, %v5907
        %v5909 = vpop.f32.mrb[0].mxu0
        %v5910 = vpop.f32.mrb[0].mxu0
        %v5911 = vpop.f32.mrb[0].mxu0
        %5912 = vdwg.mxu0
        %5913 = vmatprep.subr.bf16.mxu0 0
        %5914 = vmatpush1.bf16.msra.mxu0 %v4377
        %5915 = vmatprep.subr.bf16.mxu0 0
        %5916 = vmatpush1.bf16.msra.mxu0 %v4378
        %5917 = vmatprep.subr.bf16.mxu0 0
        %5918 = vmatpush1.bf16.msra.mxu0 %v4379
        %5919 = vmatprep.subr.bf16.mxu0 0
        %5920 = vmatpush1.bf16.msra.mxu0 %v4380
        %5921 = vmatprep.subr.bf16.mxu0 0
        %5922 = vmatpush1.bf16.msra.mxu0 %v4381
        %5923 = vmatprep.subr.bf16.mxu0 0
        %5924 = vmatpush1.bf16.msra.mxu0 %v4382
        %5925 = vmatprep.subr.bf16.mxu0 0
        %5926 = vmatpush1.bf16.msra.mxu0 %v4383
        %5927 = vmatprep.subr.bf16.mxu0 0
        %5928 = vmatpush1.bf16.msra.mxu0 %v4384
        %5929 = vmatprep.subr.bf16.mxu0 0
        %5930 = vmatpush1.bf16.msra.mxu0 %v4385
        %5931 = vmatprep.subr.bf16.mxu0 0
        %5932 = vmatpush1.bf16.msra.mxu0 %v4386
        %5933 = vmatprep.subr.bf16.mxu0 0
        %5934 = vmatpush1.bf16.msra.mxu0 %v4387
        %5935 = vmatprep.subr.bf16.mxu0 0
        %5936 = vmatpush1.bf16.msra.mxu0 %v4388
        %5937 = vmatprep.subr.bf16.mxu0 0
        %5938 = vmatpush1.bf16.msra.mxu0 %v4389
        %5939 = vmatprep.subr.bf16.mxu0 0
        %5940 = vmatpush1.bf16.msra.mxu0 %v4390
        %5941 = vmatprep.subr.bf16.mxu0 0
        %5942 = vmatpush1.bf16.msra.mxu0 %v4391
        %5943 = vmatprep.subr.bf16.mxu0 0
        %5944 = vmatpush1.bf16.msra.mxu0 %v4392
        %5945 = vmatprep.mubr.bf16.mxu0 %v1706
        %5946 = vmatmul.mubr.bf16.gmra.mrb[0].mxu0 %v1705
        %v5947 = vpop.f32.mrb[0].mxu0
        %v5948 = vadd.f32 %v5908, %v5947
        %v5949 = vpop.f32.mrb[0].mxu0
        %v5950 = vpop.f32.mrb[0].mxu0
        %v5951 = vpop.f32.mrb[0].mxu0
        %5952 = vdwg.mxu0
        %5953 = vmatprep.subr.bf16.mxu0 0
        %5954 = vmatpush1.bf16.msra.mxu0 %v4393
        %5955 = vmatprep.subr.bf16.mxu0 0
        %5956 = vmatpush1.bf16.msra.mxu0 %v4394
        %5957 = vmatprep.subr.bf16.mxu0 0
        %5958 = vmatpush1.bf16.msra.mxu0 %v4395
        %5959 = vmatprep.subr.bf16.mxu0 0
        %5960 = vmatpush1.bf16.msra.mxu0 %v4396
        %5961 = vmatprep.subr.bf16.mxu0 0
        %5962 = vmatpush1.bf16.msra.mxu0 %v4397
        %5963 = vmatprep.subr.bf16.mxu0 0
        %5964 = vmatpush1.bf16.msra.mxu0 %v4398
        %5965 = vmatprep.subr.bf16.mxu0 0
        %5966 = vmatpush1.bf16.msra.mxu0 %v4399
        %5967 = vmatprep.subr.bf16.mxu0 0
        %5968 = vmatpush1.bf16.msra.mxu0 %v4400
        %5969 = vmatprep.subr.bf16.mxu0 0
        %5970 = vmatpush1.bf16.msra.mxu0 %v4401
        %5971 = vmatprep.subr.bf16.mxu0 0
        %5972 = vmatpush1.bf16.msra.mxu0 %v4402
        %5973 = vmatprep.subr.bf16.mxu0 0
        %5974 = vmatpush1.bf16.msra.mxu0 %v4403
        %5975 = vmatprep.subr.bf16.mxu0 0
        %5976 = vmatpush1.bf16.msra.mxu0 %v4404
        %5977 = vmatprep.subr.bf16.mxu0 0
        %5978 = vmatpush1.bf16.msra.mxu0 %v4405
        %5979 = vmatprep.subr.bf16.mxu0 0
        %5980 = vmatpush1.bf16.msra.mxu0 %v4406
        %5981 = vmatprep.subr.bf16.mxu0 0
        %5982 = vmatpush1.bf16.msra.mxu0 %v4407
        %5983 = vmatprep.subr.bf16.mxu0 0
        %5984 = vmatpush1.bf16.msra.mxu0 %v4408
        %5985 = vmatprep.mubr.bf16.mxu0 %v1708
        %5986 = vmatmul.mubr.bf16.gmra.mrb[0].mxu0 %v1707
        %v5987 = vpop.f32.mrb[0].mxu0
        %v5988 = vadd.f32 %v5948, %v5987
        %v5989 = vpop.f32.mrb[0].mxu0
        %v5990 = vpop.f32.mrb[0].mxu0
        %v5991 = vpop.f32.mrb[0].mxu0
        %5992 = vdwg.mxu0
        %5993 = vmatprep.subr.bf16.mxu0 0
        %5994 = vmatpush1.bf16.msra.mxu0 %v4409
        %5995 = vmatprep.subr.bf16.mxu0 0
        %5996 = vmatpush1.bf16.msra.mxu0 %v4410
        %5997 = vmatprep.subr.bf16.mxu0 0
        %5998 = vmatpush1.bf16.msra.mxu0 %v4411
        %5999 = vmatprep.subr.bf16.mxu0 0
        %6000 = vmatpush1.bf16.msra.mxu0 %v4412
        %6001 = vmatprep.subr.bf16.mxu0 0
        %6002 = vmatpush1.bf16.msra.mxu0 %v4413
        %6003 = vmatprep.subr.bf16.mxu0 0
        %6004 = vmatpush1.bf16.msra.mxu0 %v4414
        %6005 = vmatprep.subr.bf16.mxu0 0
        %6006 = vmatpush1.bf16.msra.mxu0 %v4415
        %6007 = vmatprep.subr.bf16.mxu0 0
        %6008 = vmatpush1.bf16.msra.mxu0 %v4416
        %6009 = vmatprep.subr.bf16.mxu0 0
        %6010 = vmatpush1.bf16.msra.mxu0 %v4417
        %6011 = vmatprep.subr.bf16.mxu0 0
        %6012 = vmatpush1.bf16.msra.mxu0 %v4418
        %6013 = vmatprep.subr.bf16.mxu0 0
        %6014 = vmatpush1.bf16.msra.mxu0 %v4419
        %6015 = vmatprep.subr.bf16.mxu0 0
        %6016 = vmatpush1.bf16.msra.mxu0 %v4420
        %6017 = vmatprep.subr.bf16.mxu0 0
        %6018 = vmatpush1.bf16.msra.mxu0 %v4421
        %6019 = vmatprep.subr.bf16.mxu0 0
        %6020 = vmatpush1.bf16.msra.mxu0 %v4422
        %6021 = vmatprep.subr.bf16.mxu0 0
        %6022 = vmatpush1.bf16.msra.mxu0 %v4423
        %6023 = vmatprep.subr.bf16.mxu0 0
        %6024 = vmatpush1.bf16.msra.mxu0 %v4424
        %6025 = vmatprep.mubr.bf16.mxu0 %v1710
        %6026 = vmatmul.mubr.bf16.gmra.mrb[0].mxu0 %v1709
        %v6027 = vpop.f32.mrb[0].mxu0
        %v6028 = vadd.f32 %v5988, %v6027
        %v6029 = vpop.f32.mrb[0].mxu0
        %v6030 = vpop.f32.mrb[0].mxu0
        %v6031 = vpop.f32.mrb[0].mxu0
        %6032 = vdwg.mxu0
        %6033 = vmatprep.subr.bf16.mxu0 0
        %6034 = vmatpush1.bf16.msra.mxu0 %v4425
        %6035 = vmatprep.subr.bf16.mxu0 0
        %6036 = vmatpush1.bf16.msra.mxu0 %v4426
        %6037 = vmatprep.subr.bf16.mxu0 0
        %6038 = vmatpush1.bf16.msra.mxu0 %v4427
        %6039 = vmatprep.subr.bf16.mxu0 0
        %6040 = vmatpush1.bf16.msra.mxu0 %v4428
        %6041 = vmatprep.subr.bf16.mxu0 0
        %6042 = vmatpush1.bf16.msra.mxu0 %v4429
        %6043 = vmatprep.subr.bf16.mxu0 0
        %6044 = vmatpush1.bf16.msra.mxu0 %v4430
        %6045 = vmatprep.subr.bf16.mxu0 0
        %6046 = vmatpush1.bf16.msra.mxu0 %v4431
        %6047 = vmatprep.subr.bf16.mxu0 0
        %6048 = vmatpush1.bf16.msra.mxu0 %v4432
        %6049 = vmatprep.subr.bf16.mxu0 0
        %6050 = vmatpush1.bf16.msra.mxu0 %v4433
        %6051 = vmatprep.subr.bf16.mxu0 0
        %6052 = vmatpush1.bf16.msra.mxu0 %v4434
        %6053 = vmatprep.subr.bf16.mxu0 0
        %6054 = vmatpush1.bf16.msra.mxu0 %v4435
        %6055 = vmatprep.subr.bf16.mxu0 0
        %6056 = vmatpush1.bf16.msra.mxu0 %v4436
        %6057 = vmatprep.subr.bf16.mxu0 0
        %6058 = vmatpush1.bf16.msra.mxu0 %v4437
        %6059 = vmatprep.subr.bf16.mxu0 0
        %6060 = vmatpush1.bf16.msra.mxu0 %v4438
        %6061 = vmatprep.subr.bf16.mxu0 0
        %6062 = vmatpush1.bf16.msra.mxu0 %v4439
        %6063 = vmatprep.subr.bf16.mxu0 0
        %6064 = vmatpush1.bf16.msra.mxu0 %v4440
        %6065 = vmatprep.mubr.bf16.mxu0 %v1712
        %6066 = vmatmul.mubr.bf16.gmra.mrb[0].mxu0 %v1711
        %v6067 = vpop.f32.mrb[0].mxu0
        %v6068 = vadd.f32 %v6028, %v6067
        %v6069 = vpop.f32.mrb[0].mxu0
        %v6070 = vpop.f32.mrb[0].mxu0
        %v6071 = vpop.f32.mrb[0].mxu0
        %6072 = vdwg.mxu0
        %6073 = vmatprep.subr.bf16.mxu0 0
        %6074 = vmatpush1.bf16.msra.mxu0 %v4441
        %6075 = vmatprep.subr.bf16.mxu0 0
        %6076 = vmatpush1.bf16.msra.mxu0 %v4442
        %6077 = vmatprep.subr.bf16.mxu0 0
        %6078 = vmatpush1.bf16.msra.mxu0 %v4443
        %6079 = vmatprep.subr.bf16.mxu0 0
        %6080 = vmatpush1.bf16.msra.mxu0 %v4444
        %6081 = vmatprep.subr.bf16.mxu0 0
        %6082 = vmatpush1.bf16.msra.mxu0 %v4445
        %6083 = vmatprep.subr.bf16.mxu0 0
        %6084 = vmatpush1.bf16.msra.mxu0 %v4446
        %6085 = vmatprep.subr.bf16.mxu0 0
        %6086 = vmatpush1.bf16.msra.mxu0 %v4447
        %6087 = vmatprep.subr.bf16.mxu0 0
        %6088 = vmatpush1.bf16.msra.mxu0 %v4448
        %6089 = vmatprep.subr.bf16.mxu0 0
        %6090 = vmatpush1.bf16.msra.mxu0 %v4449
        %6091 = vmatprep.subr.bf16.mxu0 0
        %6092 = vmatpush1.bf16.msra.mxu0 %v4450
        %6093 = vmatprep.subr.bf16.mxu0 0
        %6094 = vmatpush1.bf16.msra.mxu0 %v4451
        %6095 = vmatprep.subr.bf16.mxu0 0
        %6096 = vmatpush1.bf16.msra.mxu0 %v4452
        %6097 = vmatprep.subr.bf16.mxu0 0
        %6098 = vmatpush1.bf16.msra.mxu0 %v4453
        %6099 = vmatprep.subr.bf16.mxu0 0
        %6100 = vmatpush1.bf16.msra.mxu0 %v4454
        %6101 = vmatprep.subr.bf16.mxu0 0
        %6102 = vmatpush1.bf16.msra.mxu0 %v4455
        %6103 = vmatprep.subr.bf16.mxu0 0
        %6104 = vmatpush1.bf16.msra.mxu0 %v4456
        %6105 = vmatprep.mubr.bf16.mxu0 %v1714
        %6106 = vmatmul.mubr.bf16.gmra.mrb[0].mxu0 %v1713
        %v6107 = vpop.f32.mrb[0].mxu0
        %v6108 = vadd.f32 %v6068, %v6107
        %v6109 = vpop.f32.mrb[0].mxu0
        %v6110 = vpop.f32.mrb[0].mxu0
        %v6111 = vpop.f32.mrb[0].mxu0
        %6112 = vdwg.mxu0
        %6113 = vmatprep.subr.bf16.mxu0 0
        %6114 = vmatpush1.bf16.msra.mxu0 %v4457
        %6115 = vmatprep.subr.bf16.mxu0 0
        %6116 = vmatpush1.bf16.msra.mxu0 %v4458
        %6117 = vmatprep.subr.bf16.mxu0 0
        %6118 = vmatpush1.bf16.msra.mxu0 %v4459
        %6119 = vmatprep.subr.bf16.mxu0 0
        %6120 = vmatpush1.bf16.msra.mxu0 %v4460
        %6121 = vmatprep.subr.bf16.mxu0 0
        %6122 = vmatpush1.bf16.msra.mxu0 %v4461
        %6123 = vmatprep.subr.bf16.mxu0 0
        %6124 = vmatpush1.bf16.msra.mxu0 %v4462
        %6125 = vmatprep.subr.bf16.mxu0 0
        %6126 = vmatpush1.bf16.msra.mxu0 %v4463
        %6127 = vmatprep.subr.bf16.mxu0 0
        %6128 = vmatpush1.bf16.msra.mxu0 %v4464
        %6129 = vmatprep.subr.bf16.mxu0 0
        %6130 = vmatpush1.bf16.msra.mxu0 %v4465
        %6131 = vmatprep.subr.bf16.mxu0 0
        %6132 = vmatpush1.bf16.msra.mxu0 %v4466
        %6133 = vmatprep.subr.bf16.mxu0 0
        %6134 = vmatpush1.bf16.msra.mxu0 %v4467
        %6135 = vmatprep.subr.bf16.mxu0 0
        %6136 = vmatpush1.bf16.msra.mxu0 %v4468
        %6137 = vmatprep.subr.bf16.mxu0 0
        %6138 = vmatpush1.bf16.msra.mxu0 %v4469
        %6139 = vmatprep.subr.bf16.mxu0 0
        %6140 = vmatpush1.bf16.msra.mxu0 %v4470
        %6141 = vmatprep.subr.bf16.mxu0 0
        %6142 = vmatpush1.bf16.msra.mxu0 %v4471
        %6143 = vmatprep.subr.bf16.mxu0 0
        %6144 = vmatpush1.bf16.msra.mxu0 %v4472
        %6145 = vmatprep.mubr.bf16.mxu0 %v1716
        %6146 = vmatmul.mubr.bf16.gmra.mrb[0].mxu0 %v1715
        %v6147 = vpop.f32.mrb[0].mxu0
        %v6148 = vadd.f32 %v6108, %v6147
        %v6149 = vpop.f32.mrb[0].mxu0
        %v6150 = vpop.f32.mrb[0].mxu0
        %v6151 = vpop.f32.mrb[0].mxu0
        %6152 = vdwg.mxu0
        %6153 = vmatprep.subr.bf16.mxu0 0
        %6154 = vmatpush1.bf16.msra.mxu0 %v4473
        %6155 = vmatprep.subr.bf16.mxu0 0
        %6156 = vmatpush1.bf16.msra.mxu0 %v4474
        %6157 = vmatprep.subr.bf16.mxu0 0
        %6158 = vmatpush1.bf16.msra.mxu0 %v4475
        %6159 = vmatprep.subr.bf16.mxu0 0
        %6160 = vmatpush1.bf16.msra.mxu0 %v4476
        %6161 = vmatprep.subr.bf16.mxu0 0
        %6162 = vmatpush1.bf16.msra.mxu0 %v4477
        %6163 = vmatprep.subr.bf16.mxu0 0
        %6164 = vmatpush1.bf16.msra.mxu0 %v4478
        %6165 = vmatprep.subr.bf16.mxu0 0
        %6166 = vmatpush1.bf16.msra.mxu0 %v4479
        %6167 = vmatprep.subr.bf16.mxu0 0
        %6168 = vmatpush1.bf16.msra.mxu0 %v4480
        %6169 = vmatprep.subr.bf16.mxu0 0
        %6170 = vmatpush1.bf16.msra.mxu0 %v4481
        %6171 = vmatprep.subr.bf16.mxu0 0
        %6172 = vmatpush1.bf16.msra.mxu0 %v4482
        %6173 = vmatprep.subr.bf16.mxu0 0
        %6174 = vmatpush1.bf16.msra.mxu0 %v4483
        %6175 = vmatprep.subr.bf16.mxu0 0
        %6176 = vmatpush1.bf16.msra.mxu0 %v4484
        %6177 = vmatprep.subr.bf16.mxu0 0
        %6178 = vmatpush1.bf16.msra.mxu0 %v4485
        %6179 = vmatprep.subr.bf16.mxu0 0
        %6180 = vmatpush1.bf16.msra.mxu0 %v4486
        %6181 = vmatprep.subr.bf16.mxu0 0
        %6182 = vmatpush1.bf16.msra.mxu0 %v4487
        %6183 = vmatprep.subr.bf16.mxu0 0
        %6184 = vmatpush1.bf16.msra.mxu0 %v4488
        %6185 = vmatprep.mubr.bf16.mxu0 %v1718
        %6186 = vmatmul.mubr.bf16.gmra.mrb[0].mxu0 %v1717
        %v6187 = vpop.f32.mrb[0].mxu0
        %v6188 = vadd.f32 %v6148, %v6187
        %v6189 = vpop.f32.mrb[0].mxu0
        %v6190 = vpop.f32.mrb[0].mxu0
        %v6191 = vpop.f32.mrb[0].mxu0
        %6192 = vdwg.mxu0
        %6193 = vmatprep.subr.bf16.mxu0 0
        %6194 = vmatpush1.bf16.msra.mxu0 %v4489
        %6195 = vmatprep.subr.bf16.mxu0 0
        %6196 = vmatpush1.bf16.msra.mxu0 %v4490
        %6197 = vmatprep.subr.bf16.mxu0 0
        %6198 = vmatpush1.bf16.msra.mxu0 %v4491
        %6199 = vmatprep.subr.bf16.mxu0 0
        %6200 = vmatpush1.bf16.msra.mxu0 %v4492
        %6201 = vmatprep.subr.bf16.mxu0 0
        %6202 = vmatpush1.bf16.msra.mxu0 %v4493
        %6203 = vmatprep.subr.bf16.mxu0 0
        %6204 = vmatpush1.bf16.msra.mxu0 %v4494
        %6205 = vmatprep.subr.bf16.mxu0 0
        %6206 = vmatpush1.bf16.msra.mxu0 %v4495
        %6207 = vmatprep.subr.bf16.mxu0 0
        %6208 = vmatpush1.bf16.msra.mxu0 %v4496
        %6209 = vmatprep.subr.bf16.mxu0 0
        %6210 = vmatpush1.bf16.msra.mxu0 %v4497
        %6211 = vmatprep.subr.bf16.mxu0 0
        %6212 = vmatpush1.bf16.msra.mxu0 %v4498
        %6213 = vmatprep.subr.bf16.mxu0 0
        %6214 = vmatpush1.bf16.msra.mxu0 %v4499
        %6215 = vmatprep.subr.bf16.mxu0 0
        %6216 = vmatpush1.bf16.msra.mxu0 %v4500
        %6217 = vmatprep.subr.bf16.mxu0 0
        %6218 = vmatpush1.bf16.msra.mxu0 %v4501
        %6219 = vmatprep.subr.bf16.mxu0 0
        %6220 = vmatpush1.bf16.msra.mxu0 %v4502
        %6221 = vmatprep.subr.bf16.mxu0 0
        %6222 = vmatpush1.bf16.msra.mxu0 %v4503
        %6223 = vmatprep.subr.bf16.mxu0 0
        %6224 = vmatpush1.bf16.msra.mxu0 %v4504
        %6225 = vmatprep.mubr.bf16.mxu0 %v1720
        %6226 = vmatmul.mubr.bf16.gmra.mrb[0].mxu0 %v1719
        %v6227 = vpop.f32.mrb[0].mxu0
        %v6228 = vadd.f32 %v6188, %v6227
        %v6229 = vpop.f32.mrb[0].mxu0
        %v6230 = vpop.f32.mrb[0].mxu0
        %v6231 = vpop.f32.mrb[0].mxu0
        %6232 = vdwg.mxu0
        %6233 = vmatprep.subr.bf16.mxu0 0
        %6234 = vmatpush1.bf16.msra.mxu0 %v4505
        %6235 = vmatprep.subr.bf16.mxu0 0
        %6236 = vmatpush1.bf16.msra.mxu0 %v4506
        %6237 = vmatprep.subr.bf16.mxu0 0
        %6238 = vmatpush1.bf16.msra.mxu0 %v4507
        %6239 = vmatprep.subr.bf16.mxu0 0
        %6240 = vmatpush1.bf16.msra.mxu0 %v4508
        %6241 = vmatprep.subr.bf16.mxu0 0
        %6242 = vmatpush1.bf16.msra.mxu0 %v4509
        %6243 = vmatprep.subr.bf16.mxu0 0
        %6244 = vmatpush1.bf16.msra.mxu0 %v4510
        %6245 = vmatprep.subr.bf16.mxu0 0
        %6246 = vmatpush1.bf16.msra.mxu0 %v4511
        %6247 = vmatprep.subr.bf16.mxu0 0
        %6248 = vmatpush1.bf16.msra.mxu0 %v4512
        %6249 = vmatprep.subr.bf16.mxu0 0
        %6250 = vmatpush1.bf16.msra.mxu0 %v4513
        %6251 = vmatprep.subr.bf16.mxu0 0
        %6252 = vmatpush1.bf16.msra.mxu0 %v4514
        %6253 = vmatprep.subr.bf16.mxu0 0
        %6254 = vmatpush1.bf16.msra.mxu0 %v4515
        %6255 = vmatprep.subr.bf16.mxu0 0
        %6256 = vmatpush1.bf16.msra.mxu0 %v4516
        %6257 = vmatprep.subr.bf16.mxu0 0
        %6258 = vmatpush1.bf16.msra.mxu0 %v4517
        %6259 = vmatprep.subr.bf16.mxu0 0
        %6260 = vmatpush1.bf16.msra.mxu0 %v4518
        %6261 = vmatprep.subr.bf16.mxu0 0
        %6262 = vmatpush1.bf16.msra.mxu0 %v4519
        %6263 = vmatprep.subr.bf16.mxu0 0
        %6264 = vmatpush1.bf16.msra.mxu0 %v4520
        %6265 = vmatprep.mubr.bf16.mxu0 %v1722
        %6266 = vmatmul.mubr.bf16.gmra.mrb[0].mxu0 %v1721
        %v6267 = vpop.f32.mrb[0].mxu0
        %v6268 = vadd.f32 %v6228, %v6267
        %v6269 = vpop.f32.mrb[0].mxu0
        %v6270 = vpop.f32.mrb[0].mxu0
        %v6271 = vpop.f32.mrb[0].mxu0
        %6272 = vdwg.mxu0
        %6273 = vmatprep.subr.bf16.mxu0 0
        %6274 = vmatpush1.bf16.msra.mxu0 %v4521
        %6275 = vmatprep.subr.bf16.mxu0 0
        %6276 = vmatpush1.bf16.msra.mxu0 %v4522
        %6277 = vmatprep.subr.bf16.mxu0 0
        %6278 = vmatpush1.bf16.msra.mxu0 %v4523
        %6279 = vmatprep.subr.bf16.mxu0 0
        %6280 = vmatpush1.bf16.msra.mxu0 %v4524
        %6281 = vmatprep.subr.bf16.mxu0 0
        %6282 = vmatpush1.bf16.msra.mxu0 %v4525
        %6283 = vmatprep.subr.bf16.mxu0 0
        %6284 = vmatpush1.bf16.msra.mxu0 %v4526
        %6285 = vmatprep.subr.bf16.mxu0 0
        %6286 = vmatpush1.bf16.msra.mxu0 %v4527
        %6287 = vmatprep.subr.bf16.mxu0 0
        %6288 = vmatpush1.bf16.msra.mxu0 %v4528
        %6289 = vmatprep.subr.bf16.mxu0 0
        %6290 = vmatpush1.bf16.msra.mxu0 %v4529
        %6291 = vmatprep.subr.bf16.mxu0 0
        %6292 = vmatpush1.bf16.msra.mxu0 %v4530
        %6293 = vmatprep.subr.bf16.mxu0 0
        %6294 = vmatpush1.bf16.msra.mxu0 %v4531
        %6295 = vmatprep.subr.bf16.mxu0 0
        %6296 = vmatpush1.bf16.msra.mxu0 %v4532
        %6297 = vmatprep.subr.bf16.mxu0 0
        %6298 = vmatpush1.bf16.msra.mxu0 %v4533
        %6299 = vmatprep.subr.bf16.mxu0 0
        %6300 = vmatpush1.bf16.msra.mxu0 %v4534
        %6301 = vmatprep.subr.bf16.mxu0 0
        %6302 = vmatpush1.bf16.msra.mxu0 %v4535
        %6303 = vmatprep.subr.bf16.mxu0 0
        %6304 = vmatpush1.bf16.msra.mxu0 %v4536
        %6305 = vmatprep.mubr.bf16.mxu0 %v1724
        %6306 = vmatmul.mubr.bf16.gmra.mrb[0].mxu0 %v1723
        %v6307 = vpop.f32.mrb[0].mxu0
        %v6308 = vadd.f32 %v6268, %v6307
        %v6309 = vpop.f32.mrb[0].mxu0
        %v6310 = vpop.f32.mrb[0].mxu0
        %v6311 = vpop.f32.mrb[0].mxu0
        %6312 = vdwg.mxu0
        %6313 = vmatprep.subr.bf16.mxu0 0
        %6314 = vmatpush1.bf16.msra.mxu0 %v4537
        %6315 = vmatprep.subr.bf16.mxu0 0
        %6316 = vmatpush1.bf16.msra.mxu0 %v4538
        %6317 = vmatprep.subr.bf16.mxu0 0
        %6318 = vmatpush1.bf16.msra.mxu0 %v4539
        %6319 = vmatprep.subr.bf16.mxu0 0
        %6320 = vmatpush1.bf16.msra.mxu0 %v4540
        %6321 = vmatprep.subr.bf16.mxu0 0
        %6322 = vmatpush1.bf16.msra.mxu0 %v4541
        %6323 = vmatprep.subr.bf16.mxu0 0
        %6324 = vmatpush1.bf16.msra.mxu0 %v4542
        %6325 = vmatprep.subr.bf16.mxu0 0
        %6326 = vmatpush1.bf16.msra.mxu0 %v4543
        %6327 = vmatprep.subr.bf16.mxu0 0
        %6328 = vmatpush1.bf16.msra.mxu0 %v4544
        %6329 = vmatprep.subr.bf16.mxu0 0
        %6330 = vmatpush1.bf16.msra.mxu0 %v4545
        %6331 = vmatprep.subr.bf16.mxu0 0
        %6332 = vmatpush1.bf16.msra.mxu0 %v4546
        %6333 = vmatprep.subr.bf16.mxu0 0
        %6334 = vmatpush1.bf16.msra.mxu0 %v4547
        %6335 = vmatprep.subr.bf16.mxu0 0
        %6336 = vmatpush1.bf16.msra.mxu0 %v4548
        %6337 = vmatprep.subr.bf16.mxu0 0
        %6338 = vmatpush1.bf16.msra.mxu0 %v4549
        %6339 = vmatprep.subr.bf16.mxu0 0
        %6340 = vmatpush1.bf16.msra.mxu0 %v4550
        %6341 = vmatprep.subr.bf16.mxu0 0
        %6342 = vmatpush1.bf16.msra.mxu0 %v4551
        %6343 = vmatprep.subr.bf16.mxu0 0
        %6344 = vmatpush1.bf16.msra.mxu0 %v4552
        %6345 = vmatprep.mubr.bf16.mxu0 %v1726
        %6346 = vmatmul.mubr.bf16.gmra.mrb[0].mxu0 %v1725
        %v6347 = vpop.f32.mrb[0].mxu0
        %v6348 = vadd.f32 %v6308, %v6347
        %v6349 = vpop.f32.mrb[0].mxu0
        %v6350 = vpop.f32.mrb[0].mxu0
        %v6351 = vpop.f32.mrb[0].mxu0
        %6352 = vdwg.mxu0
        %6353 = vmatprep.subr.bf16.mxu0 0
        %6354 = vmatpush1.bf16.msra.mxu0 %v4553
        %6355 = vmatprep.subr.bf16.mxu0 0
        %6356 = vmatpush1.bf16.msra.mxu0 %v4554
        %6357 = vmatprep.subr.bf16.mxu0 0
        %6358 = vmatpush1.bf16.msra.mxu0 %v4555
        %6359 = vmatprep.subr.bf16.mxu0 0
        %6360 = vmatpush1.bf16.msra.mxu0 %v4556
        %6361 = vmatprep.subr.bf16.mxu0 0
        %6362 = vmatpush1.bf16.msra.mxu0 %v4557
        %6363 = vmatprep.subr.bf16.mxu0 0
        %6364 = vmatpush1.bf16.msra.mxu0 %v4558
        %6365 = vmatprep.subr.bf16.mxu0 0
        %6366 = vmatpush1.bf16.msra.mxu0 %v4559
        %6367 = vmatprep.subr.bf16.mxu0 0
        %6368 = vmatpush1.bf16.msra.mxu0 %v4560
        %6369 = vmatprep.subr.bf16.mxu0 0
        %6370 = vmatpush1.bf16.msra.mxu0 %v4561
        %6371 = vmatprep.subr.bf16.mxu0 0
        %6372 = vmatpush1.bf16.msra.mxu0 %v4562
        %6373 = vmatprep.subr.bf16.mxu0 0
        %6374 = vmatpush1.bf16.msra.mxu0 %v4563
        %6375 = vmatprep.subr.bf16.mxu0 0
        %6376 = vmatpush1.bf16.msra.mxu0 %v4564
        %6377 = vmatprep.subr.bf16.mxu0 0
        %6378 = vmatpush1.bf16.msra.mxu0 %v4565
        %6379 = vmatprep.subr.bf16.mxu0 0
        %6380 = vmatpush1.bf16.msra.mxu0 %v4566
        %6381 = vmatprep.subr.bf16.mxu0 0
        %6382 = vmatpush1.bf16.msra.mxu0 %v4567
        %6383 = vmatprep.subr.bf16.mxu0 0
        %6384 = vmatpush1.bf16.msra.mxu0 %v4568
        %6385 = vmatprep.mubr.bf16.mxu0 %v1728
        %6386 = vmatmul.mubr.bf16.gmra.mrb[0].mxu0 %v1727
        %v6387 = vpop.f32.mrb[0].mxu0
        %v6388 = vadd.f32 %v6348, %v6387
        %v6389 = vpop.f32.mrb[0].mxu0
        %v6390 = vpop.f32.mrb[0].mxu0
        %v6391 = vpop.f32.mrb[0].mxu0
        %6392 = vdwg.mxu0
        %6393 = vmatprep.subr.bf16.mxu0 0
        %6394 = vmatpush1.bf16.msra.mxu0 %v4569
        %6395 = vmatprep.subr.bf16.mxu0 0
        %6396 = vmatpush1.bf16.msra.mxu0 %v4570
        %6397 = vmatprep.subr.bf16.mxu0 0
        %6398 = vmatpush1.bf16.msra.mxu0 %v4571
        %6399 = vmatprep.subr.bf16.mxu0 0
        %6400 = vmatpush1.bf16.msra.mxu0 %v4572
        %6401 = vmatprep.subr.bf16.mxu0 0
        %6402 = vmatpush1.bf16.msra.mxu0 %v4573
        %6403 = vmatprep.subr.bf16.mxu0 0
        %6404 = vmatpush1.bf16.msra.mxu0 %v4574
        %6405 = vmatprep.subr.bf16.mxu0 0
        %6406 = vmatpush1.bf16.msra.mxu0 %v4575
        %6407 = vmatprep.subr.bf16.mxu0 0
        %6408 = vmatpush1.bf16.msra.mxu0 %v4576
        %6409 = vmatprep.subr.bf16.mxu0 0
        %6410 = vmatpush1.bf16.msra.mxu0 %v4577
        %6411 = vmatprep.subr.bf16.mxu0 0
        %6412 = vmatpush1.bf16.msra.mxu0 %v4578
        %6413 = vmatprep.subr.bf16.mxu0 0
        %6414 = vmatpush1.bf16.msra.mxu0 %v4579
        %6415 = vmatprep.subr.bf16.mxu0 0
        %6416 = vmatpush1.bf16.msra.mxu0 %v4580
        %6417 = vmatprep.subr.bf16.mxu0 0
        %6418 = vmatpush1.bf16.msra.mxu0 %v4581
        %6419 = vmatprep.subr.bf16.mxu0 0
        %6420 = vmatpush1.bf16.msra.mxu0 %v4582
        %6421 = vmatprep.subr.bf16.mxu0 0
        %6422 = vmatpush1.bf16.msra.mxu0 %v4583
        %6423 = vmatprep.subr.bf16.mxu0 0
        %6424 = vmatpush1.bf16.msra.mxu0 %v4584
        %6425 = vmatprep.mubr.bf16.mxu0 %v1730
        %6426 = vmatmul.mubr.bf16.gmra.mrb[0].mxu0 %v1729
        %v6427 = vpop.f32.mrb[0].mxu0
        %v6428 = vadd.f32 %v6388, %v6427
        %v6429 = vpop.f32.mrb[0].mxu0
        %v6430 = vpop.f32.mrb[0].mxu0
        %v6431 = vpop.f32.mrb[0].mxu0
        %6432 = vdwg.mxu0
        %6433 = vmatprep.subr.bf16.mxu0 0
        %6434 = vmatpush1.bf16.msra.mxu0 %v4585
        %6435 = vmatprep.subr.bf16.mxu0 0
        %6436 = vmatpush1.bf16.msra.mxu0 %v4586
        %6437 = vmatprep.subr.bf16.mxu0 0
        %6438 = vmatpush1.bf16.msra.mxu0 %v4587
        %6439 = vmatprep.subr.bf16.mxu0 0
        %6440 = vmatpush1.bf16.msra.mxu0 %v4588
        %6441 = vmatprep.subr.bf16.mxu0 0
        %6442 = vmatpush1.bf16.msra.mxu0 %v4589
        %6443 = vmatprep.subr.bf16.mxu0 0
        %6444 = vmatpush1.bf16.msra.mxu0 %v4590
        %6445 = vmatprep.subr.bf16.mxu0 0
        %6446 = vmatpush1.bf16.msra.mxu0 %v4591
        %6447 = vmatprep.subr.bf16.mxu0 0
        %6448 = vmatpush1.bf16.msra.mxu0 %v4592
        %6449 = vmatprep.subr.bf16.mxu0 0
        %6450 = vmatpush1.bf16.msra.mxu0 %v4593
        %6451 = vmatprep.subr.bf16.mxu0 0
        %6452 = vmatpush1.bf16.msra.mxu0 %v4594
        %6453 = vmatprep.subr.bf16.mxu0 0
        %6454 = vmatpush1.bf16.msra.mxu0 %v4595
        %6455 = vmatprep.subr.bf16.mxu0 0
        %6456 = vmatpush1.bf16.msra.mxu0 %v4596
        %6457 = vmatprep.subr.bf16.mxu0 0
        %6458 = vmatpush1.bf16.msra.mxu0 %v4597
        %6459 = vmatprep.subr.bf16.mxu0 0
        %6460 = vmatpush1.bf16.msra.mxu0 %v4598
        %6461 = vmatprep.subr.bf16.mxu0 0
        %6462 = vmatpush1.bf16.msra.mxu0 %v4599
        %6463 = vmatprep.subr.bf16.mxu0 0
        %6464 = vmatpush1.bf16.msra.mxu0 %v4600
        %6465 = vmatprep.mubr.bf16.mxu0 %v1732
        %6466 = vmatmul.mubr.bf16.gmra.mrb[0].mxu0 %v1731
        %v6467 = vpop.f32.mrb[0].mxu0
        %v6468 = vadd.f32 %v6428, %v6467
        %v6469 = vpop.f32.mrb[0].mxu0
        %v6470 = vpop.f32.mrb[0].mxu0
        %v6471 = vpop.f32.mrb[0].mxu0
        %6472 = vdwg.mxu0
        %6473 = vmatprep.subr.bf16.mxu0 0
        %6474 = vmatpush1.bf16.msra.mxu0 %v4601
        %6475 = vmatprep.subr.bf16.mxu0 0
        %6476 = vmatpush1.bf16.msra.mxu0 %v4602
        %6477 = vmatprep.subr.bf16.mxu0 0
        %6478 = vmatpush1.bf16.msra.mxu0 %v4603
        %6479 = vmatprep.subr.bf16.mxu0 0
        %6480 = vmatpush1.bf16.msra.mxu0 %v4604
        %6481 = vmatprep.subr.bf16.mxu0 0
        %6482 = vmatpush1.bf16.msra.mxu0 %v4605
        %6483 = vmatprep.subr.bf16.mxu0 0
        %6484 = vmatpush1.bf16.msra.mxu0 %v4606
        %6485 = vmatprep.subr.bf16.mxu0 0
        %6486 = vmatpush1.bf16.msra.mxu0 %v4607
        %6487 = vmatprep.subr.bf16.mxu0 0
        %6488 = vmatpush1.bf16.msra.mxu0 %v4608
        %6489 = vmatprep.subr.bf16.mxu0 0
        %6490 = vmatpush1.bf16.msra.mxu0 %v4609
        %6491 = vmatprep.subr.bf16.mxu0 0
        %6492 = vmatpush1.bf16.msra.mxu0 %v4610
        %6493 = vmatprep.subr.bf16.mxu0 0
        %6494 = vmatpush1.bf16.msra.mxu0 %v4611
        %6495 = vmatprep.subr.bf16.mxu0 0
        %6496 = vmatpush1.bf16.msra.mxu0 %v4612
        %6497 = vmatprep.subr.bf16.mxu0 0
        %6498 = vmatpush1.bf16.msra.mxu0 %v4613
        %6499 = vmatprep.subr.bf16.mxu0 0
        %6500 = vmatpush1.bf16.msra.mxu0 %v4614
        %6501 = vmatprep.subr.bf16.mxu0 0
        %6502 = vmatpush1.bf16.msra.mxu0 %v4615
        %6503 = vmatprep.subr.bf16.mxu0 0
        %6504 = vmatpush1.bf16.msra.mxu0 %v4616
        %6505 = vmatprep.mubr.bf16.mxu0 %v1734
        %6506 = vmatmul.mubr.bf16.gmra.mrb[0].mxu0 %v1733
        %v6507 = vpop.f32.mrb[0].mxu0
        %v6508 = vadd.f32 %v6468, %v6507
        %v6509 = vpop.f32.mrb[0].mxu0
        %v6510 = vpop.f32.mrb[0].mxu0
        %v6511 = vpop.f32.mrb[0].mxu0
        %6512 = vdwg.mxu0
        %6513 = vmatprep.subr.bf16.mxu0 0
        %6514 = vmatpush1.bf16.msra.mxu0 %v4617
        %6515 = vmatprep.subr.bf16.mxu0 0
        %6516 = vmatpush1.bf16.msra.mxu0 %v4618
        %6517 = vmatprep.subr.bf16.mxu0 0
        %6518 = vmatpush1.bf16.msra.mxu0 %v4619
        %6519 = vmatprep.subr.bf16.mxu0 0
        %6520 = vmatpush1.bf16.msra.mxu0 %v4620
        %6521 = vmatprep.subr.bf16.mxu0 0
        %6522 = vmatpush1.bf16.msra.mxu0 %v4621
        %6523 = vmatprep.subr.bf16.mxu0 0
        %6524 = vmatpush1.bf16.msra.mxu0 %v4622
        %6525 = vmatprep.subr.bf16.mxu0 0
        %6526 = vmatpush1.bf16.msra.mxu0 %v4623
        %6527 = vmatprep.subr.bf16.mxu0 0
        %6528 = vmatpush1.bf16.msra.mxu0 %v4624
        %6529 = vmatprep.subr.bf16.mxu0 0
        %6530 = vmatpush1.bf16.msra.mxu0 %v4625
        %6531 = vmatprep.subr.bf16.mxu0 0
        %6532 = vmatpush1.bf16.msra.mxu0 %v4626
        %6533 = vmatprep.subr.bf16.mxu0 0
        %6534 = vmatpush1.bf16.msra.mxu0 %v4627
        %6535 = vmatprep.subr.bf16.mxu0 0
        %6536 = vmatpush1.bf16.msra.mxu0 %v4628
        %6537 = vmatprep.subr.bf16.mxu0 0
        %6538 = vmatpush1.bf16.msra.mxu0 %v4629
        %6539 = vmatprep.subr.bf16.mxu0 0
        %6540 = vmatpush1.bf16.msra.mxu0 %v4630
        %6541 = vmatprep.subr.bf16.mxu0 0
        %6542 = vmatpush1.bf16.msra.mxu0 %v4631
        %6543 = vmatprep.subr.bf16.mxu0 0
        %6544 = vmatpush1.bf16.msra.mxu0 %v4632
        %6545 = vmatprep.mubr.bf16.mxu0 %v1736
        %6546 = vmatmul.mubr.bf16.gmra.mrb[0].mxu0 %v1735
        %v6547 = vpop.f32.mrb[0].mxu0
        %v6548 = vadd.f32 %v6508, %v6547
        %v6549 = vpop.f32.mrb[0].mxu0
        %v6550 = vpop.f32.mrb[0].mxu0
        %v6551 = vpop.f32.mrb[0].mxu0
        %6552 = vdwg.mxu0
        %6553 = vmatprep.subr.bf16.mxu0 0
        %6554 = vmatpush1.bf16.msra.mxu0 %v4633
        %6555 = vmatprep.subr.bf16.mxu0 0
        %6556 = vmatpush1.bf16.msra.mxu0 %v4634
        %6557 = vmatprep.subr.bf16.mxu0 0
        %6558 = vmatpush1.bf16.msra.mxu0 %v4635
        %6559 = vmatprep.subr.bf16.mxu0 0
        %6560 = vmatpush1.bf16.msra.mxu0 %v4636
        %6561 = vmatprep.subr.bf16.mxu0 0
        %6562 = vmatpush1.bf16.msra.mxu0 %v4637
        %6563 = vmatprep.subr.bf16.mxu0 0
        %6564 = vmatpush1.bf16.msra.mxu0 %v4638
        %6565 = vmatprep.subr.bf16.mxu0 0
        %6566 = vmatpush1.bf16.msra.mxu0 %v4639
        %6567 = vmatprep.subr.bf16.mxu0 0
        %6568 = vmatpush1.bf16.msra.mxu0 %v4640
        %6569 = vmatprep.subr.bf16.mxu0 0
        %6570 = vmatpush1.bf16.msra.mxu0 %v4641
        %6571 = vmatprep.subr.bf16.mxu0 0
        %6572 = vmatpush1.bf16.msra.mxu0 %v4642
        %6573 = vmatprep.subr.bf16.mxu0 0
        %6574 = vmatpush1.bf16.msra.mxu0 %v4643
        %6575 = vmatprep.subr.bf16.mxu0 0
        %6576 = vmatpush1.bf16.msra.mxu0 %v4644
        %6577 = vmatprep.subr.bf16.mxu0 0
        %6578 = vmatpush1.bf16.msra.mxu0 %v4645
        %6579 = vmatprep.subr.bf16.mxu0 0
        %6580 = vmatpush1.bf16.msra.mxu0 %v4646
        %6581 = vmatprep.subr.bf16.mxu0 0
        %6582 = vmatpush1.bf16.msra.mxu0 %v4647
        %6583 = vmatprep.subr.bf16.mxu0 0
        %6584 = vmatpush1.bf16.msra.mxu0 %v4648
        %6585 = vmatprep.mubr.bf16.mxu0 %v1738
        %6586 = vmatmul.mubr.bf16.gmra.mrb[0].mxu0 %v1737
        %v6587 = vpop.f32.mrb[0].mxu0
        %v6588 = vadd.f32 %v6548, %v6587
        %v6589 = vpop.f32.mrb[0].mxu0
        %v6590 = vpop.f32.mrb[0].mxu0
        %v6591 = vpop.f32.mrb[0].mxu0
        %6592 = vdwg.mxu0
        %6593 = vmatprep.subr.bf16.mxu0 0
        %6594 = vmatpush1.bf16.msra.mxu0 %v4649
        %6595 = vmatprep.subr.bf16.mxu0 0
        %6596 = vmatpush1.bf16.msra.mxu0 %v4650
        %6597 = vmatprep.subr.bf16.mxu0 0
        %6598 = vmatpush1.bf16.msra.mxu0 %v4651
        %6599 = vmatprep.subr.bf16.mxu0 0
        %6600 = vmatpush1.bf16.msra.mxu0 %v4652
        %6601 = vmatprep.subr.bf16.mxu0 0
        %6602 = vmatpush1.bf16.msra.mxu0 %v4653
        %6603 = vmatprep.subr.bf16.mxu0 0
        %6604 = vmatpush1.bf16.msra.mxu0 %v4654
        %6605 = vmatprep.subr.bf16.mxu0 0
        %6606 = vmatpush1.bf16.msra.mxu0 %v4655
        %6607 = vmatprep.subr.bf16.mxu0 0
        %6608 = vmatpush1.bf16.msra.mxu0 %v4656
        %6609 = vmatprep.subr.bf16.mxu0 0
        %6610 = vmatpush1.bf16.msra.mxu0 %v4657
        %6611 = vmatprep.subr.bf16.mxu0 0
        %6612 = vmatpush1.bf16.msra.mxu0 %v4658
        %6613 = vmatprep.subr.bf16.mxu0 0
        %6614 = vmatpush1.bf16.msra.mxu0 %v4659
        %6615 = vmatprep.subr.bf16.mxu0 0
        %6616 = vmatpush1.bf16.msra.mxu0 %v4660
        %6617 = vmatprep.subr.bf16.mxu0 0
        %6618 = vmatpush1.bf16.msra.mxu0 %v4661
        %6619 = vmatprep.subr.bf16.mxu0 0
        %6620 = vmatpush1.bf16.msra.mxu0 %v4662
        %6621 = vmatprep.subr.bf16.mxu0 0
        %6622 = vmatpush1.bf16.msra.mxu0 %v4663
        %6623 = vmatprep.subr.bf16.mxu0 0
        %6624 = vmatpush1.bf16.msra.mxu0 %v4664
        %6625 = vmatprep.mubr.bf16.mxu0 %v1740
        %6626 = vmatmul.mubr.bf16.gmra.mrb[0].mxu0 %v1739
        %v6627 = vpop.f32.mrb[0].mxu0
        %v6628 = vadd.f32 %v6588, %v6627
        %v6629 = vpop.f32.mrb[0].mxu0
        %v6630 = vpop.f32.mrb[0].mxu0
        %v6631 = vpop.f32.mrb[0].mxu0
        %6632 = vdwg.mxu0
        %6633 = vmatprep.subr.bf16.mxu0 0
        %6634 = vmatpush1.bf16.msra.mxu0 %v4665
        %6635 = vmatprep.subr.bf16.mxu0 0
        %6636 = vmatpush1.bf16.msra.mxu0 %v4666
        %6637 = vmatprep.subr.bf16.mxu0 0
        %6638 = vmatpush1.bf16.msra.mxu0 %v4667
        %6639 = vmatprep.subr.bf16.mxu0 0
        %6640 = vmatpush1.bf16.msra.mxu0 %v4668
        %6641 = vmatprep.subr.bf16.mxu0 0
        %6642 = vmatpush1.bf16.msra.mxu0 %v4669
        %6643 = vmatprep.subr.bf16.mxu0 0
        %6644 = vmatpush1.bf16.msra.mxu0 %v4670
        %6645 = vmatprep.subr.bf16.mxu0 0
        %6646 = vmatpush1.bf16.msra.mxu0 %v4671
        %6647 = vmatprep.subr.bf16.mxu0 0
        %6648 = vmatpush1.bf16.msra.mxu0 %v4672
        %6649 = vmatprep.subr.bf16.mxu0 0
        %6650 = vmatpush1.bf16.msra.mxu0 %v4673
        %6651 = vmatprep.subr.bf16.mxu0 0
        %6652 = vmatpush1.bf16.msra.mxu0 %v4674
        %6653 = vmatprep.subr.bf16.mxu0 0
        %6654 = vmatpush1.bf16.msra.mxu0 %v4675
        %6655 = vmatprep.subr.bf16.mxu0 0
        %6656 = vmatpush1.bf16.msra.mxu0 %v4676
        %6657 = vmatprep.subr.bf16.mxu0 0
        %6658 = vmatpush1.bf16.msra.mxu0 %v4677
        %6659 = vmatprep.subr.bf16.mxu0 0
        %6660 = vmatpush1.bf16.msra.mxu0 %v4678
        %6661 = vmatprep.subr.bf16.mxu0 0
        %6662 = vmatpush1.bf16.msra.mxu0 %v4679
        %6663 = vmatprep.subr.bf16.mxu0 0
        %6664 = vmatpush1.bf16.msra.mxu0 %v4680
        %6665 = vmatprep.mubr.bf16.mxu0 %v1742
        %6666 = vmatmul.mubr.bf16.gmra.mrb[0].mxu0 %v1741
        %v6667 = vpop.f32.mrb[0].mxu0
        %v6668 = vadd.f32 %v6628, %v6667
        %v6669 = vpop.f32.mrb[0].mxu0
        %v6670 = vpop.f32.mrb[0].mxu0
        %v6671 = vpop.f32.mrb[0].mxu0
        %6672 = vdwg.mxu0
        %6673 = vmatprep.subr.bf16.mxu0 0
        %6674 = vmatpush1.bf16.msra.mxu0 %v4681
        %6675 = vmatprep.subr.bf16.mxu0 0
        %6676 = vmatpush1.bf16.msra.mxu0 %v4682
        %6677 = vmatprep.subr.bf16.mxu0 0
        %6678 = vmatpush1.bf16.msra.mxu0 %v4683
        %6679 = vmatprep.subr.bf16.mxu0 0
        %6680 = vmatpush1.bf16.msra.mxu0 %v4684
        %6681 = vmatprep.subr.bf16.mxu0 0
        %6682 = vmatpush1.bf16.msra.mxu0 %v4685
        %6683 = vmatprep.subr.bf16.mxu0 0
        %6684 = vmatpush1.bf16.msra.mxu0 %v4686
        %6685 = vmatprep.subr.bf16.mxu0 0
        %6686 = vmatpush1.bf16.msra.mxu0 %v4687
        %6687 = vmatprep.subr.bf16.mxu0 0
        %6688 = vmatpush1.bf16.msra.mxu0 %v4688
        %6689 = vmatprep.subr.bf16.mxu0 0
        %6690 = vmatpush1.bf16.msra.mxu0 %v4689
        %6691 = vmatprep.subr.bf16.mxu0 0
        %6692 = vmatpush1.bf16.msra.mxu0 %v4690
        %6693 = vmatprep.subr.bf16.mxu0 0
        %6694 = vmatpush1.bf16.msra.mxu0 %v4691
        %6695 = vmatprep.subr.bf16.mxu0 0
        %6696 = vmatpush1.bf16.msra.mxu0 %v4692
        %6697 = vmatprep.subr.bf16.mxu0 0
        %6698 = vmatpush1.bf16.msra.mxu0 %v4693
        %6699 = vmatprep.subr.bf16.mxu0 0
        %6700 = vmatpush1.bf16.msra.mxu0 %v4694
        %6701 = vmatprep.subr.bf16.mxu0 0
        %6702 = vmatpush1.bf16.msra.mxu0 %v4695
        %6703 = vmatprep.subr.bf16.mxu0 0
        %6704 = vmatpush1.bf16.msra.mxu0 %v4696
        %6705 = vmatprep.mubr.bf16.mxu0 %v1744
        %6706 = vmatmul.mubr.bf16.gmra.mrb[0].mxu0 %v1743
        %v6707 = vpop.f32.mrb[0].mxu0
        %v6708 = vadd.f32 %v6668, %v6707
        %v6709 = vpop.f32.mrb[0].mxu0
        %v6710 = vpop.f32.mrb[0].mxu0
        %v6711 = vpop.f32.mrb[0].mxu0
        %6712 = vdwg.mxu0
        %6713 = vst [vmem:[%s364] sm:$0xff] %v6708
        %v6714 = vld [vmem:[%s3] sm:$0xff]
        %v6715 = vld [vmem:[%s3 + $0x8] sm:$0xff]
        %v6716 = vld [vmem:[%s3 + $0x10] sm:$0xff]
        %v6717 = vld [vmem:[%s3 + $0x18] sm:$0xff]
        %v6718 = vld [vmem:[#allocation6] sm:$0xf]
        %v6719 = vld [vmem:[#allocation6 + $0x4] sm:$0xf]
        %v6720 = vld [vmem:[#allocation6 + $0x8] sm:$0xf]
        %v6721 = vld [vmem:[#allocation6 + $0xc] sm:$0xf]
        %v6722 = vld [vmem:[#allocation6 + $0x10] sm:$0xf]
        %v6723 = vld [vmem:[#allocation6 + $0x14] sm:$0xf]
        %v6724 = vld [vmem:[#allocation6 + $0x18] sm:$0xf]
        %v6725 = vld [vmem:[#allocation6 + $0x1c] sm:$0xf]
        %v6726 = vld [vmem:[#allocation6 + $0x20] sm:$0xf]
        %v6727 = vld [vmem:[#allocation6 + $0x24] sm:$0xf]
        %v6728 = vld [vmem:[#allocation6 + $0x28] sm:$0xf]
        %v6729 = vld [vmem:[#allocation6 + $0x2c] sm:$0xf]
        %v6730 = vld [vmem:[#allocation6 + $0x30] sm:$0xf]
        %v6731 = vld [vmem:[#allocation6 + $0x34] sm:$0xf]
        %v6732 = vld [vmem:[#allocation6 + $0x38] sm:$0xf]
        %v6733 = vld [vmem:[#allocation6 + $0x3c] sm:$0xf]
        %v6734 = vld [vmem:[#allocation6 + $0x40] sm:$0xf]
        %v6735 = vld [vmem:[#allocation6 + $0x44] sm:$0xf]
        %v6736 = vld [vmem:[#allocation6 + $0x48] sm:$0xf]
        %v6737 = vld [vmem:[#allocation6 + $0x4c] sm:$0xf]
        %v6738 = vld [vmem:[#allocation6 + $0x50] sm:$0xf]
        %v6739 = vld [vmem:[#allocation6 + $0x54] sm:$0xf]
        %v6740 = vld [vmem:[#allocation6 + $0x58] sm:$0xf]
        %v6741 = vld [vmem:[#allocation6 + $0x5c] sm:$0xf]
        %v6742 = vld [vmem:[#allocation6 + $0x60] sm:$0xf]
        %v6743 = vld [vmem:[#allocation6 + $0x64] sm:$0xf]
        %v6744 = vld [vmem:[#allocation6 + $0x68] sm:$0xf]
        %v6745 = vld [vmem:[#allocation6 + $0x6c] sm:$0xf]
        %v6746 = vld [vmem:[#allocation6 + $0x70] sm:$0xf]
        %v6747 = vld [vmem:[#allocation6 + $0x74] sm:$0xf]
        %v6748 = vld [vmem:[#allocation6 + $0x78] sm:$0xf]
        %v6749 = vld [vmem:[#allocation6 + $0x7c] sm:$0xf]
        %v6750 = vld [vmem:[#allocation6 + $0x80] sm:$0xf]
        %v6751 = vld [vmem:[#allocation6 + $0x84] sm:$0xf]
        %v6752 = vld [vmem:[#allocation6 + $0x88] sm:$0xf]
        %v6753 = vld [vmem:[#allocation6 + $0x8c] sm:$0xf]
        %v6754 = vld [vmem:[#allocation6 + $0x90] sm:$0xf]
        %v6755 = vld [vmem:[#allocation6 + $0x94] sm:$0xf]
        %v6756 = vld [vmem:[#allocation6 + $0x98] sm:$0xf]
        %v6757 = vld [vmem:[#allocation6 + $0x9c] sm:$0xf]
        %v6758 = vld [vmem:[#allocation6 + $0xa0] sm:$0xf]
        %v6759 = vld [vmem:[#allocation6 + $0xa4] sm:$0xf]
        %v6760 = vld [vmem:[#allocation6 + $0xa8] sm:$0xf]
        %v6761 = vld [vmem:[#allocation6 + $0xac] sm:$0xf]
        %v6762 = vld [vmem:[#allocation6 + $0xb0] sm:$0xf]
        %v6763 = vld [vmem:[#allocation6 + $0xb4] sm:$0xf]
        %v6764 = vld [vmem:[#allocation6 + $0xb8] sm:$0xf]
        %v6765 = vld [vmem:[#allocation6 + $0xbc] sm:$0xf]
        %v6766 = vld [vmem:[#allocation6 + $0xc0] sm:$0xf]
        %v6767 = vld [vmem:[#allocation6 + $0xc4] sm:$0xf]
        %v6768 = vld [vmem:[#allocation6 + $0xc8] sm:$0xf]
        %v6769 = vld [vmem:[#allocation6 + $0xcc] sm:$0xf]
        %v6770 = vld [vmem:[#allocation6 + $0xd0] sm:$0xf]
        %v6771 = vld [vmem:[#allocation6 + $0xd4] sm:$0xf]
        %v6772 = vld [vmem:[#allocation6 + $0xd8] sm:$0xf]
        %v6773 = vld [vmem:[#allocation6 + $0xdc] sm:$0xf]
        %v6774 = vld [vmem:[#allocation6 + $0xe0] sm:$0xf]
        %v6775 = vld [vmem:[#allocation6 + $0xe4] sm:$0xf]
        %v6776 = vld [vmem:[#allocation6 + $0xe8] sm:$0xf]
        %v6777 = vld [vmem:[#allocation6 + $0xec] sm:$0xf]
        %v6778 = vld [vmem:[#allocation6 + $0xf0] sm:$0xf]
        %v6779 = vld [vmem:[#allocation6 + $0xf4] sm:$0xf]
        %v6780 = vld [vmem:[#allocation6 + $0xf8] sm:$0xf]
        %v6781 = vld [vmem:[#allocation6 + $0xfc] sm:$0xf]
        %v6782 = vld [vmem:[#allocation6 + $0x100] sm:$0xf]
        %v6783 = vld [vmem:[#allocation6 + $0x104] sm:$0xf]
        %v6784 = vld [vmem:[#allocation6 + $0x108] sm:$0xf]
        %v6785 = vld [vmem:[#allocation6 + $0x10c] sm:$0xf]
        %v6786 = vld [vmem:[#allocation6 + $0x110] sm:$0xf]
        %v6787 = vld [vmem:[#allocation6 + $0x114] sm:$0xf]
        %v6788 = vld [vmem:[#allocation6 + $0x118] sm:$0xf]
        %v6789 = vld [vmem:[#allocation6 + $0x11c] sm:$0xf]
        %v6790 = vld [vmem:[#allocation6 + $0x120] sm:$0xf]
        %v6791 = vld [vmem:[#allocation6 + $0x124] sm:$0xf]
        %v6792 = vld [vmem:[#allocation6 + $0x128] sm:$0xf]
        %v6793 = vld [vmem:[#allocation6 + $0x12c] sm:$0xf]
        %v6794 = vld [vmem:[#allocation6 + $0x130] sm:$0xf]
        %v6795 = vld [vmem:[#allocation6 + $0x134] sm:$0xf]
        %v6796 = vld [vmem:[#allocation6 + $0x138] sm:$0xf]
        %v6797 = vld [vmem:[#allocation6 + $0x13c] sm:$0xf]
        %v6798 = vld [vmem:[#allocation6 + $0x140] sm:$0xf]
        %v6799 = vld [vmem:[#allocation6 + $0x144] sm:$0xf]
        %v6800 = vld [vmem:[#allocation6 + $0x148] sm:$0xf]
        %v6801 = vld [vmem:[#allocation6 + $0x14c] sm:$0xf]
        %v6802 = vld [vmem:[#allocation6 + $0x150] sm:$0xf]
        %v6803 = vld [vmem:[#allocation6 + $0x154] sm:$0xf]
        %v6804 = vld [vmem:[#allocation6 + $0x158] sm:$0xf]
        %v6805 = vld [vmem:[#allocation6 + $0x15c] sm:$0xf]
        %v6806 = vld [vmem:[#allocation6 + $0x160] sm:$0xf]
        %v6807 = vld [vmem:[#allocation6 + $0x164] sm:$0xf]
        %v6808 = vld [vmem:[#allocation6 + $0x168] sm:$0xf]
        %v6809 = vld [vmem:[#allocation6 + $0x16c] sm:$0xf]
        %v6810 = vld [vmem:[#allocation6 + $0x170] sm:$0xf]
        %v6811 = vld [vmem:[#allocation6 + $0x174] sm:$0xf]
        %v6812 = vld [vmem:[#allocation6 + $0x178] sm:$0xf]
        %v6813 = vld [vmem:[#allocation6 + $0x17c] sm:$0xf]
        %v6814 = vld [vmem:[#allocation6 + $0x180] sm:$0xf]
        %v6815 = vld [vmem:[#allocation6 + $0x184] sm:$0xf]
        %v6816 = vld [vmem:[#allocation6 + $0x188] sm:$0xf]
        %v6817 = vld [vmem:[#allocation6 + $0x18c] sm:$0xf]
        %v6818 = vld [vmem:[#allocation6 + $0x190] sm:$0xf]
        %v6819 = vld [vmem:[#allocation6 + $0x194] sm:$0xf]
        %v6820 = vld [vmem:[#allocation6 + $0x198] sm:$0xf]
        %v6821 = vld [vmem:[#allocation6 + $0x19c] sm:$0xf]
        %v6822 = vld [vmem:[#allocation6 + $0x1a0] sm:$0xf]
        %v6823 = vld [vmem:[#allocation6 + $0x1a4] sm:$0xf]
        %v6824 = vld [vmem:[#allocation6 + $0x1a8] sm:$0xf]
        %v6825 = vld [vmem:[#allocation6 + $0x1ac] sm:$0xf]
        %v6826 = vld [vmem:[#allocation6 + $0x1b0] sm:$0xf]
        %v6827 = vld [vmem:[#allocation6 + $0x1b4] sm:$0xf]
        %v6828 = vld [vmem:[#allocation6 + $0x1b8] sm:$0xf]
        %v6829 = vld [vmem:[#allocation6 + $0x1bc] sm:$0xf]
        %v6830 = vld [vmem:[#allocation6 + $0x1c0] sm:$0xf]
        %v6831 = vld [vmem:[#allocation6 + $0x1c4] sm:$0xf]
        %v6832 = vld [vmem:[#allocation6 + $0x1c8] sm:$0xf]
        %v6833 = vld [vmem:[#allocation6 + $0x1cc] sm:$0xf]
        %v6834 = vld [vmem:[#allocation6 + $0x1d0] sm:$0xf]
        %v6835 = vld [vmem:[#allocation6 + $0x1d4] sm:$0xf]
        %v6836 = vld [vmem:[#allocation6 + $0x1d8] sm:$0xf]
        %v6837 = vld [vmem:[#allocation6 + $0x1dc] sm:$0xf]
        %v6838 = vld [vmem:[#allocation6 + $0x1e0] sm:$0xf]
        %v6839 = vld [vmem:[#allocation6 + $0x1e4] sm:$0xf]
        %v6840 = vld [vmem:[#allocation6 + $0x1e8] sm:$0xf]
        %v6841 = vld [vmem:[#allocation6 + $0x1ec] sm:$0xf]
        %v6842 = vld [vmem:[#allocation6 + $0x1f0] sm:$0xf]
        %v6843 = vld [vmem:[#allocation6 + $0x1f4] sm:$0xf]
        %v6844 = vld [vmem:[#allocation6 + $0x1f8] sm:$0xf]
        %v6845 = vld [vmem:[#allocation6 + $0x1fc] sm:$0xf]
        %v6846 = vld [vmem:[#allocation7] sm:$0x1]
        %v6848 = vlaneseq
        %v6849 = vshrl.u32 %v6848, 7
        %v6850 = vsub.s32 0, %v6849
        %v6851 = vrot.slane %v6846, %v6850
        %v6857 = vunpack.c.l.b16 %v6714
        %v6858 = vunpack.c.h.b16 %v6714
        %v6859 = vunpack.c.l.b16 %v6715
        %v6860 = vunpack.c.h.b16 %v6715
        %v6861 = vunpack.c.l.b16 %v6716
        %v6862 = vunpack.c.h.b16 %v6716
        %v6863 = vunpack.c.l.b16 %v6717
        %v6864 = vunpack.c.h.b16 %v6717
        %v6865 = vpack.c.b16 %v6857, %v6857
        %v6866 = vpack.c.b16 %v6858, %v6858
        %v6867 = vpack.c.b16 %v6859, %v6859
        %v6868 = vpack.c.b16 %v6860, %v6860
        %v6869 = vpack.c.b16 %v6861, %v6861
        %v6870 = vpack.c.b16 %v6862, %v6862
        %v6871 = vpack.c.b16 %v6863, %v6863
        %v6872 = vpack.c.b16 %v6864, %v6864
        %v7009 = vunpack.c.l.b16 %v6718
        %v7010 = vunpack.c.l.b16 %v6719
        %v7011 = vunpack.c.l.b16 %v6720
        %v7012 = vunpack.c.l.b16 %v6721
        %v7013 = vunpack.c.l.b16 %v6722
        %v7014 = vunpack.c.l.b16 %v6723
        %v7015 = vunpack.c.l.b16 %v6724
        %v7016 = vunpack.c.l.b16 %v6725
        %v7017 = vunpack.c.l.b16 %v6726
        %v7018 = vunpack.c.l.b16 %v6727
        %v7019 = vunpack.c.l.b16 %v6728
        %v7020 = vunpack.c.l.b16 %v6729
        %v7021 = vunpack.c.l.b16 %v6730
        %v7022 = vunpack.c.l.b16 %v6731
        %v7023 = vunpack.c.l.b16 %v6732
        %v7024 = vunpack.c.l.b16 %v6733
        %v7025 = vunpack.c.l.b16 %v6734
        %v7026 = vunpack.c.l.b16 %v6735
        %v7027 = vunpack.c.l.b16 %v6736
        %v7028 = vunpack.c.l.b16 %v6737
        %v7029 = vunpack.c.l.b16 %v6738
        %v7030 = vunpack.c.l.b16 %v6739
        %v7031 = vunpack.c.l.b16 %v6740
        %v7032 = vunpack.c.l.b16 %v6741
        %v7033 = vunpack.c.l.b16 %v6742
        %v7034 = vunpack.c.l.b16 %v6743
        %v7035 = vunpack.c.l.b16 %v6744
        %v7036 = vunpack.c.l.b16 %v6745
        %v7037 = vunpack.c.l.b16 %v6746
        %v7038 = vunpack.c.l.b16 %v6747
        %v7039 = vunpack.c.l.b16 %v6748
        %v7040 = vunpack.c.l.b16 %v6749
        %v7041 = vunpack.c.l.b16 %v6750
        %v7042 = vunpack.c.l.b16 %v6751
        %v7043 = vunpack.c.l.b16 %v6752
        %v7044 = vunpack.c.l.b16 %v6753
        %v7045 = vunpack.c.l.b16 %v6754
        %v7046 = vunpack.c.l.b16 %v6755
        %v7047 = vunpack.c.l.b16 %v6756
        %v7048 = vunpack.c.l.b16 %v6757
        %v7049 = vunpack.c.l.b16 %v6758
        %v7050 = vunpack.c.l.b16 %v6759
        %v7051 = vunpack.c.l.b16 %v6760
        %v7052 = vunpack.c.l.b16 %v6761
        %v7053 = vunpack.c.l.b16 %v6762
        %v7054 = vunpack.c.l.b16 %v6763
        %v7055 = vunpack.c.l.b16 %v6764
        %v7056 = vunpack.c.l.b16 %v6765
        %v7057 = vunpack.c.l.b16 %v6766
        %v7058 = vunpack.c.l.b16 %v6767
        %v7059 = vunpack.c.l.b16 %v6768
        %v7060 = vunpack.c.l.b16 %v6769
        %v7061 = vunpack.c.l.b16 %v6770
        %v7062 = vunpack.c.l.b16 %v6771
        %v7063 = vunpack.c.l.b16 %v6772
        %v7064 = vunpack.c.l.b16 %v6773
        %v7065 = vunpack.c.l.b16 %v6774
        %v7066 = vunpack.c.l.b16 %v6775
        %v7067 = vunpack.c.l.b16 %v6776
        %v7068 = vunpack.c.l.b16 %v6777
        %v7069 = vunpack.c.l.b16 %v6778
        %v7070 = vunpack.c.l.b16 %v6779
        %v7071 = vunpack.c.l.b16 %v6780
        %v7072 = vunpack.c.l.b16 %v6781
        %v7073 = vunpack.c.l.b16 %v6782
        %v7074 = vunpack.c.l.b16 %v6783
        %v7075 = vunpack.c.l.b16 %v6784
        %v7076 = vunpack.c.l.b16 %v6785
        %v7077 = vunpack.c.l.b16 %v6786
        %v7078 = vunpack.c.l.b16 %v6787
        %v7079 = vunpack.c.l.b16 %v6788
        %v7080 = vunpack.c.l.b16 %v6789
        %v7081 = vunpack.c.l.b16 %v6790
        %v7082 = vunpack.c.l.b16 %v6791
        %v7083 = vunpack.c.l.b16 %v6792
        %v7084 = vunpack.c.l.b16 %v6793
        %v7085 = vunpack.c.l.b16 %v6794
        %v7086 = vunpack.c.l.b16 %v6795
        %v7087 = vunpack.c.l.b16 %v6796
        %v7088 = vunpack.c.l.b16 %v6797
        %v7089 = vunpack.c.l.b16 %v6798
        %v7090 = vunpack.c.l.b16 %v6799
        %v7091 = vunpack.c.l.b16 %v6800
        %v7092 = vunpack.c.l.b16 %v6801
        %v7093 = vunpack.c.l.b16 %v6802
        %v7094 = vunpack.c.l.b16 %v6803
        %v7095 = vunpack.c.l.b16 %v6804
        %v7096 = vunpack.c.l.b16 %v6805
        %v7097 = vunpack.c.l.b16 %v6806
        %v7098 = vunpack.c.l.b16 %v6807
        %v7099 = vunpack.c.l.b16 %v6808
        %v7100 = vunpack.c.l.b16 %v6809
        %v7101 = vunpack.c.l.b16 %v6810
        %v7102 = vunpack.c.l.b16 %v6811
        %v7103 = vunpack.c.l.b16 %v6812
        %v7104 = vunpack.c.l.b16 %v6813
        %v7105 = vunpack.c.l.b16 %v6814
        %v7106 = vunpack.c.l.b16 %v6815
        %v7107 = vunpack.c.l.b16 %v6816
        %v7108 = vunpack.c.l.b16 %v6817
        %v7109 = vunpack.c.l.b16 %v6818
        %v7110 = vunpack.c.l.b16 %v6819
        %v7111 = vunpack.c.l.b16 %v6820
        %v7112 = vunpack.c.l.b16 %v6821
        %v7113 = vunpack.c.l.b16 %v6822
        %v7114 = vunpack.c.l.b16 %v6823
        %v7115 = vunpack.c.l.b16 %v6824
        %v7116 = vunpack.c.l.b16 %v6825
        %v7117 = vunpack.c.l.b16 %v6826
        %v7118 = vunpack.c.l.b16 %v6827
        %v7119 = vunpack.c.l.b16 %v6828
        %v7120 = vunpack.c.l.b16 %v6829
        %v7121 = vunpack.c.l.b16 %v6830
        %v7122 = vunpack.c.l.b16 %v6831
        %v7123 = vunpack.c.l.b16 %v6832
        %v7124 = vunpack.c.l.b16 %v6833
        %v7125 = vunpack.c.l.b16 %v6834
        %v7126 = vunpack.c.l.b16 %v6835
        %v7127 = vunpack.c.l.b16 %v6836
        %v7128 = vunpack.c.l.b16 %v6837
        %v7129 = vunpack.c.l.b16 %v6838
        %v7130 = vunpack.c.l.b16 %v6839
        %v7131 = vunpack.c.l.b16 %v6840
        %v7132 = vunpack.c.l.b16 %v6841
        %v7133 = vunpack.c.l.b16 %v6842
        %v7134 = vunpack.c.l.b16 %v6843
        %v7135 = vunpack.c.l.b16 %v6844
        %v7136 = vunpack.c.l.b16 %v6845
        %v7137 = vpack.c.b16 %v7010, %v7009
        %v7138 = vpack.c.b16 %v7012, %v7011
        %v7139 = vpack.c.b16 %v7014, %v7013
        %v7140 = vpack.c.b16 %v7016, %v7015
        %v7141 = vpack.c.b16 %v7018, %v7017
        %v7142 = vpack.c.b16 %v7020, %v7019
        %v7143 = vpack.c.b16 %v7022, %v7021
        %v7144 = vpack.c.b16 %v7024, %v7023
        %v7145 = vpack.c.b16 %v7026, %v7025
        %v7146 = vpack.c.b16 %v7028, %v7027
        %v7147 = vpack.c.b16 %v7030, %v7029
        %v7148 = vpack.c.b16 %v7032, %v7031
        %v7149 = vpack.c.b16 %v7034, %v7033
        %v7150 = vpack.c.b16 %v7036, %v7035
        %v7151 = vpack.c.b16 %v7038, %v7037
        %v7152 = vpack.c.b16 %v7040, %v7039
        %v7153 = vpack.c.b16 %v7042, %v7041
        %v7154 = vpack.c.b16 %v7044, %v7043
        %v7155 = vpack.c.b16 %v7046, %v7045
        %v7156 = vpack.c.b16 %v7048, %v7047
        %v7157 = vpack.c.b16 %v7050, %v7049
        %v7158 = vpack.c.b16 %v7052, %v7051
        %v7159 = vpack.c.b16 %v7054, %v7053
        %v7160 = vpack.c.b16 %v7056, %v7055
        %v7161 = vpack.c.b16 %v7058, %v7057
        %v7162 = vpack.c.b16 %v7060, %v7059
        %v7163 = vpack.c.b16 %v7062, %v7061
        %v7164 = vpack.c.b16 %v7064, %v7063
        %v7165 = vpack.c.b16 %v7066, %v7065
        %v7166 = vpack.c.b16 %v7068, %v7067
        %v7167 = vpack.c.b16 %v7070, %v7069
        %v7168 = vpack.c.b16 %v7072, %v7071
        %v7169 = vpack.c.b16 %v7074, %v7073
        %v7170 = vpack.c.b16 %v7076, %v7075
        %v7171 = vpack.c.b16 %v7078, %v7077
        %v7172 = vpack.c.b16 %v7080, %v7079
        %v7173 = vpack.c.b16 %v7082, %v7081
        %v7174 = vpack.c.b16 %v7084, %v7083
        %v7175 = vpack.c.b16 %v7086, %v7085
        %v7176 = vpack.c.b16 %v7088, %v7087
        %v7177 = vpack.c.b16 %v7090, %v7089
        %v7178 = vpack.c.b16 %v7092, %v7091
        %v7179 = vpack.c.b16 %v7094, %v7093
        %v7180 = vpack.c.b16 %v7096, %v7095
        %v7181 = vpack.c.b16 %v7098, %v7097
        %v7182 = vpack.c.b16 %v7100, %v7099
        %v7183 = vpack.c.b16 %v7102, %v7101
        %v7184 = vpack.c.b16 %v7104, %v7103
        %v7185 = vpack.c.b16 %v7106, %v7105
        %v7186 = vpack.c.b16 %v7108, %v7107
        %v7187 = vpack.c.b16 %v7110, %v7109
        %v7188 = vpack.c.b16 %v7112, %v7111
        %v7189 = vpack.c.b16 %v7114, %v7113
        %v7190 = vpack.c.b16 %v7116, %v7115
        %v7191 = vpack.c.b16 %v7118, %v7117
        %v7192 = vpack.c.b16 %v7120, %v7119
        %v7193 = vpack.c.b16 %v7122, %v7121
        %v7194 = vpack.c.b16 %v7124, %v7123
        %v7195 = vpack.c.b16 %v7126, %v7125
        %v7196 = vpack.c.b16 %v7128, %v7127
        %v7197 = vpack.c.b16 %v7130, %v7129
        %v7198 = vpack.c.b16 %v7132, %v7131
        %v7199 = vpack.c.b16 %v7134, %v7133
        %v7200 = vpack.c.b16 %v7136, %v7135
        %7265 = vmatprep.subr.bf16.mxu0 0
        %7266 = vmatpush1.bf16.msra.mxu0 %v7137
        %7267 = vmatprep.subr.bf16.mxu0 0
        %7268 = vmatpush1.bf16.msra.mxu0 %v7138
        %7269 = vmatprep.subr.bf16.mxu0 0
        %7270 = vmatpush1.bf16.msra.mxu0 %v7139
        %7271 = vmatprep.subr.bf16.mxu0 0
        %7272 = vmatpush1.bf16.msra.mxu0 %v7140
        %7273 = vmatprep.subr.bf16.mxu0 0
        %7274 = vmatpush1.bf16.msra.mxu0 %v7141
        %7275 = vmatprep.subr.bf16.mxu0 0
        %7276 = vmatpush1.bf16.msra.mxu0 %v7142
        %7277 = vmatprep.subr.bf16.mxu0 0
        %7278 = vmatpush1.bf16.msra.mxu0 %v7143
        %7279 = vmatprep.subr.bf16.mxu0 0
        %7280 = vmatpush1.bf16.msra.mxu0 %v7144
        %7281 = vmatprep.subr.bf16.mxu0 0
        %7282 = vmatpush1.bf16.msra.mxu0 %v7145
        %7283 = vmatprep.subr.bf16.mxu0 0
        %7284 = vmatpush1.bf16.msra.mxu0 %v7146
        %7285 = vmatprep.subr.bf16.mxu0 0
        %7286 = vmatpush1.bf16.msra.mxu0 %v7147
        %7287 = vmatprep.subr.bf16.mxu0 0
        %7288 = vmatpush1.bf16.msra.mxu0 %v7148
        %7289 = vmatprep.subr.bf16.mxu0 0
        %7290 = vmatpush1.bf16.msra.mxu0 %v7149
        %7291 = vmatprep.subr.bf16.mxu0 0
        %7292 = vmatpush1.bf16.msra.mxu0 %v7150
        %7293 = vmatprep.subr.bf16.mxu0 0
        %7294 = vmatpush1.bf16.msra.mxu0 %v7151
        %7295 = vmatprep.subr.bf16.mxu0 0
        %7296 = vmatpush1.bf16.msra.mxu0 %v7152
        %7297 = vmatprep.mubr.bf16.mxu0 %v6866
        %7298 = vmatmul.mubr.bf16.gmra.mrb[0].mxu0 %v6865
        %v7299 = vpop.f32.mrb[0].mxu0
        %v7300 = vadd.f32 %v6851, %v7299
        %v7301 = vpop.f32.mrb[0].mxu0
        %v7302 = vpop.f32.mrb[0].mxu0
        %v7303 = vpop.f32.mrb[0].mxu0
        %7304 = vdwg.mxu0
        %7305 = vmatprep.subr.bf16.mxu0 0
        %7306 = vmatpush1.bf16.msra.mxu0 %v7153
        %7307 = vmatprep.subr.bf16.mxu0 0
        %7308 = vmatpush1.bf16.msra.mxu0 %v7154
        %7309 = vmatprep.subr.bf16.mxu0 0
        %7310 = vmatpush1.bf16.msra.mxu0 %v7155
        %7311 = vmatprep.subr.bf16.mxu0 0
        %7312 = vmatpush1.bf16.msra.mxu0 %v7156
        %7313 = vmatprep.subr.bf16.mxu0 0
        %7314 = vmatpush1.bf16.msra.mxu0 %v7157
        %7315 = vmatprep.subr.bf16.mxu0 0
        %7316 = vmatpush1.bf16.msra.mxu0 %v7158
        %7317 = vmatprep.subr.bf16.mxu0 0
        %7318 = vmatpush1.bf16.msra.mxu0 %v7159
        %7319 = vmatprep.subr.bf16.mxu0 0
        %7320 = vmatpush1.bf16.msra.mxu0 %v7160
        %7321 = vmatprep.subr.bf16.mxu0 0
        %7322 = vmatpush1.bf16.msra.mxu0 %v7161
        %7323 = vmatprep.subr.bf16.mxu0 0
        %7324 = vmatpush1.bf16.msra.mxu0 %v7162
        %7325 = vmatprep.subr.bf16.mxu0 0
        %7326 = vmatpush1.bf16.msra.mxu0 %v7163
        %7327 = vmatprep.subr.bf16.mxu0 0
        %7328 = vmatpush1.bf16.msra.mxu0 %v7164
        %7329 = vmatprep.subr.bf16.mxu0 0
        %7330 = vmatpush1.bf16.msra.mxu0 %v7165
        %7331 = vmatprep.subr.bf16.mxu0 0
        %7332 = vmatpush1.bf16.msra.mxu0 %v7166
        %7333 = vmatprep.subr.bf16.mxu0 0
        %7334 = vmatpush1.bf16.msra.mxu0 %v7167
        %7335 = vmatprep.subr.bf16.mxu0 0
        %7336 = vmatpush1.bf16.msra.mxu0 %v7168
        %7337 = vmatprep.mubr.bf16.mxu0 %v6868
        %7338 = vmatmul.mubr.bf16.gmra.mrb[0].mxu0 %v6867
        %v7339 = vpop.f32.mrb[0].mxu0
        %v7340 = vadd.f32 %v7300, %v7339
        %v7341 = vpop.f32.mrb[0].mxu0
        %v7342 = vpop.f32.mrb[0].mxu0
        %v7343 = vpop.f32.mrb[0].mxu0
        %7344 = vdwg.mxu0
        %7345 = vmatprep.subr.bf16.mxu0 0
        %7346 = vmatpush1.bf16.msra.mxu0 %v7169
        %7347 = vmatprep.subr.bf16.mxu0 0
        %7348 = vmatpush1.bf16.msra.mxu0 %v7170
        %7349 = vmatprep.subr.bf16.mxu0 0
        %7350 = vmatpush1.bf16.msra.mxu0 %v7171
        %7351 = vmatprep.subr.bf16.mxu0 0
        %7352 = vmatpush1.bf16.msra.mxu0 %v7172
        %7353 = vmatprep.subr.bf16.mxu0 0
        %7354 = vmatpush1.bf16.msra.mxu0 %v7173
        %7355 = vmatprep.subr.bf16.mxu0 0
        %7356 = vmatpush1.bf16.msra.mxu0 %v7174
        %7357 = vmatprep.subr.bf16.mxu0 0
        %7358 = vmatpush1.bf16.msra.mxu0 %v7175
        %7359 = vmatprep.subr.bf16.mxu0 0
        %7360 = vmatpush1.bf16.msra.mxu0 %v7176
        %7361 = vmatprep.subr.bf16.mxu0 0
        %7362 = vmatpush1.bf16.msra.mxu0 %v7177
        %7363 = vmatprep.subr.bf16.mxu0 0
        %7364 = vmatpush1.bf16.msra.mxu0 %v7178
        %7365 = vmatprep.subr.bf16.mxu0 0
        %7366 = vmatpush1.bf16.msra.mxu0 %v7179
        %7367 = vmatprep.subr.bf16.mxu0 0
        %7368 = vmatpush1.bf16.msra.mxu0 %v7180
        %7369 = vmatprep.subr.bf16.mxu0 0
        %7370 = vmatpush1.bf16.msra.mxu0 %v7181
        %7371 = vmatprep.subr.bf16.mxu0 0
        %7372 = vmatpush1.bf16.msra.mxu0 %v7182
        %7373 = vmatprep.subr.bf16.mxu0 0
        %7374 = vmatpush1.bf16.msra.mxu0 %v7183
        %7375 = vmatprep.subr.bf16.mxu0 0
        %7376 = vmatpush1.bf16.msra.mxu0 %v7184
        %7377 = vmatprep.mubr.bf16.mxu0 %v6870
        %7378 = vmatmul.mubr.bf16.gmra.mrb[0].mxu0 %v6869
        %v7379 = vpop.f32.mrb[0].mxu0
        %v7380 = vadd.f32 %v7340, %v7379
        %v7381 = vpop.f32.mrb[0].mxu0
        %v7382 = vpop.f32.mrb[0].mxu0
        %v7383 = vpop.f32.mrb[0].mxu0
        %7384 = vdwg.mxu0
        %7385 = vmatprep.subr.bf16.mxu0 0
        %7386 = vmatpush1.bf16.msra.mxu0 %v7185
        %7387 = vmatprep.subr.bf16.mxu0 0
        %7388 = vmatpush1.bf16.msra.mxu0 %v7186
        %7389 = vmatprep.subr.bf16.mxu0 0
        %7390 = vmatpush1.bf16.msra.mxu0 %v7187
        %7391 = vmatprep.subr.bf16.mxu0 0
        %7392 = vmatpush1.bf16.msra.mxu0 %v7188
        %7393 = vmatprep.subr.bf16.mxu0 0
        %7394 = vmatpush1.bf16.msra.mxu0 %v7189
        %7395 = vmatprep.subr.bf16.mxu0 0
        %7396 = vmatpush1.bf16.msra.mxu0 %v7190
        %7397 = vmatprep.subr.bf16.mxu0 0
        %7398 = vmatpush1.bf16.msra.mxu0 %v7191
        %7399 = vmatprep.subr.bf16.mxu0 0
        %7400 = vmatpush1.bf16.msra.mxu0 %v7192
        %7401 = vmatprep.subr.bf16.mxu0 0
        %7402 = vmatpush1.bf16.msra.mxu0 %v7193
        %7403 = vmatprep.subr.bf16.mxu0 0
        %7404 = vmatpush1.bf16.msra.mxu0 %v7194
        %7405 = vmatprep.subr.bf16.mxu0 0
        %7406 = vmatpush1.bf16.msra.mxu0 %v7195
        %7407 = vmatprep.subr.bf16.mxu0 0
        %7408 = vmatpush1.bf16.msra.mxu0 %v7196
        %7409 = vmatprep.subr.bf16.mxu0 0
        %7410 = vmatpush1.bf16.msra.mxu0 %v7197
        %7411 = vmatprep.subr.bf16.mxu0 0
        %7412 = vmatpush1.bf16.msra.mxu0 %v7198
        %7413 = vmatprep.subr.bf16.mxu0 0
        %7414 = vmatpush1.bf16.msra.mxu0 %v7199
        %7415 = vmatprep.subr.bf16.mxu0 0
        %7416 = vmatpush1.bf16.msra.mxu0 %v7200
        %7417 = vmatprep.mubr.bf16.mxu0 %v6872
        %7418 = vmatmul.mubr.bf16.gmra.mrb[0].mxu0 %v6871
        %v7419 = vpop.f32.mrb[0].mxu0
        %v7420 = vadd.f32 %v7380, %v7419
        %v7421 = vpop.f32.mrb[0].mxu0
        %v7422 = vpop.f32.mrb[0].mxu0
        %v7423 = vpop.f32.mrb[0].mxu0
        %7424 = vdwg.mxu0
        %7425 = vst [vmem:[%s368] sm:$0xff] %v7420
        %p7426 = scmp.lt.s32.totalorder %s26, 7
        %s7427 = scalar_select %p7426, %s26, 7
        %s7428 = smul.addr %s7427, 8
        %s7429 = scalar_lea.vmem %s6, %s7428
        %p7430 = scmp.lt.s32.totalorder %s26, 7
        %s7431 = scalar_select %p7430, %s26, 7
        %s7432 = smul.addr %s7431, 8
        %s7433 = scalar_lea.vmem %s7, %s7432
        // Predicated region
        $region61: #{mamba_forward.1} parent=43 // pred_check
          %p7434 = pneg %p180
        $region62: #{mamba_forward.1} parent=43 // pred_check_branch
          %7436 = sbr.rel (%p7434) target = $region64
        $region63: #{mamba_forward.1} parent=43 // pred_region
          _
        $region64: #{mamba_forward.1} parent=43 // pred_fallthru
          _
        // Predicated region
        $region65: #{mamba_forward.1} parent=43 // pred_check
          %p7437 = pneg %p206
        $region66: #{mamba_forward.1} parent=43 // pred_check_branch
          %7439 = sbr.rel (%p7437) target = $region68
        $region67: #{mamba_forward.1} parent=43 // pred_region
          _
        $region68: #{mamba_forward.1} parent=43 // pred_fallthru
          _
      $region44: #{mamba_forward.1} parent=5 // pred_fallthru
        _
      %p7440 = scmp.le.s32.totalorder 2, %s21
      // Predicated region
      $region69: #{mamba_forward.1} parent=5 // pred_check
        %p7441 = pneg %p7440
      $region70: #{mamba_forward.1} parent=5 // pred_check_branch
        %7443 = sbr.rel (%p7441) target = $region72
      $region71: #{mamba_forward.1} parent=5 // pred_region
        %s7444 = ssub.s32 %s21, 2
        // Predicated region
        $region73: #{mamba_forward.1} parent=71 // pred_check
          %p7445 = pneg %p186
        $region74: #{mamba_forward.1} parent=71 // pred_check_branch
          %7447 = sbr.rel (%p7445) target = $region76
        $region75: #{mamba_forward.1} parent=71 // pred_region
          %p7448 = scmp.lt.s32.totalorder %s27, 7
          %s7449 = scalar_select %p7448, %s27, 7
          %s7450 = smul.addr %s7449, 8
          %s7451 = scalar_lea.vmem %s6, %s7450
        $region76: #{mamba_forward.1} parent=71 // pred_fallthru
          _
        // Predicated region
        $region77: #{mamba_forward.1} parent=71 // pred_check
          %p7452 = pneg %p212
        $region78: #{mamba_forward.1} parent=71 // pred_check_branch
          %7454 = sbr.rel (%p7452) target = $region80
        $region79: #{mamba_forward.1} parent=71 // pred_region
          %p7455 = scmp.lt.s32.totalorder %s27, 7
          %s7456 = scalar_select %p7455, %s27, 7
          %s7457 = smul.addr %s7456, 8
          %s7458 = scalar_lea.vmem %s7, %s7457
        $region80: #{mamba_forward.1} parent=71 // pred_fallthru
          _
      $region72: #{mamba_forward.1} parent=5 // pred_fallthru
        _
    $region6: #{mamba_forward.1} parent=1 // loop_footer
      %s25 = sadd.s32 1, %s21
    $region7: #{mamba_forward.1} parent=1 // loop_footer_branch
      %20 = sbr.rel target = $region3
    $region8: #{mamba_forward.1} parent=1 // loop_exit
      _
    %7459 = vsyncpa [#allocation3], 1
    %s7460 = scalar_lea.sflag [#allocation3], 1
    %7461 = vsyncpa %s7460, 1
    %7462 = vsyncpa [#allocation5], 1
    %s7463 = scalar_lea.sflag [#allocation5], 1
    %7464 = vsyncpa %s7463, 1
    %7465 = vsyncpa [#allocation8], 1

</llo_original>
